<compile_context>
chip_gen: v7x
topology: tpu7x:2x2x1
jax: 0.10.0
libtpu: 0.0.40
codegen_flags: <defaults>
</compile_context>

<pallas_src>
import jax
import jax.numpy as jnp
from jax import lax
from jax.experimental import pallas as pl
from jax.experimental.pallas import tpu as pltpu


_S2 = 81      # conv2 output spatial positions (9 * 9)
_C2 = 32      # conv2 output channels
_K2 = 256     # conv2 im2col patch size (4 * 4 * 16)
_D1 = 2592    # layer1 input size (32 * 81)


def _round_up(v, m):
    return ((v + m - 1) // m) * m


# ----------------------------- Pallas kernels ------------------------------

def _affine_relu_t_kernel(w_ref, x_ref, b_ref, o_ref):
    """Transposed affine + ReLU: o = relu(W @ X + b).

    W:(M,K) bf16, X:(K,cols) bf16, b:(M,1) f32 -> o:(M,cols) bf16.
    Output channels live on sublanes, batch*positions on lanes (lane-dense).
    """
    y = jnp.dot(w_ref[...], x_ref[...], preferred_element_type=jnp.float32)
    y = jnp.maximum(y + b_ref[...], 0.0)
    o_ref[...] = y.astype(o_ref.dtype)


def affine_relu_t(w, x, b, *, out_dtype=jnp.bfloat16, max_chunk=4096):
    """relu(W @ X + b) with X column-chunked (parallel grid, >=2 steps)."""
    M, K = w.shape
    cols = x.shape[1]
    n_chunks = max(2, -(-cols // max_chunk))
    chunk = _round_up(-(-cols // n_chunks), 128)          # lane-aligned chunks
    padded = chunk * n_chunks
    if padded != cols:
        x = jnp.pad(x, ((0, 0), (0, padded - cols)))      # zero cols, sliced off below

    out = pl.pallas_call(
        _affine_relu_t_kernel,
        out_shape=jax.ShapeDtypeStruct((M, padded), out_dtype),
        grid=(n_chunks,),
        in_specs=[
            pl.BlockSpec((M, K), lambda i: (0, 0)),       # weights resident
            pl.BlockSpec((K, chunk), lambda i: (0, i)),
            pl.BlockSpec((M, 1), lambda i: (0, 0)),
        ],
        out_specs=pl.BlockSpec((M, chunk), lambda i: (0, i)),
        compiler_params=pltpu.CompilerParams(dimension_semantics=("parallel",)),
    )(w, x, b)
    return out[:, :cols]


def _mlp_kernel(x_ref, w1_ref, b1_ref, w2_ref, b2_ref, w3_ref, b3_ref, o_ref):
    """layer1 -> ReLU -> layer2 -> ReLU -> layer3, batched row form.

    x:(Btile,2592) bf16; every matmul is a single wide MXU op (no per-channel
    loop, no lane extraction); the Q-values are stored as one (Btile,5) block.
    """
    h = jnp.dot(x_ref[...], w1_ref[...], preferred_element_type=jnp.float32)
    h = jnp.maximum(h + b1_ref[...], 0.0).astype(jnp.bfloat16)          # (Bt, 64)
    h = jnp.dot(h, w2_ref[...], preferred_element_type=jnp.float32)
    h = jnp.maximum(h + b2_ref[...], 0.0).astype(jnp.bfloat16)          # (Bt, 32)
    out = jnp.dot(h, w3_ref[...], preferred_element_type=jnp.float32)
    o_ref[...] = out + b3_ref[...]                                      # (Bt, 5) f32


def _pick_btile(batch):
    for t in (64, 32, 16, 8):                 # prefer grid length >= 2 (v7x: 2 TCs)
        if batch % t == 0 and batch // t >= 2:
            return t
    for t in (64, 32, 16, 8):
        if batch % t == 0:
            return t
    return batch


def mlp(x, params):
    """x: (B, 2592) bf16 (NCHW-flattened conv2 activations) -> (B, 5) f32."""
    B, D = x.shape
    h1d = params['w_l1'].shape[1]
    h2d = params['w_l2'].shape[1]
    n_out = params['w_l3'].shape[1]
    bt = _pick_btile(B)

    return pl.pallas_call(
        _mlp_kernel,
        out_shape=jax.ShapeDtypeStruct((B, n_out), jnp.float32),
        grid=(B // bt,),
        in_specs=[
            pl.BlockSpec((bt, D), lambda i: (i, 0)),
            pl.BlockSpec((D, h1d), lambda i: (0, 0)),
            pl.BlockSpec((1, h1d), lambda i: (0, 0)),
            pl.BlockSpec((h1d, h2d), lambda i: (0, 0)),
            pl.BlockSpec((1, h2d), lambda i: (0, 0)),
            pl.BlockSpec((h2d, n_out), lambda i: (0, 0)),
            pl.BlockSpec((1, n_out), lambda i: (0, 0)),
        ],
        out_specs=pl.BlockSpec((bt, n_out), lambda i: (i, 0)),
        compiler_params=pltpu.CompilerParams(dimension_semantics=("parallel",)),
    )(x, params['w_l1'], params['b_l1'], params['w_l2'], params['b_l2'],
      params['w_l3'], params['b_l3'])


# ------------------------------ glue (XLA) ---------------------------------
# TODO(synk): crop/grayscale, the two im2col patch extractions, and the NCHW
# flatten relayout stay in XLA (pure data-layout work); doing them in-kernel
# would need relayouts/reshapes across the (8,128) vreg tiling.

def preprocess(state):
    """(B,96,96,3) raw pixels -> cropped grayscale (B,84,84,1), /255."""
    img = state[:, 0:84, 6:90, :]
    gray = (0.2989 * img[..., 0] + 0.587 * img[..., 1] + 0.114 * img[..., 2]) / 255.0
    return gray[..., None]


def conv1_patches(x):
    """(B,84,84,1) -> (B,20,20,64); single input channel so columns are (kh,kw)."""
    return lax.conv_general_dilated_patches(
        x, filter_shape=(8, 8), window_strides=(4, 4), padding='VALID',
        dimension_numbers=('NHWC', 'HWIO', 'NHWC'))


def conv2_patches(h1):
    """(B,20,20,16) NHWC -> (B,81,256) with columns ordered (kh, kw, c)."""
    B = h1.shape[0]
    cols = []
    for kh in range(4):
        for kw in range(4):
            cols.append(h1[:, kh:kh + 18:2, kw:kw + 18:2, :])        # (B,9,9,16)
    p = jnp.stack(cols, axis=3)                                      # (B,9,9,16,16)
    return p.reshape(B, _S2, _K2)


def q_network_forward(state, params):
    """state: (B, 96, 96, 3) float32 NHWC (raw pixels 0..255) -> (B, 5) f32."""
    B = state.shape[0]
    x = preprocess(state)                                            # (B,84,84,1)

    # conv_1 (transposed form: lane-dense output).
    p1_t = conv1_patches(x).reshape(B * 400, 64).T.astype(jnp.bfloat16)   # (64, B*400)
    h1_t = affine_relu_t(params['w_c1'], p1_t, params['b_c1'])            # (16, B*400)
    h1 = h1_t.T.reshape(B, 20, 20, 16)                                    # NHWC, bf16

    # conv_2 (transposed form: lane-dense output).
    p2_t = conv2_patches(h1).reshape(B * _S2, _K2).T                      # (256, B*81)
    h2_t = affine_relu_t(params['w_c2'], p2_t, params['b_c2'])            # (32, B*81)

    # NCHW flatten (c*81 + s) as an XLA relayout, then the fused 3-layer MLP.
    flat = h2_t.reshape(_C2, B, _S2).transpose(1, 0, 2).reshape(B, _D1)   # (B, 2592)
    return mlp(flat, params)                                              # (B, 5)


def init_params(key):
    """PyTorch-default init (uniform +/- 1/sqrt(fan_in)), pre-laid-out for the kernels."""
    ks = jax.random.split(key, 10)

    def uinit(k, shape, fan_in):
        bound = 1.0 / float(fan_in) ** 0.5
        return jax.random.uniform(k, shape, jnp.float32, -bound, bound)

    # PyTorch layouts.
    w_c1 = uinit(ks[0], (16, 1, 8, 8), 1 * 8 * 8)       # (out, in, kh, kw)
    b_c1 = uinit(ks[1], (16,), 1 * 8 * 8)
    w_c2 = uinit(ks[2], (32, 16, 4, 4), 16 * 4 * 4)
    b_c2 = uinit(ks[3], (32,), 16 * 4 * 4)
    w_l1 = uinit(ks[4], (64, _D1), _D1)                 # (out, in), in = c*81 + s (NCHW)
    b_l1 = uinit(ks[5], (64,), _D1)
    w_l2 = uinit(ks[6], (32, 64), 64)
    b_l2 = uinit(ks[7], (32,), 64)
    w_l3 = uinit(ks[8], (5, 32), 32)
    b_l3 = uinit(ks[9], (5,), 32)

    return {
        # conv weights in transposed (out, patch) form; patch column order is
        # (kh, kw, in) to match the im2col glue.  (in_channels == 1 for conv1,
        # so conv_general_dilated_patches' feature order is unambiguous.)
        'w_c1': w_c1.reshape(16, 64).astype(jnp.bfloat16),
        'b_c1': b_c1.reshape(16, 1),
        'w_c2': jnp.transpose(w_c2, (0, 2, 3, 1)).reshape(_C2, _K2).astype(jnp.bfloat16),
        'b_c2': b_c2.reshape(_C2, 1),
        # MLP weights in row form (x @ W.T): the NCHW flatten done in glue
        # matches PyTorch's x.reshape(B,-1), so w_l1 is used untouched (.T).
        'w_l1': jnp.transpose(w_l1).astype(jnp.bfloat16),   # (2592, 64)
        'b_l1': b_l1.reshape(1, 64),
        'w_l2': jnp.transpose(w_l2).astype(jnp.bfloat16),   # (64, 32)
        'b_l2': b_l2.reshape(1, 32),
        'w_l3': jnp.transpose(w_l3).astype(jnp.bfloat16),   # (32, 5)
        'b_l3': b_l3.reshape(1, 5),
    }


# --------------------------------- main -------------------------------------

if __name__ == "__main__":
    key = jax.random.PRNGKey(0)
    k_state, k_params = jax.random.split(key)

    # CarRacing-v2 observation batch: (B, 96, 96, 3), pixel values in [0, 255].
    B = 16   # small, but enough to exercise batching (Btile=8, grid length 2)
    state = jax.random.uniform(k_state, (B, 96, 96, 3), jnp.float32, 0.0, 255.0)
    params = init_params(k_params)

    qvals = jax.jit(q_network_forward)(state, params)
    qvals = jax.block_until_ready(qvals)

    assert qvals.shape == (B, 5), qvals.shape
    assert qvals.dtype == jnp.float32
    print("KERNEL_OK")
</pallas_src>

<mosaic_0001>
module attributes {stable_mosaic.version = 11 : i64} {
  func.func @_affine_relu_t_kernel(%arg0: i32, %arg1: memref<16x64xbf16, #tpu.memory_space<vmem>>, %arg2: memref<64x3200xbf16, #tpu.memory_space<vmem>>, %arg3: memref<16x1xf32, #tpu.memory_space<vmem>>, %arg4: memref<16x3200xbf16, #tpu.memory_space<vmem>>) attributes {dimension_semantics = [#tpu.dimension_semantics<parallel>], iteration_bounds = array<i64: 2>, scalar_prefetch = 0 : i64, scratch_operands = 0 : i64, tpu.core_type = #tpu.core_type<tc>, window_params = [{pipeline_mode = #tpu.pipeline_mode<synchronous>, transform_indices = @transform_0, window_bounds = array<i64: 16, 64>}, {transform_indices = @transform_1, window_bounds = array<i64: 64, 3200>}, {pipeline_mode = #tpu.pipeline_mode<synchronous>, transform_indices = @transform_2, window_bounds = array<i64: 16, 1>}, {transform_indices = @transform_3, window_bounds = array<i64: 16, 3200>}]} {
    %c0 = arith.constant 0 : index
    %c0_0 = arith.constant 0 : index
    %0 = vector.load %arg1[%c0, %c0_0] : memref<16x64xbf16, #tpu.memory_space<vmem>>, vector<16x64xbf16>
    %c0_1 = arith.constant 0 : index
    %c0_2 = arith.constant 0 : index
    %1 = vector.load %arg2[%c0_1, %c0_2] : memref<64x3200xbf16, #tpu.memory_space<vmem>>, vector<64x3200xbf16>
    %cst = arith.constant dense<0.000000e+00> : vector<16x3200xf32>
    %2 = tpu.matmul %0, %1, %cst {dimension_numbers = #tpu.dot_dimension_numbers<[1], [0], [0], [1], [0, 0, 1, 1], [], []>} : vector<16x64xbf16>, vector<64x3200xbf16>, vector<16x3200xf32> -> vector<16x3200xf32>
    %c0_3 = arith.constant 0 : index
    %c0_4 = arith.constant 0 : index
    %3 = vector.load %arg3[%c0_3, %c0_4] : memref<16x1xf32, #tpu.memory_space<vmem>>, vector<16x1xf32>
    %4 = vector.broadcast %3 : vector<16x1xf32> to vector<16x3200xf32>
    %5 = arith.addf %2, %4 : vector<16x3200xf32>
    %cst_5 = arith.constant 0.000000e+00 : f32
    %6 = vector.broadcast %cst_5 : f32 to vector<16x3200xf32>
    %7 = arith.maximumf %5, %6 : vector<16x3200xf32>
    %8 = arith.truncf %7 : vector<16x3200xf32> to vector<16x3200xbf16>
    %c0_6 = arith.constant 0 : index
    %c0_7 = arith.constant 0 : index
    %9 = vector.load %arg4[%c0_6, %c0_7] : memref<16x3200xbf16, #tpu.memory_space<vmem>>, vector<16x3200xbf16>
    tpu.vector_store %arg4[%c0_6, %c0_7], %8 {strides = array<i32>} : memref<16x3200xbf16, #tpu.memory_space<vmem>>, vector<16x3200xbf16>,
    return
  }
  func.func @transform_0(%arg0: i32) -> (i32, i32) {
    %c0_i32 = arith.constant 0 : i32
    %c0_i32_0 = arith.constant 0 : i32
    %c0_i32_1 = arith.constant 0 : i32
    return %c0_i32, %c0_i32_0 : i32, i32
  }
  func.func @transform_1(%arg0: i32) -> (i32, i32) {
    %c0_i32 = arith.constant 0 : i32
    %c0_i32_0 = arith.constant 0 : i32
    return %c0_i32, %arg0 : i32, i32
  }
  func.func @transform_2(%arg0: i32) -> (i32, i32) {
    %c0_i32 = arith.constant 0 : i32
    %c0_i32_0 = arith.constant 0 : i32
    %c0_i32_1 = arith.constant 0 : i32
    return %c0_i32, %c0_i32_0 : i32, i32
  }
  func.func @transform_3(%arg0: i32) -> (i32, i32) {
    %c0_i32 = arith.constant 0 : i32
    %c0_i32_0 = arith.constant 0 : i32
    return %c0_i32, %arg0 : i32, i32
  }
}

module attributes {stable_mosaic.version = 11 : i64} {
  func.func @_affine_relu_t_kernel(%arg0: i32, %arg1: memref<32x256xbf16, #tpu.memory_space<vmem>>, %arg2: memref<256x768xbf16, #tpu.memory_space<vmem>>, %arg3: memref<32x1xf32, #tpu.memory_space<vmem>>, %arg4: memref<32x768xbf16, #tpu.memory_space<vmem>>) attributes {dimension_semantics = [#tpu.dimension_semantics<parallel>], iteration_bounds = array<i64: 2>, scalar_prefetch = 0 : i64, scratch_operands = 0 : i64, tpu.core_type = #tpu.core_type<tc>, window_params = [{pipeline_mode = #tpu.pipeline_mode<synchronous>, transform_indices = @transform_0, window_bounds = array<i64: 32, 256>}, {transform_indices = @transform_1, window_bounds = array<i64: 256, 768>}, {pipeline_mode = #tpu.pipeline_mode<synchronous>, transform_indices = @transform_2, window_bounds = array<i64: 32, 1>}, {transform_indices = @transform_3, window_bounds = array<i64: 32, 768>}]} {
    %c0 = arith.constant 0 : index
    %c0_0 = arith.constant 0 : index
    %0 = vector.load %arg1[%c0, %c0_0] : memref<32x256xbf16, #tpu.memory_space<vmem>>, vector<32x256xbf16>
    %c0_1 = arith.constant 0 : index
    %c0_2 = arith.constant 0 : index
    %1 = vector.load %arg2[%c0_1, %c0_2] : memref<256x768xbf16, #tpu.memory_space<vmem>>, vector<256x768xbf16>
    %cst = arith.constant dense<0.000000e+00> : vector<32x768xf32>
    %2 = tpu.matmul %0, %1, %cst {dimension_numbers = #tpu.dot_dimension_numbers<[1], [0], [0], [1], [0, 0, 1, 1], [], []>} : vector<32x256xbf16>, vector<256x768xbf16>, vector<32x768xf32> -> vector<32x768xf32>
    %c0_3 = arith.constant 0 : index
    %c0_4 = arith.constant 0 : index
    %3 = vector.load %arg3[%c0_3, %c0_4] : memref<32x1xf32, #tpu.memory_space<vmem>>, vector<32x1xf32>
    %4 = vector.broadcast %3 : vector<32x1xf32> to vector<32x768xf32>
    %5 = arith.addf %2, %4 : vector<32x768xf32>
    %cst_5 = arith.constant 0.000000e+00 : f32
    %6 = vector.broadcast %cst_5 : f32 to vector<32x768xf32>
    %7 = arith.maximumf %5, %6 : vector<32x768xf32>
    %8 = arith.truncf %7 : vector<32x768xf32> to vector<32x768xbf16>
    %c0_6 = arith.constant 0 : index
    %c0_7 = arith.constant 0 : index
    %9 = vector.load %arg4[%c0_6, %c0_7] : memref<32x768xbf16, #tpu.memory_space<vmem>>, vector<32x768xbf16>
    tpu.vector_store %arg4[%c0_6, %c0_7], %8 {strides = array<i32>} : memref<32x768xbf16, #tpu.memory_space<vmem>>, vector<32x768xbf16>,
    return
  }
  func.func @transform_0(%arg0: i32) -> (i32, i32) {
    %c0_i32 = arith.constant 0 : i32
    %c0_i32_0 = arith.constant 0 : i32
    %c0_i32_1 = arith.constant 0 : i32
    return %c0_i32, %c0_i32_0 : i32, i32
  }
  func.func @transform_1(%arg0: i32) -> (i32, i32) {
    %c0_i32 = arith.constant 0 : i32
    %c0_i32_0 = arith.constant 0 : i32
    return %c0_i32, %arg0 : i32, i32
  }
  func.func @transform_2(%arg0: i32) -> (i32, i32) {
    %c0_i32 = arith.constant 0 : i32
    %c0_i32_0 = arith.constant 0 : i32
    %c0_i32_1 = arith.constant 0 : i32
    return %c0_i32, %c0_i32_0 : i32, i32
  }
  func.func @transform_3(%arg0: i32) -> (i32, i32) {
    %c0_i32 = arith.constant 0 : i32
    %c0_i32_0 = arith.constant 0 : i32
    return %c0_i32, %arg0 : i32, i32
  }
}

module attributes {stable_mosaic.version = 11 : i64} {
  func.func @_mlp_kernel(%arg0: i32, %arg1: memref<8x2592xbf16, #tpu.memory_space<vmem>>, %arg2: memref<2592x64xbf16, #tpu.memory_space<vmem>>, %arg3: memref<1x64xf32, #tpu.memory_space<vmem>>, %arg4: memref<64x32xbf16, #tpu.memory_space<vmem>>, %arg5: memref<1x32xf32, #tpu.memory_space<vmem>>, %arg6: memref<32x5xbf16, #tpu.memory_space<vmem>>, %arg7: memref<1x5xf32, #tpu.memory_space<vmem>>, %arg8: memref<8x5xf32, #tpu.memory_space<vmem>>) attributes {dimension_semantics = [#tpu.dimension_semantics<parallel>], iteration_bounds = array<i64: 2>, scalar_prefetch = 0 : i64, scratch_operands = 0 : i64, tpu.core_type = #tpu.core_type<tc>, window_params = [{transform_indices = @transform_0, window_bounds = array<i64: 8, 2592>}, {pipeline_mode = #tpu.pipeline_mode<synchronous>, transform_indices = @transform_1, window_bounds = array<i64: 2592, 64>}, {pipeline_mode = #tpu.pipeline_mode<synchronous>, transform_indices = @transform_2, window_bounds = array<i64: 1, 64>}, {pipeline_mode = #tpu.pipeline_mode<synchronous>, transform_indices = @transform_3, window_bounds = array<i64: 64, 32>}, {pipeline_mode = #tpu.pipeline_mode<synchronous>, transform_indices = @transform_4, window_bounds = array<i64: 1, 32>}, {pipeline_mode = #tpu.pipeline_mode<synchronous>, transform_indices = @transform_5, window_bounds = array<i64: 32, 5>}, {pipeline_mode = #tpu.pipeline_mode<synchronous>, transform_indices = @transform_6, window_bounds = array<i64: 1, 5>}, {transform_indices = @transform_7, window_bounds = array<i64: 8, 5>}]} {
    %c0 = arith.constant 0 : index
    %c0_0 = arith.constant 0 : index
    %0 = vector.load %arg1[%c0, %c0_0] : memref<8x2592xbf16, #tpu.memory_space<vmem>>, vector<8x2592xbf16>
    %c0_1 = arith.constant 0 : index
    %c0_2 = arith.constant 0 : index
    %1 = vector.load %arg2[%c0_1, %c0_2] : memref<2592x64xbf16, #tpu.memory_space<vmem>>, vector<2592x64xbf16>
    %cst = arith.constant dense<0.000000e+00> : vector<8x64xf32>
    %2 = tpu.matmul %0, %1, %cst {dimension_numbers = #tpu.dot_dimension_numbers<[1], [0], [0], [1], [0, 0, 1, 1], [], []>} : vector<8x2592xbf16>, vector<2592x64xbf16>, vector<8x64xf32> -> vector<8x64xf32>
    %c0_3 = arith.constant 0 : index
    %c0_4 = arith.constant 0 : index
    %3 = vector.load %arg3[%c0_3, %c0_4] : memref<1x64xf32, #tpu.memory_space<vmem>>, vector<1x64xf32>
    %4 = vector.broadcast %3 : vector<1x64xf32> to vector<8x64xf32>
    %5 = arith.addf %2, %4 : vector<8x64xf32>
    %cst_5 = arith.constant 0.000000e+00 : f32
    %6 = vector.broadcast %cst_5 : f32 to vector<8x64xf32>
    %7 = arith.maximumf %5, %6 : vector<8x64xf32>
    %8 = arith.truncf %7 : vector<8x64xf32> to vector<8x64xbf16>
    %c0_6 = arith.constant 0 : index
    %c0_7 = arith.constant 0 : index
    %9 = vector.load %arg4[%c0_6, %c0_7] : memref<64x32xbf16, #tpu.memory_space<vmem>>, vector<64x32xbf16>
    %cst_8 = arith.constant dense<0.000000e+00> : vector<8x32xf32>
    %10 = tpu.matmul %8, %9, %cst_8 {dimension_numbers = #tpu.dot_dimension_numbers<[1], [0], [0], [1], [0, 0, 1, 1], [], []>} : vector<8x64xbf16>, vector<64x32xbf16>, vector<8x32xf32> -> vector<8x32xf32>
    %c0_9 = arith.constant 0 : index
    %c0_10 = arith.constant 0 : index
    %11 = vector.load %arg5[%c0_9, %c0_10] : memref<1x32xf32, #tpu.memory_space<vmem>>, vector<1x32xf32>
    %12 = vector.broadcast %11 : vector<1x32xf32> to vector<8x32xf32>
    %13 = arith.addf %10, %12 : vector<8x32xf32>
    %cst_11 = arith.constant 0.000000e+00 : f32
    %14 = vector.broadcast %cst_11 : f32 to vector<8x32xf32>
    %15 = arith.maximumf %13, %14 : vector<8x32xf32>
    %16 = arith.truncf %15 : vector<8x32xf32> to vector<8x32xbf16>
    %c0_12 = arith.constant 0 : index
    %c0_13 = arith.constant 0 : index
    %17 = vector.load %arg6[%c0_12, %c0_13] : memref<32x5xbf16, #tpu.memory_space<vmem>>, vector<32x5xbf16>
    %cst_14 = arith.constant dense<0.000000e+00> : vector<8x5xf32>
    %18 = tpu.matmul %16, %17, %cst_14 {dimension_numbers = #tpu.dot_dimension_numbers<[1], [0], [0], [1], [0, 0, 1, 1], [], []>} : vector<8x32xbf16>, vector<32x5xbf16>, vector<8x5xf32> -> vector<8x5xf32>
    %c0_15 = arith.constant 0 : index
    %c0_16 = arith.constant 0 : index
    %19 = vector.load %arg7[%c0_15, %c0_16] : memref<1x5xf32, #tpu.memory_space<vmem>>, vector<1x5xf32>
    %20 = vector.broadcast %19 : vector<1x5xf32> to vector<8x5xf32>
    %21 = arith.addf %18, %20 : vector<8x5xf32>
    %c0_17 = arith.constant 0 : index
    %c0_18 = arith.constant 0 : index
    %22 = vector.load %arg8[%c0_17, %c0_18] : memref<8x5xf32, #tpu.memory_space<vmem>>, vector<8x5xf32>
    tpu.vector_store %arg8[%c0_17, %c0_18], %21 {strides = array<i32>} : memref<8x5xf32, #tpu.memory_space<vmem>>, vector<8x5xf32>,
    return
  }
  func.func @transform_0(%arg0: i32) -> (i32, i32) {
    %c0_i32 = arith.constant 0 : i32
    %c0_i32_0 = arith.constant 0 : i32
    return %arg0, %c0_i32 : i32, i32
  }
  func.func @transform_1(%arg0: i32) -> (i32, i32) {
    %c0_i32 = arith.constant 0 : i32
    %c0_i32_0 = arith.constant 0 : i32
    %c0_i32_1 = arith.constant 0 : i32
    return %c0_i32, %c0_i32_0 : i32, i32
  }
  func.func @transform_2(%arg0: i32) -> (i32, i32) {
    %c0_i32 = arith.constant 0 : i32
    %c0_i32_0 = arith.constant 0 : i32
    %c0_i32_1 = arith.constant 0 : i32
    return %c0_i32, %c0_i32_0 : i32, i32
  }
  func.func @transform_3(%arg0: i32) -> (i32, i32) {
    %c0_i32 = arith.constant 0 : i32
    %c0_i32_0 = arith.constant 0 : i32
    %c0_i32_1 = arith.constant 0 : i32
    return %c0_i32, %c0_i32_0 : i32, i32
  }
  func.func @transform_4(%arg0: i32) -> (i32, i32) {
    %c0_i32 = arith.constant 0 : i32
    %c0_i32_0 = arith.constant 0 : i32
    %c0_i32_1 = arith.constant 0 : i32
    return %c0_i32, %c0_i32_0 : i32, i32
  }
  func.func @transform_5(%arg0: i32) -> (i32, i32) {
    %c0_i32 = arith.constant 0 : i32
    %c0_i32_0 = arith.constant 0 : i32
    %c0_i32_1 = arith.constant 0 : i32
    return %c0_i32, %c0_i32_0 : i32, i32
  }
  func.func @transform_6(%arg0: i32) -> (i32, i32) {
    %c0_i32 = arith.constant 0 : i32
    %c0_i32_0 = arith.constant 0 : i32
    %c0_i32_1 = arith.constant 0 : i32
    return %c0_i32, %c0_i32_0 : i32, i32
  }
  func.func @transform_7(%arg0: i32) -> (i32, i32) {
    %c0_i32 = arith.constant 0 : i32
    %c0_i32_0 = arith.constant 0 : i32
    return %arg0, %c0_i32 : i32, i32
  }
}

</mosaic_0001>

<llo_original>
// kernel: q_network_forward.3
$region0: #{q_network_forward.3}
  #allocation0 [shape = 'u32[]', space=smem, size = 0x4, offset = 0x4, fixed_abs, tag = 'smem constant byte address 0x4 - core index']
  #allocation1 [shape = 'u32[144,128]{1,0:T(1,128)}', space=vmem, size = 0x12000, scoped, tag = 'internal scratch']
  %s0 = inlined_call_operand.vmem [shape: bf16[16,64], index: 0, kind: input, shape index: {}]
  %s1 = inlined_call_operand.vmem [shape: bf16[64,6400], index: 1, kind: input, shape index: {}]
  %s2 = inlined_call_operand.vmem [shape: f32[16,1], index: 2, kind: input, shape index: {}]
  %s3 = inlined_call_operand.vmem [shape: bf16[16,6400], index: 3, kind: output, shape index: {}]
  %s4 = sld [smem:[#allocation0]]
  $region93: #{q_network_forward.3} parent=0
    _
  %s6 = ssub.s32 1, %s4
  %s7 = scalar_select 0, %s6, %s4
  $region1: #{q_network_forward.3} parent=0
    #allocation2 [shape = 'u8[819200]{0}', space=vmem, size = 0xc8000, scoped, tag = 'input window, operand 1']
    #allocation3 [shape = 'u8[204800]{0}', space=vmem, size = 0x32000, scoped, tag = 'output window, operand 0']
    loop: start=0, step=1, limit=4
    $region2: #{q_network_forward.3} parent=1 // loop_pre_header
      _
    $region3: #{q_network_forward.3} parent=1 // loop_header
      %s9 = sphi 0, %s13
      %p10 = scmp.ge.s32.totalorder %s9, 4
      %s17 = sphi 0, %s17
      %s19 = sphi 0, %s17
      %s20 = sphi 0, %s19
      %s34 = sphi 0, %s20
      %s40 = sphi 0, %s42
      %s43 = sphi 0, %s40
      %s44 = sphi 0, %s43
      %s60 = sphi 0, %s44
      %s64 = sphi 0, %s64
      %s66 = sphi 0, %s64
      %s67 = sphi 0, %s66
      %s81 = sphi 0, %s67
      %s87 = sphi 0, %s89
      %s90 = sphi 0, %s87
      %s91 = sphi 0, %s90
      %s107 = sphi 0, %s91
    $region4: #{q_network_forward.3} parent=1 // loop_header_branch
      %12 = sbr.rel (%p10) target = $region8
    $region5: #{q_network_forward.3} parent=1 // loop_body
      %s14 = ssub.s32 %s9, 1
      %s15 = ssub.s32 %s9, 2
      %s16 = sadd.s32 %s9, 1
      %s18 = sadd.s32 %s17, 1
      %p21 = scmp.eq.s32.totalorder %s9, 1
      %p22 = scmp.ne.s32.totalorder %s17, %s19
      %p23 = scmp.eq.s32.totalorder %s9, 0
      %p24 = por %p22, %p23
      %p25 = scmp.ne.s32.totalorder %s17, %s19
      %p26 = scmp.eq.s32.totalorder %s14, 1
      %p27 = por %p25, %p26
      %p28 = scmp.ne.s32.totalorder %s19, %s20
      %p29 = scmp.eq.s32.totalorder %s14, 0
      %p30 = por %p28, %p29
      %p31 = scmp.ne.s32.totalorder %s19, %s20
      %p32 = scmp.eq.s32.totalorder %s15, 1
      %p33 = por %p31, %p32
      %p35 = scmp.ne.s32.totalorder %s20, %s34
      %p36 = scmp.eq.s32.totalorder %s15, 0
      %p37 = por %p35, %p36
      %s38 = ssub.s32 %s9, %s16
      %p39 = scmp.eq.s32.totalorder %s38, 0
      %s41 = sadd.s32 %s40, 1
      %s42 = scalar_select %p39, %s40, %s41
      %p45 = pneg %p39
      %p46 = scmp.eq.s32.totalorder %s9, 1
      %p47 = por %p45, %p46
      %p48 = scmp.ne.s32.totalorder %s40, %s43
      %p49 = scmp.eq.s32.totalorder %s9, 0
      %p50 = por %p48, %p49
      %p51 = scmp.ne.s32.totalorder %s40, %s43
      %p52 = scmp.eq.s32.totalorder %s14, 1
      %p53 = por %p51, %p52
      %p54 = scmp.ne.s32.totalorder %s43, %s44
      %p55 = scmp.eq.s32.totalorder %s14, 0
      %p56 = por %p54, %p55
      %p57 = scmp.ne.s32.totalorder %s43, %s44
      %p58 = scmp.eq.s32.totalorder %s15, 1
      %p59 = por %p57, %p58
      %p61 = scmp.ne.s32.totalorder %s44, %s60
      %p62 = scmp.eq.s32.totalorder %s15, 0
      %p63 = por %p61, %p62
      %s65 = sadd.s32 %s64, 1
      %p68 = scmp.eq.s32.totalorder %s9, 1
      %p69 = scmp.ne.s32.totalorder %s64, %s66
      %p70 = scmp.eq.s32.totalorder %s9, 0
      %p71 = por %p69, %p70
      %p72 = scmp.ne.s32.totalorder %s64, %s66
      %p73 = scmp.eq.s32.totalorder %s14, 1
      %p74 = por %p72, %p73
      %p75 = scmp.ne.s32.totalorder %s66, %s67
      %p76 = scmp.eq.s32.totalorder %s14, 0
      %p77 = por %p75, %p76
      %p78 = scmp.ne.s32.totalorder %s66, %s67
      %p79 = scmp.eq.s32.totalorder %s15, 1
      %p80 = por %p78, %p79
      %p82 = scmp.ne.s32.totalorder %s67, %s81
      %p83 = scmp.eq.s32.totalorder %s15, 0
      %p84 = por %p82, %p83
      %s85 = ssub.s32 %s9, %s16
      %p86 = scmp.eq.s32.totalorder %s85, 0
      %s88 = sadd.s32 %s87, 1
      %s89 = scalar_select %p86, %s87, %s88
      %p92 = pneg %p86
      %p93 = scmp.eq.s32.totalorder %s9, 1
      %p94 = por %p92, %p93
      %p95 = scmp.ne.s32.totalorder %s87, %s90
      %p96 = scmp.eq.s32.totalorder %s9, 0
      %p97 = por %p95, %p96
      %p98 = scmp.ne.s32.totalorder %s87, %s90
      %p99 = scmp.eq.s32.totalorder %s14, 1
      %p100 = por %p98, %p99
      %p101 = scmp.ne.s32.totalorder %s90, %s91
      %p102 = scmp.eq.s32.totalorder %s14, 0
      %p103 = por %p101, %p102
      %p104 = scmp.ne.s32.totalorder %s90, %s91
      %p105 = scmp.eq.s32.totalorder %s15, 1
      %p106 = por %p104, %p105
      %p108 = scmp.ne.s32.totalorder %s91, %s107
      %p109 = scmp.eq.s32.totalorder %s15, 0
      %p110 = por %p108, %p109
      %p111 = scmp.le.s32.totalorder 1, %s9
      %p112 = scmp.lt.s32.totalorder %s9, 3
      %p113 = pnand %p111, %p112
      %p114 = pneg %p113
      // Predicated region
      $region9: #{q_network_forward.3} parent=5 // pred_check
        _
      $region10: #{q_network_forward.3} parent=5 // pred_check_branch
        %116 = sbr.rel (%p113) target = $region12
      $region11: #{q_network_forward.3} parent=5 // pred_region
        %s117 = ssub.s32 %s9, 1
        // Predicated region
        $region13: #{q_network_forward.3} parent=11 // pred_check
          %p118 = pneg %p30
        $region14: #{q_network_forward.3} parent=11 // pred_check_branch
          %120 = sbr.rel (%p118) target = $region16
        $region15: #{q_network_forward.3} parent=11 // pred_region
          _
        $region16: #{q_network_forward.3} parent=11 // pred_fallthru
          _
        // Predicated region
        $region17: #{q_network_forward.3} parent=11 // pred_check
          %p121 = pneg %p77
        $region18: #{q_network_forward.3} parent=11 // pred_check_branch
          %123 = sbr.rel (%p121) target = $region20
        $region19: #{q_network_forward.3} parent=11 // pred_region
          _
        $region20: #{q_network_forward.3} parent=11 // pred_fallthru
          _
      $region12: #{q_network_forward.3} parent=5 // pred_fallthru
        _
      %p124 = scmp.lt.s32.totalorder %s9, 2
      // Predicated region
      $region21: #{q_network_forward.3} parent=5 // pred_check
        %p125 = pneg %p124
      $region22: #{q_network_forward.3} parent=5 // pred_check_branch
        %127 = sbr.rel (%p125) target = $region24
      $region23: #{q_network_forward.3} parent=5 // pred_region
        // Predicated region
        $region25: #{q_network_forward.3} parent=23 // pred_check
          %p128 = pneg %p50
        $region26: #{q_network_forward.3} parent=23 // pred_check_branch
          %130 = sbr.rel (%p128) target = $region28
        $region27: #{q_network_forward.3} parent=23 // pred_region
          %s131 = sand.u32 %s40, 1
          %s132 = sand.u32 %s40, 1
          %s133 = smul.addr %s132, 800
          %s134 = scalar_lea.vmem [#allocation2], %s133
          %s135 = smul.u32 25, %s9
          %s136 = smul.addr %s135, 4
          %s137 = scalar_lea.vmem %s1, %s136
          // Predicated region
          $region29: #{q_network_forward.3} parent=27 // pred_check
            _
          $region30: #{q_network_forward.3} parent=27 // pred_check_branch
            %139 = sbr.rel (0) target = $region32
          $region31: #{q_network_forward.3} parent=27 // pred_region
            // Predicated region
            $region33: #{q_network_forward.3} parent=31 // pred_check
              _
            $region34: #{q_network_forward.3} parent=31 // pred_check_branch
              %141 = sbr.rel (0) target = $region36
            $region35: #{q_network_forward.3} parent=31 // pred_region
              %s142 = scalar_lea.vmem %s137, 96
              %s143 = scalar_lea.vmem %s134, 96 [#allocation2]
              loop: start=0, step=1, limit=1
              $region37: #{q_network_forward.3} parent=35 // loop_pre_header
                _
              $region38: #{q_network_forward.3} parent=35 // loop_header
                %s145 = sphi 0, %s149
                %p146 = scmp.ge.s32.totalorder %s145, 1
                %s150 = sphi %s137, %s137
                %s151 = sphi %s134, %s134
              $region39: #{q_network_forward.3} parent=35 // loop_header_branch
                %148 = sbr.rel (%p146) target = $region43
              $region40: #{q_network_forward.3} parent=35 // loop_body
                %v152 = vld [vmem:[%s150] sm:$0xff]
                %153 = vst [vmem:[%s151] sm:$0xff] %v152
                %v154 = vld [vmem:[%s150 + $0x8] sm:$0xff]
                %155 = vst [vmem:[%s151 + $0x8] sm:$0xff] %v154
                %v156 = vld [vmem:[%s150 + $0x10] sm:$0xff]
                %157 = vst [vmem:[%s151 + $0x10] sm:$0xff] %v156
                %v158 = vld [vmem:[%s150 + $0x18] sm:$0xff]
                %159 = vst [vmem:[%s151 + $0x18] sm:$0xff] %v158
                %v160 = vld [vmem:[%s150 + $0x20] sm:$0xff]
                %161 = vst [vmem:[%s151 + $0x20] sm:$0xff] %v160
                %v162 = vld [vmem:[%s150 + $0x28] sm:$0xff]
                %163 = vst [vmem:[%s151 + $0x28] sm:$0xff] %v162
                %v164 = vld [vmem:[%s150 + $0x30] sm:$0xff]
                %165 = vst [vmem:[%s151 + $0x30] sm:$0xff] %v164
                %v166 = vld [vmem:[%s150 + $0x38] sm:$0xff]
                %167 = vst [vmem:[%s151 + $0x38] sm:$0xff] %v166
                %v168 = vld [vmem:[%s150 + $0x40] sm:$0xff]
                %169 = vst [vmem:[%s151 + $0x40] sm:$0xff] %v168
                %v170 = vld [vmem:[%s150 + $0x48] sm:$0xff]
                %171 = vst [vmem:[%s151 + $0x48] sm:$0xff] %v170
                %v172 = vld [vmem:[%s150 + $0x50] sm:$0xff]
                %173 = vst [vmem:[%s151 + $0x50] sm:$0xff] %v172
                %v174 = vld [vmem:[%s150 + $0x58] sm:$0xff]
                %175 = vst [vmem:[%s151 + $0x58] sm:$0xff] %v174
                %v176 = vld [vmem:[%s150 + $0xc8] sm:$0xff]
                %177 = vst [vmem:[%s151 + $0x64] sm:$0xff] %v176
                %v178 = vld [vmem:[%s150 + $0xd0] sm:$0xff]
                %179 = vst [vmem:[%s151 + $0x6c] sm:$0xff] %v178
                %v180 = vld [vmem:[%s150 + $0xd8] sm:$0xff]
                %181 = vst [vmem:[%s151 + $0x74] sm:$0xff] %v180
                %v182 = vld [vmem:[%s150 + $0xe0] sm:$0xff]
                %183 = vst [vmem:[%s151 + $0x7c] sm:$0xff] %v182
                %v184 = vld [vmem:[%s150 + $0xe8] sm:$0xff]
                %185 = vst [vmem:[%s151 + $0x84] sm:$0xff] %v184
                %v186 = vld [vmem:[%s150 + $0xf0] sm:$0xff]
                %187 = vst [vmem:[%s151 + $0x8c] sm:$0xff] %v186
                %v188 = vld [vmem:[%s150 + $0xf8] sm:$0xff]
                %189 = vst [vmem:[%s151 + $0x94] sm:$0xff] %v188
                %v190 = vld [vmem:[%s150 + $0x100] sm:$0xff]
                %191 = vst [vmem:[%s151 + $0x9c] sm:$0xff] %v190
                %v192 = vld [vmem:[%s150 + $0x108] sm:$0xff]
                %193 = vst [vmem:[%s151 + $0xa4] sm:$0xff] %v192
                %v194 = vld [vmem:[%s150 + $0x110] sm:$0xff]
                %195 = vst [vmem:[%s151 + $0xac] sm:$0xff] %v194
                %v196 = vld [vmem:[%s150 + $0x118] sm:$0xff]
                %197 = vst [vmem:[%s151 + $0xb4] sm:$0xff] %v196
                %v198 = vld [vmem:[%s150 + $0x120] sm:$0xff]
                %199 = vst [vmem:[%s151 + $0xbc] sm:$0xff] %v198
                %v200 = vld [vmem:[%s150 + $0x190] sm:$0xff]
                %201 = vst [vmem:[%s151 + $0xc8] sm:$0xff] %v200
                %v202 = vld [vmem:[%s150 + $0x198] sm:$0xff]
                %203 = vst [vmem:[%s151 + $0xd0] sm:$0xff] %v202
                %v204 = vld [vmem:[%s150 + $0x1a0] sm:$0xff]
                %205 = vst [vmem:[%s151 + $0xd8] sm:$0xff] %v204
                %v206 = vld [vmem:[%s150 + $0x1a8] sm:$0xff]
                %207 = vst [vmem:[%s151 + $0xe0] sm:$0xff] %v206
                %v208 = vld [vmem:[%s150 + $0x1b0] sm:$0xff]
                %209 = vst [vmem:[%s151 + $0xe8] sm:$0xff] %v208
                %v210 = vld [vmem:[%s150 + $0x1b8] sm:$0xff]
                %211 = vst [vmem:[%s151 + $0xf0] sm:$0xff] %v210
                %v212 = vld [vmem:[%s150 + $0x1c0] sm:$0xff]
                %213 = vst [vmem:[%s151 + $0xf8] sm:$0xff] %v212
                %v214 = vld [vmem:[%s150 + $0x1c8] sm:$0xff]
                %215 = vst [vmem:[%s151 + $0x100] sm:$0xff] %v214
                %v216 = vld [vmem:[%s150 + $0x1d0] sm:$0xff]
                %217 = vst [vmem:[%s151 + $0x108] sm:$0xff] %v216
                %v218 = vld [vmem:[%s150 + $0x1d8] sm:$0xff]
                %219 = vst [vmem:[%s151 + $0x110] sm:$0xff] %v218
                %v220 = vld [vmem:[%s150 + $0x1e0] sm:$0xff]
                %221 = vst [vmem:[%s151 + $0x118] sm:$0xff] %v220
                %v222 = vld [vmem:[%s150 + $0x1e8] sm:$0xff]
                %223 = vst [vmem:[%s151 + $0x120] sm:$0xff] %v222
                %v224 = vld [vmem:[%s150 + $0x258] sm:$0xff]
                %225 = vst [vmem:[%s151 + $0x12c] sm:$0xff] %v224
                %v226 = vld [vmem:[%s150 + $0x260] sm:$0xff]
                %227 = vst [vmem:[%s151 + $0x134] sm:$0xff] %v226
                %v228 = vld [vmem:[%s150 + $0x268] sm:$0xff]
                %229 = vst [vmem:[%s151 + $0x13c] sm:$0xff] %v228
                %v230 = vld [vmem:[%s150 + $0x270] sm:$0xff]
                %231 = vst [vmem:[%s151 + $0x144] sm:$0xff] %v230
                %v232 = vld [vmem:[%s150 + $0x278] sm:$0xff]
                %233 = vst [vmem:[%s151 + $0x14c] sm:$0xff] %v232
                %v234 = vld [vmem:[%s150 + $0x280] sm:$0xff]
                %235 = vst [vmem:[%s151 + $0x154] sm:$0xff] %v234
                %v236 = vld [vmem:[%s150 + $0x288] sm:$0xff]
                %237 = vst [vmem:[%s151 + $0x15c] sm:$0xff] %v236
                %v238 = vld [vmem:[%s150 + $0x290] sm:$0xff]
                %239 = vst [vmem:[%s151 + $0x164] sm:$0xff] %v238
                %v240 = vld [vmem:[%s150 + $0x298] sm:$0xff]
                %241 = vst [vmem:[%s151 + $0x16c] sm:$0xff] %v240
                %v242 = vld [vmem:[%s150 + $0x2a0] sm:$0xff]
                %243 = vst [vmem:[%s151 + $0x174] sm:$0xff] %v242
                %v244 = vld [vmem:[%s150 + $0x2a8] sm:$0xff]
                %245 = vst [vmem:[%s151 + $0x17c] sm:$0xff] %v244
                %v246 = vld [vmem:[%s150 + $0x2b0] sm:$0xff]
                %247 = vst [vmem:[%s151 + $0x184] sm:$0xff] %v246
                %v248 = vld [vmem:[%s150 + $0x320] sm:$0xff]
                %249 = vst [vmem:[%s151 + $0x190] sm:$0xff] %v248
                %v250 = vld [vmem:[%s150 + $0x328] sm:$0xff]
                %251 = vst [vmem:[%s151 + $0x198] sm:$0xff] %v250
                %v252 = vld [vmem:[%s150 + $0x330] sm:$0xff]
                %253 = vst [vmem:[%s151 + $0x1a0] sm:$0xff] %v252
                %v254 = vld [vmem:[%s150 + $0x338] sm:$0xff]
                %255 = vst [vmem:[%s151 + $0x1a8] sm:$0xff] %v254
                %v256 = vld [vmem:[%s150 + $0x340] sm:$0xff]
                %257 = vst [vmem:[%s151 + $0x1b0] sm:$0xff] %v256
                %v258 = vld [vmem:[%s150 + $0x348] sm:$0xff]
                %259 = vst [vmem:[%s151 + $0x1b8] sm:$0xff] %v258
                %v260 = vld [vmem:[%s150 + $0x350] sm:$0xff]
                %261 = vst [vmem:[%s151 + $0x1c0] sm:$0xff] %v260
                %v262 = vld [vmem:[%s150 + $0x358] sm:$0xff]
                %263 = vst [vmem:[%s151 + $0x1c8] sm:$0xff] %v262
                %v264 = vld [vmem:[%s150 + $0x360] sm:$0xff]
                %265 = vst [vmem:[%s151 + $0x1d0] sm:$0xff] %v264
                %v266 = vld [vmem:[%s150 + $0x368] sm:$0xff]
                %267 = vst [vmem:[%s151 + $0x1d8] sm:$0xff] %v266
                %v268 = vld [vmem:[%s150 + $0x370] sm:$0xff]
                %269 = vst [vmem:[%s151 + $0x1e0] sm:$0xff] %v268
                %v270 = vld [vmem:[%s150 + $0x378] sm:$0xff]
                %271 = vst [vmem:[%s151 + $0x1e8] sm:$0xff] %v270
                %v272 = vld [vmem:[%s150 + $0x3e8] sm:$0xff]
                %273 = vst [vmem:[%s151 + $0x1f4] sm:$0xff] %v272
                %v274 = vld [vmem:[%s150 + $0x3f0] sm:$0xff]
                %275 = vst [vmem:[%s151 + $0x1fc] sm:$0xff] %v274
                %v276 = vld [vmem:[%s150 + $0x3f8] sm:$0xff]
                %277 = vst [vmem:[%s151 + $0x204] sm:$0xff] %v276
                %v278 = vld [vmem:[%s150 + $0x400] sm:$0xff]
                %279 = vst [vmem:[%s151 + $0x20c] sm:$0xff] %v278
                %v280 = vld [vmem:[%s150 + $0x408] sm:$0xff]
                %281 = vst [vmem:[%s151 + $0x214] sm:$0xff] %v280
                %v282 = vld [vmem:[%s150 + $0x410] sm:$0xff]
                %283 = vst [vmem:[%s151 + $0x21c] sm:$0xff] %v282
                %v284 = vld [vmem:[%s150 + $0x418] sm:$0xff]
                %285 = vst [vmem:[%s151 + $0x224] sm:$0xff] %v284
                %v286 = vld [vmem:[%s150 + $0x420] sm:$0xff]
                %287 = vst [vmem:[%s151 + $0x22c] sm:$0xff] %v286
                %v288 = vld [vmem:[%s150 + $0x428] sm:$0xff]
                %289 = vst [vmem:[%s151 + $0x234] sm:$0xff] %v288
                %v290 = vld [vmem:[%s150 + $0x430] sm:$0xff]
                %291 = vst [vmem:[%s151 + $0x23c] sm:$0xff] %v290
                %v292 = vld [vmem:[%s150 + $0x438] sm:$0xff]
                %293 = vst [vmem:[%s151 + $0x244] sm:$0xff] %v292
                %v294 = vld [vmem:[%s150 + $0x440] sm:$0xff]
                %295 = vst [vmem:[%s151 + $0x24c] sm:$0xff] %v294
                %v296 = vld [vmem:[%s150 + $0x4b0] sm:$0xff]
                %297 = vst [vmem:[%s151 + $0x258] sm:$0xff] %v296
                %v298 = vld [vmem:[%s150 + $0x4b8] sm:$0xff]
                %299 = vst [vmem:[%s151 + $0x260] sm:$0xff] %v298
                %v300 = vld [vmem:[%s150 + $0x4c0] sm:$0xff]
                %301 = vst [vmem:[%s151 + $0x268] sm:$0xff] %v300
                %v302 = vld [vmem:[%s150 + $0x4c8] sm:$0xff]
                %303 = vst [vmem:[%s151 + $0x270] sm:$0xff] %v302
                %v304 = vld [vmem:[%s150 + $0x4d0] sm:$0xff]
                %305 = vst [vmem:[%s151 + $0x278] sm:$0xff] %v304
                %v306 = vld [vmem:[%s150 + $0x4d8] sm:$0xff]
                %307 = vst [vmem:[%s151 + $0x280] sm:$0xff] %v306
                %v308 = vld [vmem:[%s150 + $0x4e0] sm:$0xff]
                %309 = vst [vmem:[%s151 + $0x288] sm:$0xff] %v308
                %v310 = vld [vmem:[%s150 + $0x4e8] sm:$0xff]
                %311 = vst [vmem:[%s151 + $0x290] sm:$0xff] %v310
                %v312 = vld [vmem:[%s150 + $0x4f0] sm:$0xff]
                %313 = vst [vmem:[%s151 + $0x298] sm:$0xff] %v312
                %v314 = vld [vmem:[%s150 + $0x4f8] sm:$0xff]
                %315 = vst [vmem:[%s151 + $0x2a0] sm:$0xff] %v314
                %v316 = vld [vmem:[%s150 + $0x500] sm:$0xff]
                %317 = vst [vmem:[%s151 + $0x2a8] sm:$0xff] %v316
                %v318 = vld [vmem:[%s150 + $0x508] sm:$0xff]
                %319 = vst [vmem:[%s151 + $0x2b0] sm:$0xff] %v318
                %v320 = vld [vmem:[%s150 + $0x578] sm:$0xff]
                %321 = vst [vmem:[%s151 + $0x2bc] sm:$0xff] %v320
                %v322 = vld [vmem:[%s150 + $0x580] sm:$0xff]
                %323 = vst [vmem:[%s151 + $0x2c4] sm:$0xff] %v322
                %v324 = vld [vmem:[%s150 + $0x588] sm:$0xff]
                %325 = vst [vmem:[%s151 + $0x2cc] sm:$0xff] %v324
                %v326 = vld [vmem:[%s150 + $0x590] sm:$0xff]
                %327 = vst [vmem:[%s151 + $0x2d4] sm:$0xff] %v326
                %v328 = vld [vmem:[%s150 + $0x598] sm:$0xff]
                %329 = vst [vmem:[%s151 + $0x2dc] sm:$0xff] %v328
                %v330 = vld [vmem:[%s150 + $0x5a0] sm:$0xff]
                %331 = vst [vmem:[%s151 + $0x2e4] sm:$0xff] %v330
                %v332 = vld [vmem:[%s150 + $0x5a8] sm:$0xff]
                %333 = vst [vmem:[%s151 + $0x2ec] sm:$0xff] %v332
                %v334 = vld [vmem:[%s150 + $0x5b0] sm:$0xff]
                %335 = vst [vmem:[%s151 + $0x2f4] sm:$0xff] %v334
                %v336 = vld [vmem:[%s150 + $0x5b8] sm:$0xff]
                %337 = vst [vmem:[%s151 + $0x2fc] sm:$0xff] %v336
                %v338 = vld [vmem:[%s150 + $0x5c0] sm:$0xff]
                %339 = vst [vmem:[%s151 + $0x304] sm:$0xff] %v338
                %v340 = vld [vmem:[%s150 + $0x5c8] sm:$0xff]
                %341 = vst [vmem:[%s151 + $0x30c] sm:$0xff] %v340
                %v342 = vld [vmem:[%s150 + $0x5d0] sm:$0xff]
                %343 = vst [vmem:[%s151 + $0x314] sm:$0xff] %v342
              $region41: #{q_network_forward.3} parent=35 // loop_footer
                %s149 = sadd.s32 1, %s145
              $region42: #{q_network_forward.3} parent=35 // loop_footer_branch
                %144 = sbr.rel target = $region38
              $region43: #{q_network_forward.3} parent=35 // loop_exit
                _
              loop: start=0, step=1, limit=1
              $region44: #{q_network_forward.3} parent=35 // loop_pre_header
                _
              $region45: #{q_network_forward.3} parent=35 // loop_header
                %s346 = sphi 0, %s350
                %p347 = scmp.ge.s32.totalorder %s346, 1
                %s351 = sphi %s142, %s142
                %s352 = sphi %s143, %s143
              $region46: #{q_network_forward.3} parent=35 // loop_header_branch
                %349 = sbr.rel (%p347) target = $region50
              $region47: #{q_network_forward.3} parent=35 // loop_body
                %v353 = vld [vmem:[%s351] sm:$0xf]
                %354 = vst [vmem:[%s352] sm:$0xf] %v353
                %v355 = vld [vmem:[%s351 + $0xc8] sm:$0xf]
                %356 = vst [vmem:[%s352 + $0x64] sm:$0xf] %v355
                %v357 = vld [vmem:[%s351 + $0x190] sm:$0xf]
                %358 = vst [vmem:[%s352 + $0xc8] sm:$0xf] %v357
                %v359 = vld [vmem:[%s351 + $0x258] sm:$0xf]
                %360 = vst [vmem:[%s352 + $0x12c] sm:$0xf] %v359
                %v361 = vld [vmem:[%s351 + $0x320] sm:$0xf]
                %362 = vst [vmem:[%s352 + $0x190] sm:$0xf] %v361
                %v363 = vld [vmem:[%s351 + $0x3e8] sm:$0xf]
                %364 = vst [vmem:[%s352 + $0x1f4] sm:$0xf] %v363
                %v365 = vld [vmem:[%s351 + $0x4b0] sm:$0xf]
                %366 = vst [vmem:[%s352 + $0x258] sm:$0xf] %v365
                %v367 = vld [vmem:[%s351 + $0x578] sm:$0xf]
                %368 = vst [vmem:[%s352 + $0x2bc] sm:$0xf] %v367
              $region48: #{q_network_forward.3} parent=35 // loop_footer
                %s350 = sadd.s32 1, %s346
              $region49: #{q_network_forward.3} parent=35 // loop_footer_branch
                %345 = sbr.rel target = $region45
              $region50: #{q_network_forward.3} parent=35 // loop_exit
                _
            $region36: #{q_network_forward.3} parent=31 // pred_fallthru
              _
          $region32: #{q_network_forward.3} parent=27 // pred_fallthru
            _
          %369 = vnop
        $region28: #{q_network_forward.3} parent=23 // pred_fallthru
          _
      $region24: #{q_network_forward.3} parent=5 // pred_fallthru
        _
      %p370 = scmp.le.s32.totalorder 1, %s9
      %p371 = scmp.lt.s32.totalorder %s9, 3
      %p372 = pnand %p370, %p371
      %p373 = pneg %p372
      // Predicated region
      $region51: #{q_network_forward.3} parent=5 // pred_check
        _
      $region52: #{q_network_forward.3} parent=5 // pred_check_branch
        %375 = sbr.rel (%p372) target = $region54
      $region53: #{q_network_forward.3} parent=5 // pred_region
        %s376 = ssub.s32 %s9, 1
        %s377 = sand.u32 %s43, 1
        %s378 = sand.u32 %s43, 1
        %s379 = smul.addr %s378, 800
        %s380 = scalar_lea.vmem [#allocation2], %s379
        // Predicated region
        $region55: #{q_network_forward.3} parent=53 // pred_check
          %p381 = pneg %p56
        $region56: #{q_network_forward.3} parent=53 // pred_check_branch
          %383 = sbr.rel (%p381) target = $region58
        $region57: #{q_network_forward.3} parent=53 // pred_region
          _
        $region58: #{q_network_forward.3} parent=53 // pred_fallthru
          _
        %p384 = pneg %p30
        %p385 = pneg %p27
        %s386 = sand.u32 %s43, 1
        %s387 = sand.u32 %s43, 1
        %s388 = smul.addr %s387, 800
        %s389 = scalar_lea.vmem [#allocation2], %s388
        %p390 = pneg %p56
        %p391 = pneg %p53
        %p392 = pneg %p77
        %p393 = pneg %p74
        %p394 = pneg %p103
        %p395 = pneg %p100
        %s396 = sand.u32 %s90, 1
        %s397 = sand.u32 %s90, 1
        %s398 = smul.addr %s397, 200
        %s399 = scalar_lea.vmem [#allocation3], %s398
        %s400 = smul.u32 25, %s14
        %s401 = smul.u32 25, %s14
        %v403 = vld [vmem:[%s0] sm:$0xf]
        %v404 = vld [vmem:[%s0 + $0x4] sm:$0xf]
        %v405 = vld [vmem:[%s380] sm:$0xff]
        %v406 = vld [vmem:[%s380 + $0x8] sm:$0xff]
        %v407 = vld [vmem:[%s380 + $0x10] sm:$0xff]
        %v408 = vld [vmem:[%s380 + $0x18] sm:$0xff]
        %v409 = vld [vmem:[%s380 + $0x20] sm:$0xff]
        %v410 = vld [vmem:[%s380 + $0x28] sm:$0xff]
        %v411 = vld [vmem:[%s380 + $0x30] sm:$0xff]
        %v412 = vld [vmem:[%s380 + $0x38] sm:$0xff]
        %v413 = vld [vmem:[%s380 + $0x40] sm:$0xff]
        %v414 = vld [vmem:[%s380 + $0x48] sm:$0xff]
        %v415 = vld [vmem:[%s380 + $0x50] sm:$0xff]
        %v416 = vld [vmem:[%s380 + $0x58] sm:$0xff]
        %v417 = vld [vmem:[%s380 + $0x60] sm:$0xf]
        %v418 = vld [vmem:[%s380 + $0x64] sm:$0xff]
        %v419 = vld [vmem:[%s380 + $0x6c] sm:$0xff]
        %v420 = vld [vmem:[%s380 + $0x74] sm:$0xff]
        %v421 = vld [vmem:[%s380 + $0x7c] sm:$0xff]
        %v422 = vld [vmem:[%s380 + $0x84] sm:$0xff]
        %v423 = vld [vmem:[%s380 + $0x8c] sm:$0xff]
        %v424 = vld [vmem:[%s380 + $0x94] sm:$0xff]
        %v425 = vld [vmem:[%s380 + $0x9c] sm:$0xff]
        %v426 = vld [vmem:[%s380 + $0xa4] sm:$0xff]
        %v427 = vld [vmem:[%s380 + $0xac] sm:$0xff]
        %v428 = vld [vmem:[%s380 + $0xb4] sm:$0xff]
        %v429 = vld [vmem:[%s380 + $0xbc] sm:$0xff]
        %v430 = vld [vmem:[%s380 + $0xc4] sm:$0xf]
        %v431 = vld [vmem:[%s380 + $0xc8] sm:$0xff]
        %v432 = vld [vmem:[%s380 + $0xd0] sm:$0xff]
        %v433 = vld [vmem:[%s380 + $0xd8] sm:$0xff]
        %v434 = vld [vmem:[%s380 + $0xe0] sm:$0xff]
        %v435 = vld [vmem:[%s380 + $0xe8] sm:$0xff]
        %v436 = vld [vmem:[%s380 + $0xf0] sm:$0xff]
        %v437 = vld [vmem:[%s380 + $0xf8] sm:$0xff]
        %v438 = vld [vmem:[%s380 + $0x100] sm:$0xff]
        %v439 = vld [vmem:[%s380 + $0x108] sm:$0xff]
        %v440 = vld [vmem:[%s380 + $0x110] sm:$0xff]
        %v441 = vld [vmem:[%s380 + $0x118] sm:$0xff]
        %v442 = vld [vmem:[%s380 + $0x120] sm:$0xff]
        %v443 = vld [vmem:[%s380 + $0x128] sm:$0xf]
        %v444 = vld [vmem:[%s380 + $0x12c] sm:$0xff]
        %v445 = vld [vmem:[%s380 + $0x134] sm:$0xff]
        %v446 = vld [vmem:[%s380 + $0x13c] sm:$0xff]
        %v447 = vld [vmem:[%s380 + $0x144] sm:$0xff]
        %v448 = vld [vmem:[%s380 + $0x14c] sm:$0xff]
        %v449 = vld [vmem:[%s380 + $0x154] sm:$0xff]
        %v450 = vld [vmem:[%s380 + $0x15c] sm:$0xff]
        %v451 = vld [vmem:[%s380 + $0x164] sm:$0xff]
        %v452 = vld [vmem:[%s380 + $0x16c] sm:$0xff]
        %v453 = vld [vmem:[%s380 + $0x174] sm:$0xff]
        %v454 = vld [vmem:[%s380 + $0x17c] sm:$0xff]
        %v455 = vld [vmem:[%s380 + $0x184] sm:$0xff]
        %v456 = vld [vmem:[%s380 + $0x18c] sm:$0xf]
        %v457 = vld [vmem:[%s380 + $0x190] sm:$0xff]
        %v458 = vld [vmem:[%s380 + $0x198] sm:$0xff]
        %v459 = vld [vmem:[%s380 + $0x1a0] sm:$0xff]
        %v460 = vld [vmem:[%s380 + $0x1a8] sm:$0xff]
        %v461 = vld [vmem:[%s380 + $0x1b0] sm:$0xff]
        %v462 = vld [vmem:[%s380 + $0x1b8] sm:$0xff]
        %v463 = vld [vmem:[%s380 + $0x1c0] sm:$0xff]
        %v464 = vld [vmem:[%s380 + $0x1c8] sm:$0xff]
        %v465 = vld [vmem:[%s380 + $0x1d0] sm:$0xff]
        %v466 = vld [vmem:[%s380 + $0x1d8] sm:$0xff]
        %v467 = vld [vmem:[%s380 + $0x1e0] sm:$0xff]
        %v468 = vld [vmem:[%s380 + $0x1e8] sm:$0xff]
        %v469 = vld [vmem:[%s380 + $0x1f0] sm:$0xf]
        %v470 = vld [vmem:[%s380 + $0x1f4] sm:$0xff]
        %v471 = vld [vmem:[%s380 + $0x1fc] sm:$0xff]
        %v472 = vld [vmem:[%s380 + $0x204] sm:$0xff]
        %v473 = vld [vmem:[%s380 + $0x20c] sm:$0xff]
        %v474 = vld [vmem:[%s380 + $0x214] sm:$0xff]
        %v475 = vld [vmem:[%s380 + $0x21c] sm:$0xff]
        %v476 = vld [vmem:[%s380 + $0x224] sm:$0xff]
        %v477 = vld [vmem:[%s380 + $0x22c] sm:$0xff]
        %v478 = vld [vmem:[%s380 + $0x234] sm:$0xff]
        %v479 = vld [vmem:[%s380 + $0x23c] sm:$0xff]
        %v480 = vld [vmem:[%s380 + $0x244] sm:$0xff]
        %v481 = vld [vmem:[%s380 + $0x24c] sm:$0xff]
        %v482 = vld [vmem:[%s380 + $0x254] sm:$0xf]
        %v483 = vld [vmem:[%s380 + $0x258] sm:$0xff]
        %v484 = vld [vmem:[%s380 + $0x260] sm:$0xff]
        %v485 = vld [vmem:[%s380 + $0x268] sm:$0xff]
        %v486 = vld [vmem:[%s380 + $0x270] sm:$0xff]
        %v487 = vld [vmem:[%s380 + $0x278] sm:$0xff]
        %v488 = vld [vmem:[%s380 + $0x280] sm:$0xff]
        %v489 = vld [vmem:[%s380 + $0x288] sm:$0xff]
        %v490 = vld [vmem:[%s380 + $0x290] sm:$0xff]
        %v491 = vld [vmem:[%s380 + $0x298] sm:$0xff]
        %v492 = vld [vmem:[%s380 + $0x2a0] sm:$0xff]
        %v493 = vld [vmem:[%s380 + $0x2a8] sm:$0xff]
        %v494 = vld [vmem:[%s380 + $0x2b0] sm:$0xff]
        %v495 = vld [vmem:[%s380 + $0x2b8] sm:$0xf]
        %v496 = vld [vmem:[%s380 + $0x2bc] sm:$0xff]
        %v497 = vld [vmem:[%s380 + $0x2c4] sm:$0xff]
        %v498 = vld [vmem:[%s380 + $0x2cc] sm:$0xff]
        %v499 = vld [vmem:[%s380 + $0x2d4] sm:$0xff]
        %v500 = vld [vmem:[%s380 + $0x2dc] sm:$0xff]
        %v501 = vld [vmem:[%s380 + $0x2e4] sm:$0xff]
        %v502 = vld [vmem:[%s380 + $0x2ec] sm:$0xff]
        %v503 = vld [vmem:[%s380 + $0x2f4] sm:$0xff]
        %v504 = vld [vmem:[%s380 + $0x2fc] sm:$0xff]
        %v505 = vld [vmem:[%s380 + $0x304] sm:$0xff]
        %v506 = vld [vmem:[%s380 + $0x30c] sm:$0xff]
        %v507 = vld [vmem:[%s380 + $0x314] sm:$0xff]
        %v508 = vld [vmem:[%s380 + $0x31c] sm:$0xf]
        %v509 = vld [vmem:[%s2] sm:$0xff]
        %v510 = vld [vmem:[%s2 + $0x8] sm:$0xff]
        %512 = vset.pattern.permute.xlu0 0
        %513 = vperm.xlu0 %512, %v509
        %v514 = vpop.permute.xlu0 %513
        %517 = vset.pattern.permute.xlu0 0
        %518 = vperm.xlu0 %517, %v510
        %v519 = vpop.permute.xlu0 %518
        %v523 = vunpack.c.l.b16 %v403
        %v524 = vunpack.c.l.b16 %v404
        %v525 = vpack.c.b16 %v524, %v523
        %v630 = vunpack.c.l.b16 %v405
        %v631 = vunpack.c.h.b16 %v405
        %v632 = vunpack.c.l.b16 %v406
        %v633 = vunpack.c.h.b16 %v406
        %v634 = vunpack.c.l.b16 %v407
        %v635 = vunpack.c.h.b16 %v407
        %v636 = vunpack.c.l.b16 %v408
        %v637 = vunpack.c.h.b16 %v408
        %v638 = vunpack.c.l.b16 %v409
        %v639 = vunpack.c.h.b16 %v409
        %v640 = vunpack.c.l.b16 %v410
        %v641 = vunpack.c.h.b16 %v410
        %v642 = vunpack.c.l.b16 %v411
        %v643 = vunpack.c.h.b16 %v411
        %v644 = vunpack.c.l.b16 %v412
        %v645 = vunpack.c.h.b16 %v412
        %v646 = vunpack.c.l.b16 %v413
        %v647 = vunpack.c.h.b16 %v413
        %v648 = vunpack.c.l.b16 %v414
        %v649 = vunpack.c.h.b16 %v414
        %v650 = vunpack.c.l.b16 %v415
        %v651 = vunpack.c.h.b16 %v415
        %v652 = vunpack.c.l.b16 %v416
        %v653 = vunpack.c.h.b16 %v416
        %v654 = vunpack.c.l.b16 %v417
        %v655 = vunpack.c.l.b16 %v418
        %v656 = vunpack.c.h.b16 %v418
        %v657 = vunpack.c.l.b16 %v419
        %v658 = vunpack.c.h.b16 %v419
        %v659 = vunpack.c.l.b16 %v420
        %v660 = vunpack.c.h.b16 %v420
        %v661 = vunpack.c.l.b16 %v421
        %v662 = vunpack.c.h.b16 %v421
        %v663 = vunpack.c.l.b16 %v422
        %v664 = vunpack.c.h.b16 %v422
        %v665 = vunpack.c.l.b16 %v423
        %v666 = vunpack.c.h.b16 %v423
        %v667 = vunpack.c.l.b16 %v424
        %v668 = vunpack.c.h.b16 %v424
        %v669 = vunpack.c.l.b16 %v425
        %v670 = vunpack.c.h.b16 %v425
        %v671 = vunpack.c.l.b16 %v426
        %v672 = vunpack.c.h.b16 %v426
        %v673 = vunpack.c.l.b16 %v427
        %v674 = vunpack.c.h.b16 %v427
        %v675 = vunpack.c.l.b16 %v428
        %v676 = vunpack.c.h.b16 %v428
        %v677 = vunpack.c.l.b16 %v429
        %v678 = vunpack.c.h.b16 %v429
        %v679 = vunpack.c.l.b16 %v430
        %v680 = vunpack.c.l.b16 %v431
        %v681 = vunpack.c.h.b16 %v431
        %v682 = vunpack.c.l.b16 %v432
        %v683 = vunpack.c.h.b16 %v432
        %v684 = vunpack.c.l.b16 %v433
        %v685 = vunpack.c.h.b16 %v433
        %v686 = vunpack.c.l.b16 %v434
        %v687 = vunpack.c.h.b16 %v434
        %v688 = vunpack.c.l.b16 %v435
        %v689 = vunpack.c.h.b16 %v435
        %v690 = vunpack.c.l.b16 %v436
        %v691 = vunpack.c.h.b16 %v436
        %v692 = vunpack.c.l.b16 %v437
        %v693 = vunpack.c.h.b16 %v437
        %v694 = vunpack.c.l.b16 %v438
        %v695 = vunpack.c.h.b16 %v438
        %v696 = vunpack.c.l.b16 %v439
        %v697 = vunpack.c.h.b16 %v439
        %v698 = vunpack.c.l.b16 %v440
        %v699 = vunpack.c.h.b16 %v440
        %v700 = vunpack.c.l.b16 %v441
        %v701 = vunpack.c.h.b16 %v441
        %v702 = vunpack.c.l.b16 %v442
        %v703 = vunpack.c.h.b16 %v442
        %v704 = vunpack.c.l.b16 %v443
        %v705 = vunpack.c.l.b16 %v444
        %v706 = vunpack.c.h.b16 %v444
        %v707 = vunpack.c.l.b16 %v445
        %v708 = vunpack.c.h.b16 %v445
        %v709 = vunpack.c.l.b16 %v446
        %v710 = vunpack.c.h.b16 %v446
        %v711 = vunpack.c.l.b16 %v447
        %v712 = vunpack.c.h.b16 %v447
        %v713 = vunpack.c.l.b16 %v448
        %v714 = vunpack.c.h.b16 %v448
        %v715 = vunpack.c.l.b16 %v449
        %v716 = vunpack.c.h.b16 %v449
        %v717 = vunpack.c.l.b16 %v450
        %v718 = vunpack.c.h.b16 %v450
        %v719 = vunpack.c.l.b16 %v451
        %v720 = vunpack.c.h.b16 %v451
        %v721 = vunpack.c.l.b16 %v452
        %v722 = vunpack.c.h.b16 %v452
        %v723 = vunpack.c.l.b16 %v453
        %v724 = vunpack.c.h.b16 %v453
        %v725 = vunpack.c.l.b16 %v454
        %v726 = vunpack.c.h.b16 %v454
        %v727 = vunpack.c.l.b16 %v455
        %v728 = vunpack.c.h.b16 %v455
        %v729 = vunpack.c.l.b16 %v456
        %v730 = vunpack.c.l.b16 %v457
        %v731 = vunpack.c.h.b16 %v457
        %v732 = vunpack.c.l.b16 %v458
        %v733 = vunpack.c.h.b16 %v458
        %v734 = vunpack.c.l.b16 %v459
        %v735 = vunpack.c.h.b16 %v459
        %v736 = vunpack.c.l.b16 %v460
        %v737 = vunpack.c.h.b16 %v460
        %v738 = vunpack.c.l.b16 %v461
        %v739 = vunpack.c.h.b16 %v461
        %v740 = vunpack.c.l.b16 %v462
        %v741 = vunpack.c.h.b16 %v462
        %v742 = vunpack.c.l.b16 %v463
        %v743 = vunpack.c.h.b16 %v463
        %v744 = vunpack.c.l.b16 %v464
        %v745 = vunpack.c.h.b16 %v464
        %v746 = vunpack.c.l.b16 %v465
        %v747 = vunpack.c.h.b16 %v465
        %v748 = vunpack.c.l.b16 %v466
        %v749 = vunpack.c.h.b16 %v466
        %v750 = vunpack.c.l.b16 %v467
        %v751 = vunpack.c.h.b16 %v467
        %v752 = vunpack.c.l.b16 %v468
        %v753 = vunpack.c.h.b16 %v468
        %v754 = vunpack.c.l.b16 %v469
        %v755 = vunpack.c.l.b16 %v470
        %v756 = vunpack.c.h.b16 %v470
        %v757 = vunpack.c.l.b16 %v471
        %v758 = vunpack.c.h.b16 %v471
        %v759 = vunpack.c.l.b16 %v472
        %v760 = vunpack.c.h.b16 %v472
        %v761 = vunpack.c.l.b16 %v473
        %v762 = vunpack.c.h.b16 %v473
        %v763 = vunpack.c.l.b16 %v474
        %v764 = vunpack.c.h.b16 %v474
        %v765 = vunpack.c.l.b16 %v475
        %v766 = vunpack.c.h.b16 %v475
        %v767 = vunpack.c.l.b16 %v476
        %v768 = vunpack.c.h.b16 %v476
        %v769 = vunpack.c.l.b16 %v477
        %v770 = vunpack.c.h.b16 %v477
        %v771 = vunpack.c.l.b16 %v478
        %v772 = vunpack.c.h.b16 %v478
        %v773 = vunpack.c.l.b16 %v479
        %v774 = vunpack.c.h.b16 %v479
        %v775 = vunpack.c.l.b16 %v480
        %v776 = vunpack.c.h.b16 %v480
        %v777 = vunpack.c.l.b16 %v481
        %v778 = vunpack.c.h.b16 %v481
        %v779 = vunpack.c.l.b16 %v482
        %v780 = vunpack.c.l.b16 %v483
        %v781 = vunpack.c.h.b16 %v483
        %v782 = vunpack.c.l.b16 %v484
        %v783 = vunpack.c.h.b16 %v484
        %v784 = vunpack.c.l.b16 %v485
        %v785 = vunpack.c.h.b16 %v485
        %v786 = vunpack.c.l.b16 %v486
        %v787 = vunpack.c.h.b16 %v486
        %v788 = vunpack.c.l.b16 %v487
        %v789 = vunpack.c.h.b16 %v487
        %v790 = vunpack.c.l.b16 %v488
        %v791 = vunpack.c.h.b16 %v488
        %v792 = vunpack.c.l.b16 %v489
        %v793 = vunpack.c.h.b16 %v489
        %v794 = vunpack.c.l.b16 %v490
        %v795 = vunpack.c.h.b16 %v490
        %v796 = vunpack.c.l.b16 %v491
        %v797 = vunpack.c.h.b16 %v491
        %v798 = vunpack.c.l.b16 %v492
        %v799 = vunpack.c.h.b16 %v492
        %v800 = vunpack.c.l.b16 %v493
        %v801 = vunpack.c.h.b16 %v493
        %v802 = vunpack.c.l.b16 %v494
        %v803 = vunpack.c.h.b16 %v494
        %v804 = vunpack.c.l.b16 %v495
        %v805 = vunpack.c.l.b16 %v496
        %v806 = vunpack.c.h.b16 %v496
        %v807 = vunpack.c.l.b16 %v497
        %v808 = vunpack.c.h.b16 %v497
        %v809 = vunpack.c.l.b16 %v498
        %v810 = vunpack.c.h.b16 %v498
        %v811 = vunpack.c.l.b16 %v499
        %v812 = vunpack.c.h.b16 %v499
        %v813 = vunpack.c.l.b16 %v500
        %v814 = vunpack.c.h.b16 %v500
        %v815 = vunpack.c.l.b16 %v501
        %v816 = vunpack.c.h.b16 %v501
        %v817 = vunpack.c.l.b16 %v502
        %v818 = vunpack.c.h.b16 %v502
        %v819 = vunpack.c.l.b16 %v503
        %v820 = vunpack.c.h.b16 %v503
        %v821 = vunpack.c.l.b16 %v504
        %v822 = vunpack.c.h.b16 %v504
        %v823 = vunpack.c.l.b16 %v505
        %v824 = vunpack.c.h.b16 %v505
        %v825 = vunpack.c.l.b16 %v506
        %v826 = vunpack.c.h.b16 %v506
        %v827 = vunpack.c.l.b16 %v507
        %v828 = vunpack.c.h.b16 %v507
        %v829 = vunpack.c.l.b16 %v508
        %v830 = vpack.c.b16 %v655, %v630
        %v831 = vpack.c.b16 %v656, %v631
        %v832 = vpack.c.b16 %v657, %v632
        %v833 = vpack.c.b16 %v658, %v633
        %v834 = vpack.c.b16 %v659, %v634
        %v835 = vpack.c.b16 %v660, %v635
        %v836 = vpack.c.b16 %v661, %v636
        %v837 = vpack.c.b16 %v662, %v637
        %v838 = vpack.c.b16 %v663, %v638
        %v839 = vpack.c.b16 %v664, %v639
        %v840 = vpack.c.b16 %v665, %v640
        %v841 = vpack.c.b16 %v666, %v641
        %v842 = vpack.c.b16 %v667, %v642
        %v843 = vpack.c.b16 %v668, %v643
        %v844 = vpack.c.b16 %v669, %v644
        %v845 = vpack.c.b16 %v670, %v645
        %v846 = vpack.c.b16 %v671, %v646
        %v847 = vpack.c.b16 %v672, %v647
        %v848 = vpack.c.b16 %v673, %v648
        %v849 = vpack.c.b16 %v674, %v649
        %v850 = vpack.c.b16 %v675, %v650
        %v851 = vpack.c.b16 %v676, %v651
        %v852 = vpack.c.b16 %v677, %v652
        %v853 = vpack.c.b16 %v678, %v653
        %v854 = vpack.c.b16 %v679, %v654
        %v855 = vpack.c.b16 %v705, %v680
        %v856 = vpack.c.b16 %v706, %v681
        %v857 = vpack.c.b16 %v707, %v682
        %v858 = vpack.c.b16 %v708, %v683
        %v859 = vpack.c.b16 %v709, %v684
        %v860 = vpack.c.b16 %v710, %v685
        %v861 = vpack.c.b16 %v711, %v686
        %v862 = vpack.c.b16 %v712, %v687
        %v863 = vpack.c.b16 %v713, %v688
        %v864 = vpack.c.b16 %v714, %v689
        %v865 = vpack.c.b16 %v715, %v690
        %v866 = vpack.c.b16 %v716, %v691
        %v867 = vpack.c.b16 %v717, %v692
        %v868 = vpack.c.b16 %v718, %v693
        %v869 = vpack.c.b16 %v719, %v694
        %v870 = vpack.c.b16 %v720, %v695
        %v871 = vpack.c.b16 %v721, %v696
        %v872 = vpack.c.b16 %v722, %v697
        %v873 = vpack.c.b16 %v723, %v698
        %v874 = vpack.c.b16 %v724, %v699
        %v875 = vpack.c.b16 %v725, %v700
        %v876 = vpack.c.b16 %v726, %v701
        %v877 = vpack.c.b16 %v727, %v702
        %v878 = vpack.c.b16 %v728, %v703
        %v879 = vpack.c.b16 %v729, %v704
        %v880 = vpack.c.b16 %v755, %v730
        %v881 = vpack.c.b16 %v756, %v731
        %v882 = vpack.c.b16 %v757, %v732
        %v883 = vpack.c.b16 %v758, %v733
        %v884 = vpack.c.b16 %v759, %v734
        %v885 = vpack.c.b16 %v760, %v735
        %v886 = vpack.c.b16 %v761, %v736
        %v887 = vpack.c.b16 %v762, %v737
        %v888 = vpack.c.b16 %v763, %v738
        %v889 = vpack.c.b16 %v764, %v739
        %v890 = vpack.c.b16 %v765, %v740
        %v891 = vpack.c.b16 %v766, %v741
        %v892 = vpack.c.b16 %v767, %v742
        %v893 = vpack.c.b16 %v768, %v743
        %v894 = vpack.c.b16 %v769, %v744
        %v895 = vpack.c.b16 %v770, %v745
        %v896 = vpack.c.b16 %v771, %v746
        %v897 = vpack.c.b16 %v772, %v747
        %v898 = vpack.c.b16 %v773, %v748
        %v899 = vpack.c.b16 %v774, %v749
        %v900 = vpack.c.b16 %v775, %v750
        %v901 = vpack.c.b16 %v776, %v751
        %v902 = vpack.c.b16 %v777, %v752
        %v903 = vpack.c.b16 %v778, %v753
        %v904 = vpack.c.b16 %v779, %v754
        %v905 = vpack.c.b16 %v805, %v780
        %v906 = vpack.c.b16 %v806, %v781
        %v907 = vpack.c.b16 %v807, %v782
        %v908 = vpack.c.b16 %v808, %v783
        %v909 = vpack.c.b16 %v809, %v784
        %v910 = vpack.c.b16 %v810, %v785
        %v911 = vpack.c.b16 %v811, %v786
        %v912 = vpack.c.b16 %v812, %v787
        %v913 = vpack.c.b16 %v813, %v788
        %v914 = vpack.c.b16 %v814, %v789
        %v915 = vpack.c.b16 %v815, %v790
        %v916 = vpack.c.b16 %v816, %v791
        %v917 = vpack.c.b16 %v817, %v792
        %v918 = vpack.c.b16 %v818, %v793
        %v919 = vpack.c.b16 %v819, %v794
        %v920 = vpack.c.b16 %v820, %v795
        %v921 = vpack.c.b16 %v821, %v796
        %v922 = vpack.c.b16 %v822, %v797
        %v923 = vpack.c.b16 %v823, %v798
        %v924 = vpack.c.b16 %v824, %v799
        %v925 = vpack.c.b16 %v825, %v800
        %v926 = vpack.c.b16 %v826, %v801
        %v927 = vpack.c.b16 %v827, %v802
        %v928 = vpack.c.b16 %v828, %v803
        %v929 = vpack.c.b16 %v829, %v804
        %vm1030 = vcmask 523264
        %v1032 = vsel %vm1030, %v525, 0
        %1034 = vmatprep.subr.bf16.mxu0 %v831
        %1035 = vmatpush1.bf16.msra.mxu0 %v830
        %1036 = vmatprep.subr.bf16.mxu0 %v856
        %1037 = vmatpush1.bf16.msra.mxu0 %v855
        %1038 = vmatprep.subr.bf16.mxu0 %v881
        %1039 = vmatpush1.bf16.msra.mxu0 %v880
        %1040 = vmatprep.subr.bf16.mxu0 %v906
        %1041 = vmatpush1.bf16.msra.mxu0 %v905
        %1042 = vmatprep.subr.bf16.mxu0 0
        %1043 = vmatpush1.bf16.msra.mxu0 0
        %1044 = vmatprep.subr.bf16.mxu0 0
        %1045 = vmatpush1.bf16.msra.mxu0 0
        %1046 = vmatprep.subr.bf16.mxu0 0
        %1047 = vmatpush1.bf16.msra.mxu0 0
        %1048 = vmatprep.subr.bf16.mxu0 0
        %1049 = vmatpush1.bf16.msra.mxu0 0
        %1050 = vmatprep.subr.bf16.mxu0 0
        %1051 = vmatpush1.bf16.msra.mxu0 0
        %1052 = vmatprep.subr.bf16.mxu0 0
        %1053 = vmatpush1.bf16.msra.mxu0 0
        %1054 = vmatprep.subr.bf16.mxu0 0
        %1055 = vmatpush1.bf16.msra.mxu0 0
        %1056 = vmatprep.subr.bf16.mxu0 0
        %1057 = vmatpush1.bf16.msra.mxu0 0
        %1058 = vmatprep.subr.bf16.mxu0 0
        %1059 = vmatpush1.bf16.msra.mxu0 0
        %1060 = vmatprep.subr.bf16.mxu0 0
        %1061 = vmatpush1.bf16.msra.mxu0 0
        %1062 = vmatprep.subr.bf16.mxu0 0
        %1063 = vmatpush1.bf16.msra.mxu0 0
        %1064 = vmatprep.subr.bf16.mxu0 0
        %1065 = vmatpush1.bf16.msra.mxu0 0
        %1066 = vmatprep.mubr.bf16.mxu0 0
        %1067 = vmatmul.mubr.bf16.gmra.mrb[0].mxu0 %v1032
        %v1068 = vpop.f32.mrb[0].mxu0
        %v1069 = vadd.f32 %v514, %v1068
        %v1070 = vpop.f32.mrb[0].mxu0
        %v1071 = vadd.f32 %v514, %v1070
        %v1072 = vpop.f32.mrb[0].mxu0
        %v1073 = vadd.f32 %v519, %v1072
        %v1074 = vpop.f32.mrb[0].mxu0
        %v1075 = vadd.f32 %v519, %v1074
        %1076 = vdwg.mxu0
        %1077 = vmatprep.subr.bf16.mxu0 %v833
        %1078 = vmatpush1.bf16.msra.mxu0 %v832
        %1079 = vmatprep.subr.bf16.mxu0 %v858
        %1080 = vmatpush1.bf16.msra.mxu0 %v857
        %1081 = vmatprep.subr.bf16.mxu0 %v883
        %1082 = vmatpush1.bf16.msra.mxu0 %v882
        %1083 = vmatprep.subr.bf16.mxu0 %v908
        %1084 = vmatpush1.bf16.msra.mxu0 %v907
        %1085 = vmatprep.subr.bf16.mxu0 0
        %1086 = vmatpush1.bf16.msra.mxu0 0
        %1087 = vmatprep.subr.bf16.mxu0 0
        %1088 = vmatpush1.bf16.msra.mxu0 0
        %1089 = vmatprep.subr.bf16.mxu0 0
        %1090 = vmatpush1.bf16.msra.mxu0 0
        %1091 = vmatprep.subr.bf16.mxu0 0
        %1092 = vmatpush1.bf16.msra.mxu0 0
        %1093 = vmatprep.subr.bf16.mxu0 0
        %1094 = vmatpush1.bf16.msra.mxu0 0
        %1095 = vmatprep.subr.bf16.mxu0 0
        %1096 = vmatpush1.bf16.msra.mxu0 0
        %1097 = vmatprep.subr.bf16.mxu0 0
        %1098 = vmatpush1.bf16.msra.mxu0 0
        %1099 = vmatprep.subr.bf16.mxu0 0
        %1100 = vmatpush1.bf16.msra.mxu0 0
        %1101 = vmatprep.subr.bf16.mxu0 0
        %1102 = vmatpush1.bf16.msra.mxu0 0
        %1103 = vmatprep.subr.bf16.mxu0 0
        %1104 = vmatpush1.bf16.msra.mxu0 0
        %1105 = vmatprep.subr.bf16.mxu0 0
        %1106 = vmatpush1.bf16.msra.mxu0 0
        %1107 = vmatprep.subr.bf16.mxu0 0
        %1108 = vmatpush1.bf16.msra.mxu0 0
        %1109 = vmatprep.mubr.bf16.mxu0 0
        %1110 = vmatmul.mubr.bf16.gmra.mrb[0].mxu0 %v1032
        %v1111 = vpop.f32.mrb[0].mxu0
        %v1112 = vadd.f32 %v514, %v1111
        %v1113 = vpop.f32.mrb[0].mxu0
        %v1114 = vadd.f32 %v514, %v1113
        %v1115 = vpop.f32.mrb[0].mxu0
        %v1116 = vadd.f32 %v519, %v1115
        %v1117 = vpop.f32.mrb[0].mxu0
        %v1118 = vadd.f32 %v519, %v1117
        %1119 = vdwg.mxu0
        %1120 = vmatprep.subr.bf16.mxu0 %v835
        %1121 = vmatpush1.bf16.msra.mxu0 %v834
        %1122 = vmatprep.subr.bf16.mxu0 %v860
        %1123 = vmatpush1.bf16.msra.mxu0 %v859
        %1124 = vmatprep.subr.bf16.mxu0 %v885
        %1125 = vmatpush1.bf16.msra.mxu0 %v884
        %1126 = vmatprep.subr.bf16.mxu0 %v910
        %1127 = vmatpush1.bf16.msra.mxu0 %v909
        %1128 = vmatprep.subr.bf16.mxu0 0
        %1129 = vmatpush1.bf16.msra.mxu0 0
        %1130 = vmatprep.subr.bf16.mxu0 0
        %1131 = vmatpush1.bf16.msra.mxu0 0
        %1132 = vmatprep.subr.bf16.mxu0 0
        %1133 = vmatpush1.bf16.msra.mxu0 0
        %1134 = vmatprep.subr.bf16.mxu0 0
        %1135 = vmatpush1.bf16.msra.mxu0 0
        %1136 = vmatprep.subr.bf16.mxu0 0
        %1137 = vmatpush1.bf16.msra.mxu0 0
        %1138 = vmatprep.subr.bf16.mxu0 0
        %1139 = vmatpush1.bf16.msra.mxu0 0
        %1140 = vmatprep.subr.bf16.mxu0 0
        %1141 = vmatpush1.bf16.msra.mxu0 0
        %1142 = vmatprep.subr.bf16.mxu0 0
        %1143 = vmatpush1.bf16.msra.mxu0 0
        %1144 = vmatprep.subr.bf16.mxu0 0
        %1145 = vmatpush1.bf16.msra.mxu0 0
        %1146 = vmatprep.subr.bf16.mxu0 0
        %1147 = vmatpush1.bf16.msra.mxu0 0
        %1148 = vmatprep.subr.bf16.mxu0 0
        %1149 = vmatpush1.bf16.msra.mxu0 0
        %1150 = vmatprep.subr.bf16.mxu0 0
        %1151 = vmatpush1.bf16.msra.mxu0 0
        %1152 = vmatprep.mubr.bf16.mxu0 0
        %1153 = vmatmul.mubr.bf16.gmra.mrb[0].mxu0 %v1032
        %v1154 = vpop.f32.mrb[0].mxu0
        %v1155 = vadd.f32 %v514, %v1154
        %v1156 = vpop.f32.mrb[0].mxu0
        %v1157 = vadd.f32 %v514, %v1156
        %v1158 = vpop.f32.mrb[0].mxu0
        %v1159 = vadd.f32 %v519, %v1158
        %v1160 = vpop.f32.mrb[0].mxu0
        %v1161 = vadd.f32 %v519, %v1160
        %1162 = vdwg.mxu0
        %1163 = vmatprep.subr.bf16.mxu0 %v837
        %1164 = vmatpush1.bf16.msra.mxu0 %v836
        %1165 = vmatprep.subr.bf16.mxu0 %v862
        %1166 = vmatpush1.bf16.msra.mxu0 %v861
        %1167 = vmatprep.subr.bf16.mxu0 %v887
        %1168 = vmatpush1.bf16.msra.mxu0 %v886
        %1169 = vmatprep.subr.bf16.mxu0 %v912
        %1170 = vmatpush1.bf16.msra.mxu0 %v911
        %1171 = vmatprep.subr.bf16.mxu0 0
        %1172 = vmatpush1.bf16.msra.mxu0 0
        %1173 = vmatprep.subr.bf16.mxu0 0
        %1174 = vmatpush1.bf16.msra.mxu0 0
        %1175 = vmatprep.subr.bf16.mxu0 0
        %1176 = vmatpush1.bf16.msra.mxu0 0
        %1177 = vmatprep.subr.bf16.mxu0 0
        %1178 = vmatpush1.bf16.msra.mxu0 0
        %1179 = vmatprep.subr.bf16.mxu0 0
        %1180 = vmatpush1.bf16.msra.mxu0 0
        %1181 = vmatprep.subr.bf16.mxu0 0
        %1182 = vmatpush1.bf16.msra.mxu0 0
        %1183 = vmatprep.subr.bf16.mxu0 0
        %1184 = vmatpush1.bf16.msra.mxu0 0
        %1185 = vmatprep.subr.bf16.mxu0 0
        %1186 = vmatpush1.bf16.msra.mxu0 0
        %1187 = vmatprep.subr.bf16.mxu0 0
        %1188 = vmatpush1.bf16.msra.mxu0 0
        %1189 = vmatprep.subr.bf16.mxu0 0
        %1190 = vmatpush1.bf16.msra.mxu0 0
        %1191 = vmatprep.subr.bf16.mxu0 0
        %1192 = vmatpush1.bf16.msra.mxu0 0
        %1193 = vmatprep.subr.bf16.mxu0 0
        %1194 = vmatpush1.bf16.msra.mxu0 0
        %1195 = vmatprep.mubr.bf16.mxu0 0
        %1196 = vmatmul.mubr.bf16.gmra.mrb[0].mxu0 %v1032
        %v1197 = vpop.f32.mrb[0].mxu0
        %v1198 = vadd.f32 %v514, %v1197
        %v1199 = vpop.f32.mrb[0].mxu0
        %v1200 = vadd.f32 %v514, %v1199
        %v1201 = vpop.f32.mrb[0].mxu0
        %v1202 = vadd.f32 %v519, %v1201
        %v1203 = vpop.f32.mrb[0].mxu0
        %v1204 = vadd.f32 %v519, %v1203
        %1205 = vdwg.mxu0
        %1206 = vmatprep.subr.bf16.mxu0 %v839
        %1207 = vmatpush1.bf16.msra.mxu0 %v838
        %1208 = vmatprep.subr.bf16.mxu0 %v864
        %1209 = vmatpush1.bf16.msra.mxu0 %v863
        %1210 = vmatprep.subr.bf16.mxu0 %v889
        %1211 = vmatpush1.bf16.msra.mxu0 %v888
        %1212 = vmatprep.subr.bf16.mxu0 %v914
        %1213 = vmatpush1.bf16.msra.mxu0 %v913
        %1214 = vmatprep.subr.bf16.mxu0 0
        %1215 = vmatpush1.bf16.msra.mxu0 0
        %1216 = vmatprep.subr.bf16.mxu0 0
        %1217 = vmatpush1.bf16.msra.mxu0 0
        %1218 = vmatprep.subr.bf16.mxu0 0
        %1219 = vmatpush1.bf16.msra.mxu0 0
        %1220 = vmatprep.subr.bf16.mxu0 0
        %1221 = vmatpush1.bf16.msra.mxu0 0
        %1222 = vmatprep.subr.bf16.mxu0 0
        %1223 = vmatpush1.bf16.msra.mxu0 0
        %1224 = vmatprep.subr.bf16.mxu0 0
        %1225 = vmatpush1.bf16.msra.mxu0 0
        %1226 = vmatprep.subr.bf16.mxu0 0
        %1227 = vmatpush1.bf16.msra.mxu0 0
        %1228 = vmatprep.subr.bf16.mxu0 0
        %1229 = vmatpush1.bf16.msra.mxu0 0
        %1230 = vmatprep.subr.bf16.mxu0 0
        %1231 = vmatpush1.bf16.msra.mxu0 0
        %1232 = vmatprep.subr.bf16.mxu0 0
        %1233 = vmatpush1.bf16.msra.mxu0 0
        %1234 = vmatprep.subr.bf16.mxu0 0
        %1235 = vmatpush1.bf16.msra.mxu0 0
        %1236 = vmatprep.subr.bf16.mxu0 0
        %1237 = vmatpush1.bf16.msra.mxu0 0
        %1238 = vmatprep.mubr.bf16.mxu0 0
        %1239 = vmatmul.mubr.bf16.gmra.mrb[0].mxu0 %v1032
        %v1240 = vpop.f32.mrb[0].mxu0
        %v1241 = vadd.f32 %v514, %v1240
        %v1242 = vpop.f32.mrb[0].mxu0
        %v1243 = vadd.f32 %v514, %v1242
        %v1244 = vpop.f32.mrb[0].mxu0
        %v1245 = vadd.f32 %v519, %v1244
        %v1246 = vpop.f32.mrb[0].mxu0
        %v1247 = vadd.f32 %v519, %v1246
        %1248 = vdwg.mxu0
        %1249 = vmatprep.subr.bf16.mxu0 %v841
        %1250 = vmatpush1.bf16.msra.mxu0 %v840
        %1251 = vmatprep.subr.bf16.mxu0 %v866
        %1252 = vmatpush1.bf16.msra.mxu0 %v865
        %1253 = vmatprep.subr.bf16.mxu0 %v891
        %1254 = vmatpush1.bf16.msra.mxu0 %v890
        %1255 = vmatprep.subr.bf16.mxu0 %v916
        %1256 = vmatpush1.bf16.msra.mxu0 %v915
        %1257 = vmatprep.subr.bf16.mxu0 0
        %1258 = vmatpush1.bf16.msra.mxu0 0
        %1259 = vmatprep.subr.bf16.mxu0 0
        %1260 = vmatpush1.bf16.msra.mxu0 0
        %1261 = vmatprep.subr.bf16.mxu0 0
        %1262 = vmatpush1.bf16.msra.mxu0 0
        %1263 = vmatprep.subr.bf16.mxu0 0
        %1264 = vmatpush1.bf16.msra.mxu0 0
        %1265 = vmatprep.subr.bf16.mxu0 0
        %1266 = vmatpush1.bf16.msra.mxu0 0
        %1267 = vmatprep.subr.bf16.mxu0 0
        %1268 = vmatpush1.bf16.msra.mxu0 0
        %1269 = vmatprep.subr.bf16.mxu0 0
        %1270 = vmatpush1.bf16.msra.mxu0 0
        %1271 = vmatprep.subr.bf16.mxu0 0
        %1272 = vmatpush1.bf16.msra.mxu0 0
        %1273 = vmatprep.subr.bf16.mxu0 0
        %1274 = vmatpush1.bf16.msra.mxu0 0
        %1275 = vmatprep.subr.bf16.mxu0 0
        %1276 = vmatpush1.bf16.msra.mxu0 0
        %1277 = vmatprep.subr.bf16.mxu0 0
        %1278 = vmatpush1.bf16.msra.mxu0 0
        %1279 = vmatprep.subr.bf16.mxu0 0
        %1280 = vmatpush1.bf16.msra.mxu0 0
        %1281 = vmatprep.mubr.bf16.mxu0 0
        %1282 = vmatmul.mubr.bf16.gmra.mrb[0].mxu0 %v1032
        %v1283 = vpop.f32.mrb[0].mxu0
        %v1284 = vadd.f32 %v514, %v1283
        %v1285 = vpop.f32.mrb[0].mxu0
        %v1286 = vadd.f32 %v514, %v1285
        %v1287 = vpop.f32.mrb[0].mxu0
        %v1288 = vadd.f32 %v519, %v1287
        %v1289 = vpop.f32.mrb[0].mxu0
        %v1290 = vadd.f32 %v519, %v1289
        %1291 = vdwg.mxu0
        %1292 = vmatprep.subr.bf16.mxu0 %v843
        %1293 = vmatpush1.bf16.msra.mxu0 %v842
        %1294 = vmatprep.subr.bf16.mxu0 %v868
        %1295 = vmatpush1.bf16.msra.mxu0 %v867
        %1296 = vmatprep.subr.bf16.mxu0 %v893
        %1297 = vmatpush1.bf16.msra.mxu0 %v892
        %1298 = vmatprep.subr.bf16.mxu0 %v918
        %1299 = vmatpush1.bf16.msra.mxu0 %v917
        %1300 = vmatprep.subr.bf16.mxu0 0
        %1301 = vmatpush1.bf16.msra.mxu0 0
        %1302 = vmatprep.subr.bf16.mxu0 0
        %1303 = vmatpush1.bf16.msra.mxu0 0
        %1304 = vmatprep.subr.bf16.mxu0 0
        %1305 = vmatpush1.bf16.msra.mxu0 0
        %1306 = vmatprep.subr.bf16.mxu0 0
        %1307 = vmatpush1.bf16.msra.mxu0 0
        %1308 = vmatprep.subr.bf16.mxu0 0
        %1309 = vmatpush1.bf16.msra.mxu0 0
        %1310 = vmatprep.subr.bf16.mxu0 0
        %1311 = vmatpush1.bf16.msra.mxu0 0
        %1312 = vmatprep.subr.bf16.mxu0 0
        %1313 = vmatpush1.bf16.msra.mxu0 0
        %1314 = vmatprep.subr.bf16.mxu0 0
        %1315 = vmatpush1.bf16.msra.mxu0 0
        %1316 = vmatprep.subr.bf16.mxu0 0
        %1317 = vmatpush1.bf16.msra.mxu0 0
        %1318 = vmatprep.subr.bf16.mxu0 0
        %1319 = vmatpush1.bf16.msra.mxu0 0
        %1320 = vmatprep.subr.bf16.mxu0 0
        %1321 = vmatpush1.bf16.msra.mxu0 0
        %1322 = vmatprep.subr.bf16.mxu0 0
        %1323 = vmatpush1.bf16.msra.mxu0 0
        %1324 = vmatprep.mubr.bf16.mxu0 0
        %1325 = vmatmul.mubr.bf16.gmra.mrb[0].mxu0 %v1032
        %v1326 = vpop.f32.mrb[0].mxu0
        %v1327 = vadd.f32 %v514, %v1326
        %v1328 = vpop.f32.mrb[0].mxu0
        %v1329 = vadd.f32 %v514, %v1328
        %v1330 = vpop.f32.mrb[0].mxu0
        %v1331 = vadd.f32 %v519, %v1330
        %v1332 = vpop.f32.mrb[0].mxu0
        %v1333 = vadd.f32 %v519, %v1332
        %1334 = vdwg.mxu0
        %1335 = vmatprep.subr.bf16.mxu0 %v845
        %1336 = vmatpush1.bf16.msra.mxu0 %v844
        %1337 = vmatprep.subr.bf16.mxu0 %v870
        %1338 = vmatpush1.bf16.msra.mxu0 %v869
        %1339 = vmatprep.subr.bf16.mxu0 %v895
        %1340 = vmatpush1.bf16.msra.mxu0 %v894
        %1341 = vmatprep.subr.bf16.mxu0 %v920
        %1342 = vmatpush1.bf16.msra.mxu0 %v919
        %1343 = vmatprep.subr.bf16.mxu0 0
        %1344 = vmatpush1.bf16.msra.mxu0 0
        %1345 = vmatprep.subr.bf16.mxu0 0
        %1346 = vmatpush1.bf16.msra.mxu0 0
        %1347 = vmatprep.subr.bf16.mxu0 0
        %1348 = vmatpush1.bf16.msra.mxu0 0
        %1349 = vmatprep.subr.bf16.mxu0 0
        %1350 = vmatpush1.bf16.msra.mxu0 0
        %1351 = vmatprep.subr.bf16.mxu0 0
        %1352 = vmatpush1.bf16.msra.mxu0 0
        %1353 = vmatprep.subr.bf16.mxu0 0
        %1354 = vmatpush1.bf16.msra.mxu0 0
        %1355 = vmatprep.subr.bf16.mxu0 0
        %1356 = vmatpush1.bf16.msra.mxu0 0
        %1357 = vmatprep.subr.bf16.mxu0 0
        %1358 = vmatpush1.bf16.msra.mxu0 0
        %1359 = vmatprep.subr.bf16.mxu0 0
        %1360 = vmatpush1.bf16.msra.mxu0 0
        %1361 = vmatprep.subr.bf16.mxu0 0
        %1362 = vmatpush1.bf16.msra.mxu0 0
        %1363 = vmatprep.subr.bf16.mxu0 0
        %1364 = vmatpush1.bf16.msra.mxu0 0
        %1365 = vmatprep.subr.bf16.mxu0 0
        %1366 = vmatpush1.bf16.msra.mxu0 0
        %1367 = vmatprep.mubr.bf16.mxu0 0
        %1368 = vmatmul.mubr.bf16.gmra.mrb[0].mxu0 %v1032
        %v1369 = vpop.f32.mrb[0].mxu0
        %v1370 = vadd.f32 %v514, %v1369
        %v1371 = vpop.f32.mrb[0].mxu0
        %v1372 = vadd.f32 %v514, %v1371
        %v1373 = vpop.f32.mrb[0].mxu0
        %v1374 = vadd.f32 %v519, %v1373
        %v1375 = vpop.f32.mrb[0].mxu0
        %v1376 = vadd.f32 %v519, %v1375
        %1377 = vdwg.mxu0
        %1378 = vmatprep.subr.bf16.mxu0 %v847
        %1379 = vmatpush1.bf16.msra.mxu0 %v846
        %1380 = vmatprep.subr.bf16.mxu0 %v872
        %1381 = vmatpush1.bf16.msra.mxu0 %v871
        %1382 = vmatprep.subr.bf16.mxu0 %v897
        %1383 = vmatpush1.bf16.msra.mxu0 %v896
        %1384 = vmatprep.subr.bf16.mxu0 %v922
        %1385 = vmatpush1.bf16.msra.mxu0 %v921
        %1386 = vmatprep.subr.bf16.mxu0 0
        %1387 = vmatpush1.bf16.msra.mxu0 0
        %1388 = vmatprep.subr.bf16.mxu0 0
        %1389 = vmatpush1.bf16.msra.mxu0 0
        %1390 = vmatprep.subr.bf16.mxu0 0
        %1391 = vmatpush1.bf16.msra.mxu0 0
        %1392 = vmatprep.subr.bf16.mxu0 0
        %1393 = vmatpush1.bf16.msra.mxu0 0
        %1394 = vmatprep.subr.bf16.mxu0 0
        %1395 = vmatpush1.bf16.msra.mxu0 0
        %1396 = vmatprep.subr.bf16.mxu0 0
        %1397 = vmatpush1.bf16.msra.mxu0 0
        %1398 = vmatprep.subr.bf16.mxu0 0
        %1399 = vmatpush1.bf16.msra.mxu0 0
        %1400 = vmatprep.subr.bf16.mxu0 0
        %1401 = vmatpush1.bf16.msra.mxu0 0
        %1402 = vmatprep.subr.bf16.mxu0 0
        %1403 = vmatpush1.bf16.msra.mxu0 0
        %1404 = vmatprep.subr.bf16.mxu0 0
        %1405 = vmatpush1.bf16.msra.mxu0 0
        %1406 = vmatprep.subr.bf16.mxu0 0
        %1407 = vmatpush1.bf16.msra.mxu0 0
        %1408 = vmatprep.subr.bf16.mxu0 0
        %1409 = vmatpush1.bf16.msra.mxu0 0
        %1410 = vmatprep.mubr.bf16.mxu0 0
        %1411 = vmatmul.mubr.bf16.gmra.mrb[0].mxu0 %v1032
        %v1412 = vpop.f32.mrb[0].mxu0
        %v1413 = vadd.f32 %v514, %v1412
        %v1414 = vpop.f32.mrb[0].mxu0
        %v1415 = vadd.f32 %v514, %v1414
        %v1416 = vpop.f32.mrb[0].mxu0
        %v1417 = vadd.f32 %v519, %v1416
        %v1418 = vpop.f32.mrb[0].mxu0
        %v1419 = vadd.f32 %v519, %v1418
        %1420 = vdwg.mxu0
        %1421 = vmatprep.subr.bf16.mxu0 %v849
        %1422 = vmatpush1.bf16.msra.mxu0 %v848
        %1423 = vmatprep.subr.bf16.mxu0 %v874
        %1424 = vmatpush1.bf16.msra.mxu0 %v873
        %1425 = vmatprep.subr.bf16.mxu0 %v899
        %1426 = vmatpush1.bf16.msra.mxu0 %v898
        %1427 = vmatprep.subr.bf16.mxu0 %v924
        %1428 = vmatpush1.bf16.msra.mxu0 %v923
        %1429 = vmatprep.subr.bf16.mxu0 0
        %1430 = vmatpush1.bf16.msra.mxu0 0
        %1431 = vmatprep.subr.bf16.mxu0 0
        %1432 = vmatpush1.bf16.msra.mxu0 0
        %1433 = vmatprep.subr.bf16.mxu0 0
        %1434 = vmatpush1.bf16.msra.mxu0 0
        %1435 = vmatprep.subr.bf16.mxu0 0
        %1436 = vmatpush1.bf16.msra.mxu0 0
        %1437 = vmatprep.subr.bf16.mxu0 0
        %1438 = vmatpush1.bf16.msra.mxu0 0
        %1439 = vmatprep.subr.bf16.mxu0 0
        %1440 = vmatpush1.bf16.msra.mxu0 0
        %1441 = vmatprep.subr.bf16.mxu0 0
        %1442 = vmatpush1.bf16.msra.mxu0 0
        %1443 = vmatprep.subr.bf16.mxu0 0
        %1444 = vmatpush1.bf16.msra.mxu0 0
        %1445 = vmatprep.subr.bf16.mxu0 0
        %1446 = vmatpush1.bf16.msra.mxu0 0
        %1447 = vmatprep.subr.bf16.mxu0 0
        %1448 = vmatpush1.bf16.msra.mxu0 0
        %1449 = vmatprep.subr.bf16.mxu0 0
        %1450 = vmatpush1.bf16.msra.mxu0 0
        %1451 = vmatprep.subr.bf16.mxu0 0
        %1452 = vmatpush1.bf16.msra.mxu0 0
        %1453 = vmatprep.mubr.bf16.mxu0 0
        %1454 = vmatmul.mubr.bf16.gmra.mrb[0].mxu0 %v1032
        %v1455 = vpop.f32.mrb[0].mxu0
        %v1456 = vadd.f32 %v514, %v1455
        %v1457 = vpop.f32.mrb[0].mxu0
        %v1458 = vadd.f32 %v514, %v1457
        %v1459 = vpop.f32.mrb[0].mxu0
        %v1460 = vadd.f32 %v519, %v1459
        %v1461 = vpop.f32.mrb[0].mxu0
        %v1462 = vadd.f32 %v519, %v1461
        %1463 = vdwg.mxu0
        %1464 = vmatprep.subr.bf16.mxu0 %v851
        %1465 = vmatpush1.bf16.msra.mxu0 %v850
        %1466 = vmatprep.subr.bf16.mxu0 %v876
        %1467 = vmatpush1.bf16.msra.mxu0 %v875
        %1468 = vmatprep.subr.bf16.mxu0 %v901
        %1469 = vmatpush1.bf16.msra.mxu0 %v900
        %1470 = vmatprep.subr.bf16.mxu0 %v926
        %1471 = vmatpush1.bf16.msra.mxu0 %v925
        %1472 = vmatprep.subr.bf16.mxu0 0
        %1473 = vmatpush1.bf16.msra.mxu0 0
        %1474 = vmatprep.subr.bf16.mxu0 0
        %1475 = vmatpush1.bf16.msra.mxu0 0
        %1476 = vmatprep.subr.bf16.mxu0 0
        %1477 = vmatpush1.bf16.msra.mxu0 0
        %1478 = vmatprep.subr.bf16.mxu0 0
        %1479 = vmatpush1.bf16.msra.mxu0 0
        %1480 = vmatprep.subr.bf16.mxu0 0
        %1481 = vmatpush1.bf16.msra.mxu0 0
        %1482 = vmatprep.subr.bf16.mxu0 0
        %1483 = vmatpush1.bf16.msra.mxu0 0
        %1484 = vmatprep.subr.bf16.mxu0 0
        %1485 = vmatpush1.bf16.msra.mxu0 0
        %1486 = vmatprep.subr.bf16.mxu0 0
        %1487 = vmatpush1.bf16.msra.mxu0 0
        %1488 = vmatprep.subr.bf16.mxu0 0
        %1489 = vmatpush1.bf16.msra.mxu0 0
        %1490 = vmatprep.subr.bf16.mxu0 0
        %1491 = vmatpush1.bf16.msra.mxu0 0
        %1492 = vmatprep.subr.bf16.mxu0 0
        %1493 = vmatpush1.bf16.msra.mxu0 0
        %1494 = vmatprep.subr.bf16.mxu0 0
        %1495 = vmatpush1.bf16.msra.mxu0 0
        %1496 = vmatprep.mubr.bf16.mxu0 0
        %1497 = vmatmul.mubr.bf16.gmra.mrb[0].mxu0 %v1032
        %v1498 = vpop.f32.mrb[0].mxu0
        %v1499 = vadd.f32 %v514, %v1498
        %v1500 = vpop.f32.mrb[0].mxu0
        %v1501 = vadd.f32 %v514, %v1500
        %v1502 = vpop.f32.mrb[0].mxu0
        %v1503 = vadd.f32 %v519, %v1502
        %v1504 = vpop.f32.mrb[0].mxu0
        %v1505 = vadd.f32 %v519, %v1504
        %1506 = vdwg.mxu0
        %1507 = vmatprep.subr.bf16.mxu0 %v853
        %1508 = vmatpush1.bf16.msra.mxu0 %v852
        %1509 = vmatprep.subr.bf16.mxu0 %v878
        %1510 = vmatpush1.bf16.msra.mxu0 %v877
        %1511 = vmatprep.subr.bf16.mxu0 %v903
        %1512 = vmatpush1.bf16.msra.mxu0 %v902
        %1513 = vmatprep.subr.bf16.mxu0 %v928
        %1514 = vmatpush1.bf16.msra.mxu0 %v927
        %1515 = vmatprep.subr.bf16.mxu0 0
        %1516 = vmatpush1.bf16.msra.mxu0 0
        %1517 = vmatprep.subr.bf16.mxu0 0
        %1518 = vmatpush1.bf16.msra.mxu0 0
        %1519 = vmatprep.subr.bf16.mxu0 0
        %1520 = vmatpush1.bf16.msra.mxu0 0
        %1521 = vmatprep.subr.bf16.mxu0 0
        %1522 = vmatpush1.bf16.msra.mxu0 0
        %1523 = vmatprep.subr.bf16.mxu0 0
        %1524 = vmatpush1.bf16.msra.mxu0 0
        %1525 = vmatprep.subr.bf16.mxu0 0
        %1526 = vmatpush1.bf16.msra.mxu0 0
        %1527 = vmatprep.subr.bf16.mxu0 0
        %1528 = vmatpush1.bf16.msra.mxu0 0
        %1529 = vmatprep.subr.bf16.mxu0 0
        %1530 = vmatpush1.bf16.msra.mxu0 0
        %1531 = vmatprep.subr.bf16.mxu0 0
        %1532 = vmatpush1.bf16.msra.mxu0 0
        %1533 = vmatprep.subr.bf16.mxu0 0
        %1534 = vmatpush1.bf16.msra.mxu0 0
        %1535 = vmatprep.subr.bf16.mxu0 0
        %1536 = vmatpush1.bf16.msra.mxu0 0
        %1537 = vmatprep.subr.bf16.mxu0 0
        %1538 = vmatpush1.bf16.msra.mxu0 0
        %1539 = vmatprep.mubr.bf16.mxu0 0
        %1540 = vmatmul.mubr.bf16.gmra.mrb[0].mxu0 %v1032
        %v1541 = vpop.f32.mrb[0].mxu0
        %v1542 = vadd.f32 %v514, %v1541
        %v1543 = vpop.f32.mrb[0].mxu0
        %v1544 = vadd.f32 %v514, %v1543
        %v1545 = vpop.f32.mrb[0].mxu0
        %v1546 = vadd.f32 %v519, %v1545
        %v1547 = vpop.f32.mrb[0].mxu0
        %v1548 = vadd.f32 %v519, %v1547
        %1549 = vdwg.mxu0
        %1550 = vmatprep.subr.bf16.mxu0 0
        %1551 = vmatpush1.bf16.msra.mxu0 %v854
        %1552 = vmatprep.subr.bf16.mxu0 0
        %1553 = vmatpush1.bf16.msra.mxu0 %v879
        %1554 = vmatprep.subr.bf16.mxu0 0
        %1555 = vmatpush1.bf16.msra.mxu0 %v904
        %1556 = vmatprep.subr.bf16.mxu0 0
        %1557 = vmatpush1.bf16.msra.mxu0 %v929
        %1558 = vmatprep.subr.bf16.mxu0 0
        %1559 = vmatpush1.bf16.msra.mxu0 0
        %1560 = vmatprep.subr.bf16.mxu0 0
        %1561 = vmatpush1.bf16.msra.mxu0 0
        %1562 = vmatprep.subr.bf16.mxu0 0
        %1563 = vmatpush1.bf16.msra.mxu0 0
        %1564 = vmatprep.subr.bf16.mxu0 0
        %1565 = vmatpush1.bf16.msra.mxu0 0
        %1566 = vmatprep.subr.bf16.mxu0 0
        %1567 = vmatpush1.bf16.msra.mxu0 0
        %1568 = vmatprep.subr.bf16.mxu0 0
        %1569 = vmatpush1.bf16.msra.mxu0 0
        %1570 = vmatprep.subr.bf16.mxu0 0
        %1571 = vmatpush1.bf16.msra.mxu0 0
        %1572 = vmatprep.subr.bf16.mxu0 0
        %1573 = vmatpush1.bf16.msra.mxu0 0
        %1574 = vmatprep.subr.bf16.mxu0 0
        %1575 = vmatpush1.bf16.msra.mxu0 0
        %1576 = vmatprep.subr.bf16.mxu0 0
        %1577 = vmatpush1.bf16.msra.mxu0 0
        %1578 = vmatprep.subr.bf16.mxu0 0
        %1579 = vmatpush1.bf16.msra.mxu0 0
        %1580 = vmatprep.subr.bf16.mxu0 0
        %1581 = vmatpush1.bf16.msra.mxu0 0
        %1582 = vmatprep.mubr.bf16.mxu0 0
        %1583 = vmatmul.mubr.bf16.gmra.mrb[0].mxu0 %v1032
        %v1584 = vpop.f32.mrb[0].mxu0
        %v1585 = vadd.f32 %v514, %v1584
        %v1586 = vpop.f32.mrb[0].mxu0
        %v1587 = vpop.f32.mrb[0].mxu0
        %v1588 = vadd.f32 %v519, %v1587
        %v1589 = vpop.f32.mrb[0].mxu0
        %1590 = vdwg.mxu0
        %v1591 = vmax.f32 %v1069, 0.0
        %v1592 = vmax.f32 %v1071, 0.0
        %v1593 = vmax.f32 %v1112, 0.0
        %v1594 = vmax.f32 %v1114, 0.0
        %v1595 = vmax.f32 %v1155, 0.0
        %v1596 = vmax.f32 %v1157, 0.0
        %v1597 = vmax.f32 %v1198, 0.0
        %v1598 = vmax.f32 %v1200, 0.0
        %v1599 = vmax.f32 %v1241, 0.0
        %v1600 = vmax.f32 %v1243, 0.0
        %v1601 = vmax.f32 %v1284, 0.0
        %v1602 = vmax.f32 %v1286, 0.0
        %v1603 = vmax.f32 %v1327, 0.0
        %v1604 = vmax.f32 %v1329, 0.0
        %v1605 = vmax.f32 %v1370, 0.0
        %v1606 = vmax.f32 %v1372, 0.0
        %v1607 = vmax.f32 %v1413, 0.0
        %v1608 = vmax.f32 %v1415, 0.0
        %v1609 = vmax.f32 %v1456, 0.0
        %v1610 = vmax.f32 %v1458, 0.0
        %v1611 = vmax.f32 %v1499, 0.0
        %v1612 = vmax.f32 %v1501, 0.0
        %v1613 = vmax.f32 %v1542, 0.0
        %v1614 = vmax.f32 %v1544, 0.0
        %v1615 = vmax.f32 %v1585, 0.0
        %v1616 = vmax.f32 %v1073, 0.0
        %v1617 = vmax.f32 %v1075, 0.0
        %v1618 = vmax.f32 %v1116, 0.0
        %v1619 = vmax.f32 %v1118, 0.0
        %v1620 = vmax.f32 %v1159, 0.0
        %v1621 = vmax.f32 %v1161, 0.0
        %v1622 = vmax.f32 %v1202, 0.0
        %v1623 = vmax.f32 %v1204, 0.0
        %v1624 = vmax.f32 %v1245, 0.0
        %v1625 = vmax.f32 %v1247, 0.0
        %v1626 = vmax.f32 %v1288, 0.0
        %v1627 = vmax.f32 %v1290, 0.0
        %v1628 = vmax.f32 %v1331, 0.0
        %v1629 = vmax.f32 %v1333, 0.0
        %v1630 = vmax.f32 %v1374, 0.0
        %v1631 = vmax.f32 %v1376, 0.0
        %v1632 = vmax.f32 %v1417, 0.0
        %v1633 = vmax.f32 %v1419, 0.0
        %v1634 = vmax.f32 %v1460, 0.0
        %v1635 = vmax.f32 %v1462, 0.0
        %v1636 = vmax.f32 %v1503, 0.0
        %v1637 = vmax.f32 %v1505, 0.0
        %v1638 = vmax.f32 %v1546, 0.0
        %v1639 = vmax.f32 %v1548, 0.0
        %v1640 = vmax.f32 %v1588, 0.0
        %v1641 = vpack.c.bf16 %v1616, %v1591
        %v1642 = vpack.c.bf16 %v1617, %v1592
        %v1643 = vpack.c.bf16 %v1618, %v1593
        %v1644 = vpack.c.bf16 %v1619, %v1594
        %v1645 = vpack.c.bf16 %v1620, %v1595
        %v1646 = vpack.c.bf16 %v1621, %v1596
        %v1647 = vpack.c.bf16 %v1622, %v1597
        %v1648 = vpack.c.bf16 %v1623, %v1598
        %v1649 = vpack.c.bf16 %v1624, %v1599
        %v1650 = vpack.c.bf16 %v1625, %v1600
        %v1651 = vpack.c.bf16 %v1626, %v1601
        %v1652 = vpack.c.bf16 %v1627, %v1602
        %v1653 = vpack.c.bf16 %v1628, %v1603
        %v1654 = vpack.c.bf16 %v1629, %v1604
        %v1655 = vpack.c.bf16 %v1630, %v1605
        %v1656 = vpack.c.bf16 %v1631, %v1606
        %v1657 = vpack.c.bf16 %v1632, %v1607
        %v1658 = vpack.c.bf16 %v1633, %v1608
        %v1659 = vpack.c.bf16 %v1634, %v1609
        %v1660 = vpack.c.bf16 %v1635, %v1610
        %v1661 = vpack.c.bf16 %v1636, %v1611
        %v1662 = vpack.c.bf16 %v1637, %v1612
        %v1663 = vpack.c.bf16 %v1638, %v1613
        %v1664 = vpack.c.bf16 %v1639, %v1614
        %v1665 = vpack.c.bf16 %v1640, %v1615
        %v1691 = vunpack.c.l.b16 %v1641
        %v1692 = vunpack.c.l.b16 %v1642
        %v1693 = vunpack.c.l.b16 %v1643
        %v1694 = vunpack.c.l.b16 %v1644
        %v1695 = vunpack.c.l.b16 %v1645
        %v1696 = vunpack.c.l.b16 %v1646
        %v1697 = vunpack.c.l.b16 %v1647
        %v1698 = vunpack.c.l.b16 %v1648
        %v1699 = vunpack.c.l.b16 %v1649
        %v1700 = vunpack.c.l.b16 %v1650
        %v1701 = vunpack.c.l.b16 %v1651
        %v1702 = vunpack.c.l.b16 %v1652
        %v1703 = vunpack.c.l.b16 %v1653
        %v1704 = vunpack.c.l.b16 %v1654
        %v1705 = vunpack.c.l.b16 %v1655
        %v1706 = vunpack.c.l.b16 %v1656
        %v1707 = vunpack.c.l.b16 %v1657
        %v1708 = vunpack.c.l.b16 %v1658
        %v1709 = vunpack.c.l.b16 %v1659
        %v1710 = vunpack.c.l.b16 %v1660
        %v1711 = vunpack.c.l.b16 %v1661
        %v1712 = vunpack.c.l.b16 %v1662
        %v1713 = vunpack.c.l.b16 %v1663
        %v1714 = vunpack.c.l.b16 %v1664
        %v1715 = vunpack.c.l.b16 %v1665
        %v1716 = vunpack.c.h.b16 %v1641
        %v1717 = vunpack.c.h.b16 %v1642
        %v1718 = vunpack.c.h.b16 %v1643
        %v1719 = vunpack.c.h.b16 %v1644
        %v1720 = vunpack.c.h.b16 %v1645
        %v1721 = vunpack.c.h.b16 %v1646
        %v1722 = vunpack.c.h.b16 %v1647
        %v1723 = vunpack.c.h.b16 %v1648
        %v1724 = vunpack.c.h.b16 %v1649
        %v1725 = vunpack.c.h.b16 %v1650
        %v1726 = vunpack.c.h.b16 %v1651
        %v1727 = vunpack.c.h.b16 %v1652
        %v1728 = vunpack.c.h.b16 %v1653
        %v1729 = vunpack.c.h.b16 %v1654
        %v1730 = vunpack.c.h.b16 %v1655
        %v1731 = vunpack.c.h.b16 %v1656
        %v1732 = vunpack.c.h.b16 %v1657
        %v1733 = vunpack.c.h.b16 %v1658
        %v1734 = vunpack.c.h.b16 %v1659
        %v1735 = vunpack.c.h.b16 %v1660
        %v1736 = vunpack.c.h.b16 %v1661
        %v1737 = vunpack.c.h.b16 %v1662
        %v1738 = vunpack.c.h.b16 %v1663
        %v1739 = vunpack.c.h.b16 %v1664
        %v1740 = vunpack.c.h.b16 %v1665
        %v1741 = vpack.c.b16 %v1692, %v1691
        %v1742 = vpack.c.b16 %v1694, %v1693
        %v1743 = vpack.c.b16 %v1696, %v1695
        %v1744 = vpack.c.b16 %v1698, %v1697
        %v1745 = vpack.c.b16 %v1700, %v1699
        %v1746 = vpack.c.b16 %v1702, %v1701
        %v1747 = vpack.c.b16 %v1704, %v1703
        %v1748 = vpack.c.b16 %v1706, %v1705
        %v1749 = vpack.c.b16 %v1708, %v1707
        %v1750 = vpack.c.b16 %v1710, %v1709
        %v1751 = vpack.c.b16 %v1712, %v1711
        %v1752 = vpack.c.b16 %v1714, %v1713
        %v1753 = vpack.c.b16 %v1715, %v1715
        %v1754 = vpack.c.b16 %v1717, %v1716
        %v1755 = vpack.c.b16 %v1719, %v1718
        %v1756 = vpack.c.b16 %v1721, %v1720
        %v1757 = vpack.c.b16 %v1723, %v1722
        %v1758 = vpack.c.b16 %v1725, %v1724
        %v1759 = vpack.c.b16 %v1727, %v1726
        %v1760 = vpack.c.b16 %v1729, %v1728
        %v1761 = vpack.c.b16 %v1731, %v1730
        %v1762 = vpack.c.b16 %v1733, %v1732
        %v1763 = vpack.c.b16 %v1735, %v1734
        %v1764 = vpack.c.b16 %v1737, %v1736
        %v1765 = vpack.c.b16 %v1739, %v1738
        %v1766 = vpack.c.b16 %v1740, %v1740
        %1793 = vst [vmem:[%s399] sm:$0xff] %v1741
        %1794 = vst [vmem:[%s399 + $0x8] sm:$0xff] %v1742
        %1795 = vst [vmem:[%s399 + $0x10] sm:$0xff] %v1743
        %1796 = vst [vmem:[%s399 + $0x18] sm:$0xff] %v1744
        %1797 = vst [vmem:[%s399 + $0x20] sm:$0xff] %v1745
        %1798 = vst [vmem:[%s399 + $0x28] sm:$0xff] %v1746
        %1799 = vst [vmem:[%s399 + $0x30] sm:$0xff] %v1747
        %1800 = vst [vmem:[%s399 + $0x38] sm:$0xff] %v1748
        %1801 = vst [vmem:[%s399 + $0x40] sm:$0xff] %v1749
        %1802 = vst [vmem:[%s399 + $0x48] sm:$0xff] %v1750
        %1803 = vst [vmem:[%s399 + $0x50] sm:$0xff] %v1751
        %1804 = vst [vmem:[%s399 + $0x58] sm:$0xff] %v1752
        %1805 = vst [vmem:[%s399 + $0x60] sm:$0xf] %v1753
        %1806 = vst [vmem:[%s399 + $0x64] sm:$0xff] %v1754
        %1807 = vst [vmem:[%s399 + $0x6c] sm:$0xff] %v1755
        %1808 = vst [vmem:[%s399 + $0x74] sm:$0xff] %v1756
        %1809 = vst [vmem:[%s399 + $0x7c] sm:$0xff] %v1757
        %1810 = vst [vmem:[%s399 + $0x84] sm:$0xff] %v1758
        %1811 = vst [vmem:[%s399 + $0x8c] sm:$0xff] %v1759
        %1812 = vst [vmem:[%s399 + $0x94] sm:$0xff] %v1760
        %1813 = vst [vmem:[%s399 + $0x9c] sm:$0xff] %v1761
        %1814 = vst [vmem:[%s399 + $0xa4] sm:$0xff] %v1762
        %1815 = vst [vmem:[%s399 + $0xac] sm:$0xff] %v1763
        %1816 = vst [vmem:[%s399 + $0xb4] sm:$0xff] %v1764
        %1817 = vst [vmem:[%s399 + $0xbc] sm:$0xff] %v1765
        %1818 = vst [vmem:[%s399 + $0xc4] sm:$0xf] %v1766
        %s1819 = sand.u32 %s90, 1
        %s1820 = sand.u32 %s90, 1
        %s1821 = smul.addr %s1820, 200
        %s1822 = scalar_lea.vmem [#allocation3], %s1821
        // Predicated region
        $region59: #{q_network_forward.3} parent=53 // pred_check
          %p1823 = pneg %p100
        $region60: #{q_network_forward.3} parent=53 // pred_check_branch
          %1825 = sbr.rel (%p1823) target = $region62
        $region61: #{q_network_forward.3} parent=53 // pred_region
          %s1826 = smul.u32 25, %s14
          %s1827 = smul.addr %s1826, 4
          %s1828 = scalar_lea.vmem %s3, %s1827
          // Predicated region
          $region63: #{q_network_forward.3} parent=61 // pred_check
            _
          $region64: #{q_network_forward.3} parent=61 // pred_check_branch
            %1830 = sbr.rel (0) target = $region66
          $region65: #{q_network_forward.3} parent=61 // pred_region
            // Predicated region
            $region67: #{q_network_forward.3} parent=65 // pred_check
              _
            $region68: #{q_network_forward.3} parent=65 // pred_check_branch
              %1832 = sbr.rel (0) target = $region70
            $region69: #{q_network_forward.3} parent=65 // pred_region
              %s1833 = scalar_lea.vmem %s1822, 96 [#allocation3]
              %s1834 = scalar_lea.vmem %s1828, 96
              loop: start=0, step=1, limit=1
              $region71: #{q_network_forward.3} parent=69 // loop_pre_header
                _
              $region72: #{q_network_forward.3} parent=69 // loop_header
                %s1836 = sphi 0, %s1840
                %p1837 = scmp.ge.s32.totalorder %s1836, 1
                %s1841 = sphi %s1822, %s1822
                %s1842 = sphi %s1828, %s1828
              $region73: #{q_network_forward.3} parent=69 // loop_header_branch
                %1839 = sbr.rel (%p1837) target = $region77
              $region74: #{q_network_forward.3} parent=69 // loop_body
                %v1843 = vld [vmem:[%s1841] sm:$0xff]
                %1844 = vst [vmem:[%s1842] sm:$0xff] %v1843
                %v1845 = vld [vmem:[%s1841 + $0x8] sm:$0xff]
                %1846 = vst [vmem:[%s1842 + $0x8] sm:$0xff] %v1845
                %v1847 = vld [vmem:[%s1841 + $0x10] sm:$0xff]
                %1848 = vst [vmem:[%s1842 + $0x10] sm:$0xff] %v1847
                %v1849 = vld [vmem:[%s1841 + $0x18] sm:$0xff]
                %1850 = vst [vmem:[%s1842 + $0x18] sm:$0xff] %v1849
                %v1851 = vld [vmem:[%s1841 + $0x20] sm:$0xff]
                %1852 = vst [vmem:[%s1842 + $0x20] sm:$0xff] %v1851
                %v1853 = vld [vmem:[%s1841 + $0x28] sm:$0xff]
                %1854 = vst [vmem:[%s1842 + $0x28] sm:$0xff] %v1853
                %v1855 = vld [vmem:[%s1841 + $0x30] sm:$0xff]
                %1856 = vst [vmem:[%s1842 + $0x30] sm:$0xff] %v1855
                %v1857 = vld [vmem:[%s1841 + $0x38] sm:$0xff]
                %1858 = vst [vmem:[%s1842 + $0x38] sm:$0xff] %v1857
                %v1859 = vld [vmem:[%s1841 + $0x40] sm:$0xff]
                %1860 = vst [vmem:[%s1842 + $0x40] sm:$0xff] %v1859
                %v1861 = vld [vmem:[%s1841 + $0x48] sm:$0xff]
                %1862 = vst [vmem:[%s1842 + $0x48] sm:$0xff] %v1861
                %v1863 = vld [vmem:[%s1841 + $0x50] sm:$0xff]
                %1864 = vst [vmem:[%s1842 + $0x50] sm:$0xff] %v1863
                %v1865 = vld [vmem:[%s1841 + $0x58] sm:$0xff]
                %1866 = vst [vmem:[%s1842 + $0x58] sm:$0xff] %v1865
                %v1867 = vld [vmem:[%s1841 + $0x64] sm:$0xff]
                %1868 = vst [vmem:[%s1842 + $0xc8] sm:$0xff] %v1867
                %v1869 = vld [vmem:[%s1841 + $0x6c] sm:$0xff]
                %1870 = vst [vmem:[%s1842 + $0xd0] sm:$0xff] %v1869
                %v1871 = vld [vmem:[%s1841 + $0x74] sm:$0xff]
                %1872 = vst [vmem:[%s1842 + $0xd8] sm:$0xff] %v1871
                %v1873 = vld [vmem:[%s1841 + $0x7c] sm:$0xff]
                %1874 = vst [vmem:[%s1842 + $0xe0] sm:$0xff] %v1873
                %v1875 = vld [vmem:[%s1841 + $0x84] sm:$0xff]
                %1876 = vst [vmem:[%s1842 + $0xe8] sm:$0xff] %v1875
                %v1877 = vld [vmem:[%s1841 + $0x8c] sm:$0xff]
                %1878 = vst [vmem:[%s1842 + $0xf0] sm:$0xff] %v1877
                %v1879 = vld [vmem:[%s1841 + $0x94] sm:$0xff]
                %1880 = vst [vmem:[%s1842 + $0xf8] sm:$0xff] %v1879
                %v1881 = vld [vmem:[%s1841 + $0x9c] sm:$0xff]
                %1882 = vst [vmem:[%s1842 + $0x100] sm:$0xff] %v1881
                %v1883 = vld [vmem:[%s1841 + $0xa4] sm:$0xff]
                %1884 = vst [vmem:[%s1842 + $0x108] sm:$0xff] %v1883
                %v1885 = vld [vmem:[%s1841 + $0xac] sm:$0xff]
                %1886 = vst [vmem:[%s1842 + $0x110] sm:$0xff] %v1885
                %v1887 = vld [vmem:[%s1841 + $0xb4] sm:$0xff]
                %1888 = vst [vmem:[%s1842 + $0x118] sm:$0xff] %v1887
                %v1889 = vld [vmem:[%s1841 + $0xbc] sm:$0xff]
                %1890 = vst [vmem:[%s1842 + $0x120] sm:$0xff] %v1889
              $region75: #{q_network_forward.3} parent=69 // loop_footer
                %s1840 = sadd.s32 1, %s1836
              $region76: #{q_network_forward.3} parent=69 // loop_footer_branch
                %1835 = sbr.rel target = $region72
              $region77: #{q_network_forward.3} parent=69 // loop_exit
                _
              loop: start=0, step=1, limit=1
              $region78: #{q_network_forward.3} parent=69 // loop_pre_header
                _
              $region79: #{q_network_forward.3} parent=69 // loop_header
                %s1893 = sphi 0, %s1897
                %p1894 = scmp.ge.s32.totalorder %s1893, 1
                %s1898 = sphi %s1833, %s1833
                %s1899 = sphi %s1834, %s1834
              $region80: #{q_network_forward.3} parent=69 // loop_header_branch
                %1896 = sbr.rel (%p1894) target = $region84
              $region81: #{q_network_forward.3} parent=69 // loop_body
                %v1900 = vld [vmem:[%s1898] sm:$0xf]
                %1901 = vst [vmem:[%s1899] sm:$0xf] %v1900
                %v1902 = vld [vmem:[%s1898 + $0x64] sm:$0xf]
                %1903 = vst [vmem:[%s1899 + $0xc8] sm:$0xf] %v1902
              $region82: #{q_network_forward.3} parent=69 // loop_footer
                %s1897 = sadd.s32 1, %s1893
              $region83: #{q_network_forward.3} parent=69 // loop_footer_branch
                %1892 = sbr.rel target = $region79
              $region84: #{q_network_forward.3} parent=69 // loop_exit
                _
            $region70: #{q_network_forward.3} parent=65 // pred_fallthru
              _
          $region66: #{q_network_forward.3} parent=61 // pred_fallthru
            _
          %1904 = vnop
        $region62: #{q_network_forward.3} parent=53 // pred_fallthru
          _
      $region54: #{q_network_forward.3} parent=5 // pred_fallthru
        _
      %p1905 = scmp.le.s32.totalorder 2, %s9
      // Predicated region
      $region85: #{q_network_forward.3} parent=5 // pred_check
        %p1906 = pneg %p1905
      $region86: #{q_network_forward.3} parent=5 // pred_check_branch
        %1908 = sbr.rel (%p1906) target = $region88
      $region87: #{q_network_forward.3} parent=5 // pred_region
        %s1909 = ssub.s32 %s9, 2
        // Predicated region
        $region89: #{q_network_forward.3} parent=87 // pred_check
          %p1910 = pneg %p106
        $region90: #{q_network_forward.3} parent=87 // pred_check_branch
          %1912 = sbr.rel (%p1910) target = $region92
        $region91: #{q_network_forward.3} parent=87 // pred_region
          %s1913 = sand.u32 %s91, 1
          %s1914 = sand.u32 %s91, 1
          %s1915 = smul.addr %s1914, 200
          %s1916 = scalar_lea.vmem [#allocation3], %s1915
        $region92: #{q_network_forward.3} parent=87 // pred_fallthru
          _
      $region88: #{q_network_forward.3} parent=5 // pred_fallthru
        _
    $region6: #{q_network_forward.3} parent=1 // loop_footer
      %s13 = sadd.s32 1, %s9
    $region7: #{q_network_forward.3} parent=1 // loop_footer_branch
      %8 = sbr.rel target = $region3
    $region8: #{q_network_forward.3} parent=1 // loop_exit
      _

// kernel: q_network_forward.4
$region0: #{q_network_forward.4}
  #allocation0 [shape = 'u32[]', space=smem, size = 0x4, offset = 0x4, fixed_abs, tag = 'smem constant byte address 0x4 - core index']
  #allocation1 [shape = 'u32[144,128]{1,0:T(1,128)}', space=vmem, size = 0x12000, scoped, tag = 'internal scratch']
  %s0 = inlined_call_operand.vmem [shape: bf16[32,256], index: 0, kind: input, shape index: {}]
  %s1 = inlined_call_operand.vmem [shape: bf16[256,1536], index: 1, kind: input, shape index: {}]
  %s2 = inlined_call_operand.vmem [shape: f32[32,1], index: 2, kind: input, shape index: {}]
  %s3 = inlined_call_operand.vmem [shape: bf16[32,1536], index: 3, kind: output, shape index: {}]
  %s4 = sld [smem:[#allocation0]]
  $region87: #{q_network_forward.4} parent=0
    _
  %s6 = ssub.s32 1, %s4
  %s7 = scalar_select 0, %s6, %s4
  $region1: #{q_network_forward.4} parent=0
    #allocation2 [shape = 'u8[786432]{0}', space=vmem, size = 0xc0000, scoped, tag = 'input window, operand 1']
    #allocation3 [shape = 'u8[98304]{0}', space=vmem, size = 0x18000, scoped, tag = 'output window, operand 0']
    loop: start=0, step=1, limit=4
    $region2: #{q_network_forward.4} parent=1 // loop_pre_header
      _
    $region3: #{q_network_forward.4} parent=1 // loop_header
      %s9 = sphi 0, %s13
      %p10 = scmp.ge.s32.totalorder %s9, 4
      %s17 = sphi 0, %s17
      %s19 = sphi 0, %s17
      %s20 = sphi 0, %s19
      %s34 = sphi 0, %s20
      %s40 = sphi 0, %s42
      %s43 = sphi 0, %s40
      %s44 = sphi 0, %s43
      %s60 = sphi 0, %s44
      %s64 = sphi 0, %s64
      %s66 = sphi 0, %s64
      %s67 = sphi 0, %s66
      %s81 = sphi 0, %s67
      %s87 = sphi 0, %s89
      %s90 = sphi 0, %s87
      %s91 = sphi 0, %s90
      %s107 = sphi 0, %s91
    $region4: #{q_network_forward.4} parent=1 // loop_header_branch
      %12 = sbr.rel (%p10) target = $region8
    $region5: #{q_network_forward.4} parent=1 // loop_body
      %s14 = ssub.s32 %s9, 1
      %s15 = ssub.s32 %s9, 2
      %s16 = sadd.s32 %s9, 1
      %s18 = sadd.s32 %s17, 1
      %p21 = scmp.eq.s32.totalorder %s9, 1
      %p22 = scmp.ne.s32.totalorder %s17, %s19
      %p23 = scmp.eq.s32.totalorder %s9, 0
      %p24 = por %p22, %p23
      %p25 = scmp.ne.s32.totalorder %s17, %s19
      %p26 = scmp.eq.s32.totalorder %s14, 1
      %p27 = por %p25, %p26
      %p28 = scmp.ne.s32.totalorder %s19, %s20
      %p29 = scmp.eq.s32.totalorder %s14, 0
      %p30 = por %p28, %p29
      %p31 = scmp.ne.s32.totalorder %s19, %s20
      %p32 = scmp.eq.s32.totalorder %s15, 1
      %p33 = por %p31, %p32
      %p35 = scmp.ne.s32.totalorder %s20, %s34
      %p36 = scmp.eq.s32.totalorder %s15, 0
      %p37 = por %p35, %p36
      %s38 = ssub.s32 %s9, %s16
      %p39 = scmp.eq.s32.totalorder %s38, 0
      %s41 = sadd.s32 %s40, 1
      %s42 = scalar_select %p39, %s40, %s41
      %p45 = pneg %p39
      %p46 = scmp.eq.s32.totalorder %s9, 1
      %p47 = por %p45, %p46
      %p48 = scmp.ne.s32.totalorder %s40, %s43
      %p49 = scmp.eq.s32.totalorder %s9, 0
      %p50 = por %p48, %p49
      %p51 = scmp.ne.s32.totalorder %s40, %s43
      %p52 = scmp.eq.s32.totalorder %s14, 1
      %p53 = por %p51, %p52
      %p54 = scmp.ne.s32.totalorder %s43, %s44
      %p55 = scmp.eq.s32.totalorder %s14, 0
      %p56 = por %p54, %p55
      %p57 = scmp.ne.s32.totalorder %s43, %s44
      %p58 = scmp.eq.s32.totalorder %s15, 1
      %p59 = por %p57, %p58
      %p61 = scmp.ne.s32.totalorder %s44, %s60
      %p62 = scmp.eq.s32.totalorder %s15, 0
      %p63 = por %p61, %p62
      %s65 = sadd.s32 %s64, 1
      %p68 = scmp.eq.s32.totalorder %s9, 1
      %p69 = scmp.ne.s32.totalorder %s64, %s66
      %p70 = scmp.eq.s32.totalorder %s9, 0
      %p71 = por %p69, %p70
      %p72 = scmp.ne.s32.totalorder %s64, %s66
      %p73 = scmp.eq.s32.totalorder %s14, 1
      %p74 = por %p72, %p73
      %p75 = scmp.ne.s32.totalorder %s66, %s67
      %p76 = scmp.eq.s32.totalorder %s14, 0
      %p77 = por %p75, %p76
      %p78 = scmp.ne.s32.totalorder %s66, %s67
      %p79 = scmp.eq.s32.totalorder %s15, 1
      %p80 = por %p78, %p79
      %p82 = scmp.ne.s32.totalorder %s67, %s81
      %p83 = scmp.eq.s32.totalorder %s15, 0
      %p84 = por %p82, %p83
      %s85 = ssub.s32 %s9, %s16
      %p86 = scmp.eq.s32.totalorder %s85, 0
      %s88 = sadd.s32 %s87, 1
      %s89 = scalar_select %p86, %s87, %s88
      %p92 = pneg %p86
      %p93 = scmp.eq.s32.totalorder %s9, 1
      %p94 = por %p92, %p93
      %p95 = scmp.ne.s32.totalorder %s87, %s90
      %p96 = scmp.eq.s32.totalorder %s9, 0
      %p97 = por %p95, %p96
      %p98 = scmp.ne.s32.totalorder %s87, %s90
      %p99 = scmp.eq.s32.totalorder %s14, 1
      %p100 = por %p98, %p99
      %p101 = scmp.ne.s32.totalorder %s90, %s91
      %p102 = scmp.eq.s32.totalorder %s14, 0
      %p103 = por %p101, %p102
      %p104 = scmp.ne.s32.totalorder %s90, %s91
      %p105 = scmp.eq.s32.totalorder %s15, 1
      %p106 = por %p104, %p105
      %p108 = scmp.ne.s32.totalorder %s91, %s107
      %p109 = scmp.eq.s32.totalorder %s15, 0
      %p110 = por %p108, %p109
      %p111 = scmp.le.s32.totalorder 1, %s9
      %p112 = scmp.lt.s32.totalorder %s9, 3
      %p113 = pnand %p111, %p112
      %p114 = pneg %p113
      // Predicated region
      $region9: #{q_network_forward.4} parent=5 // pred_check
        _
      $region10: #{q_network_forward.4} parent=5 // pred_check_branch
        %116 = sbr.rel (%p113) target = $region12
      $region11: #{q_network_forward.4} parent=5 // pred_region
        %s117 = ssub.s32 %s9, 1
        // Predicated region
        $region13: #{q_network_forward.4} parent=11 // pred_check
          %p118 = pneg %p30
        $region14: #{q_network_forward.4} parent=11 // pred_check_branch
          %120 = sbr.rel (%p118) target = $region16
        $region15: #{q_network_forward.4} parent=11 // pred_region
          _
        $region16: #{q_network_forward.4} parent=11 // pred_fallthru
          _
        // Predicated region
        $region17: #{q_network_forward.4} parent=11 // pred_check
          %p121 = pneg %p77
        $region18: #{q_network_forward.4} parent=11 // pred_check_branch
          %123 = sbr.rel (%p121) target = $region20
        $region19: #{q_network_forward.4} parent=11 // pred_region
          _
        $region20: #{q_network_forward.4} parent=11 // pred_fallthru
          _
      $region12: #{q_network_forward.4} parent=5 // pred_fallthru
        _
      %p124 = scmp.lt.s32.totalorder %s9, 2
      // Predicated region
      $region21: #{q_network_forward.4} parent=5 // pred_check
        %p125 = pneg %p124
      $region22: #{q_network_forward.4} parent=5 // pred_check_branch
        %127 = sbr.rel (%p125) target = $region24
      $region23: #{q_network_forward.4} parent=5 // pred_region
        // Predicated region
        $region25: #{q_network_forward.4} parent=23 // pred_check
          %p128 = pneg %p50
        $region26: #{q_network_forward.4} parent=23 // pred_check_branch
          %130 = sbr.rel (%p128) target = $region28
        $region27: #{q_network_forward.4} parent=23 // pred_region
          %s131 = sand.u32 %s40, 1
          %s132 = sand.u32 %s40, 1
          %s133 = smul.addr %s132, 768
          %s134 = scalar_lea.vmem [#allocation2], %s133
          %s135 = smul.u32 6, %s9
          %s136 = smul.addr %s135, 4
          %s137 = scalar_lea.vmem %s1, %s136
          // Predicated region
          $region29: #{q_network_forward.4} parent=27 // pred_check
            _
          $region30: #{q_network_forward.4} parent=27 // pred_check_branch
            %139 = sbr.rel (0) target = $region32
          $region31: #{q_network_forward.4} parent=27 // pred_region
            // Predicated region
            $region33: #{q_network_forward.4} parent=31 // pred_check
              _
            $region34: #{q_network_forward.4} parent=31 // pred_check_branch
              %141 = sbr.rel (0) target = $region36
            $region35: #{q_network_forward.4} parent=31 // pred_region
              loop: start=0, step=1, limit=1
              $region37: #{q_network_forward.4} parent=35 // loop_pre_header
                _
              $region38: #{q_network_forward.4} parent=35 // loop_header
                %s143 = sphi 0, %s147
                %p144 = scmp.ge.s32.totalorder %s143, 1
                %s148 = sphi %s137, %s137
                %s149 = sphi %s134, %s134
              $region39: #{q_network_forward.4} parent=35 // loop_header_branch
                %146 = sbr.rel (%p144) target = $region43
              $region40: #{q_network_forward.4} parent=35 // loop_body
                %v150 = vld [vmem:[%s148] sm:$0xff]
                %151 = vst [vmem:[%s149] sm:$0xff] %v150
                %v152 = vld [vmem:[%s148 + $0x8] sm:$0xff]
                %153 = vst [vmem:[%s149 + $0x8] sm:$0xff] %v152
                %v154 = vld [vmem:[%s148 + $0x10] sm:$0xff]
                %155 = vst [vmem:[%s149 + $0x10] sm:$0xff] %v154
                %v156 = vld [vmem:[%s148 + $0x30] sm:$0xff]
                %157 = vst [vmem:[%s149 + $0x18] sm:$0xff] %v156
                %v158 = vld [vmem:[%s148 + $0x38] sm:$0xff]
                %159 = vst [vmem:[%s149 + $0x20] sm:$0xff] %v158
                %v160 = vld [vmem:[%s148 + $0x40] sm:$0xff]
                %161 = vst [vmem:[%s149 + $0x28] sm:$0xff] %v160
                %v162 = vld [vmem:[%s148 + $0x60] sm:$0xff]
                %163 = vst [vmem:[%s149 + $0x30] sm:$0xff] %v162
                %v164 = vld [vmem:[%s148 + $0x68] sm:$0xff]
                %165 = vst [vmem:[%s149 + $0x38] sm:$0xff] %v164
                %v166 = vld [vmem:[%s148 + $0x70] sm:$0xff]
                %167 = vst [vmem:[%s149 + $0x40] sm:$0xff] %v166
                %v168 = vld [vmem:[%s148 + $0x90] sm:$0xff]
                %169 = vst [vmem:[%s149 + $0x48] sm:$0xff] %v168
                %v170 = vld [vmem:[%s148 + $0x98] sm:$0xff]
                %171 = vst [vmem:[%s149 + $0x50] sm:$0xff] %v170
                %v172 = vld [vmem:[%s148 + $0xa0] sm:$0xff]
                %173 = vst [vmem:[%s149 + $0x58] sm:$0xff] %v172
                %v174 = vld [vmem:[%s148 + $0xc0] sm:$0xff]
                %175 = vst [vmem:[%s149 + $0x60] sm:$0xff] %v174
                %v176 = vld [vmem:[%s148 + $0xc8] sm:$0xff]
                %177 = vst [vmem:[%s149 + $0x68] sm:$0xff] %v176
                %v178 = vld [vmem:[%s148 + $0xd0] sm:$0xff]
                %179 = vst [vmem:[%s149 + $0x70] sm:$0xff] %v178
                %v180 = vld [vmem:[%s148 + $0xf0] sm:$0xff]
                %181 = vst [vmem:[%s149 + $0x78] sm:$0xff] %v180
                %v182 = vld [vmem:[%s148 + $0xf8] sm:$0xff]
                %183 = vst [vmem:[%s149 + $0x80] sm:$0xff] %v182
                %v184 = vld [vmem:[%s148 + $0x100] sm:$0xff]
                %185 = vst [vmem:[%s149 + $0x88] sm:$0xff] %v184
                %v186 = vld [vmem:[%s148 + $0x120] sm:$0xff]
                %187 = vst [vmem:[%s149 + $0x90] sm:$0xff] %v186
                %v188 = vld [vmem:[%s148 + $0x128] sm:$0xff]
                %189 = vst [vmem:[%s149 + $0x98] sm:$0xff] %v188
                %v190 = vld [vmem:[%s148 + $0x130] sm:$0xff]
                %191 = vst [vmem:[%s149 + $0xa0] sm:$0xff] %v190
                %v192 = vld [vmem:[%s148 + $0x150] sm:$0xff]
                %193 = vst [vmem:[%s149 + $0xa8] sm:$0xff] %v192
                %v194 = vld [vmem:[%s148 + $0x158] sm:$0xff]
                %195 = vst [vmem:[%s149 + $0xb0] sm:$0xff] %v194
                %v196 = vld [vmem:[%s148 + $0x160] sm:$0xff]
                %197 = vst [vmem:[%s149 + $0xb8] sm:$0xff] %v196
                %v198 = vld [vmem:[%s148 + $0x180] sm:$0xff]
                %199 = vst [vmem:[%s149 + $0xc0] sm:$0xff] %v198
                %v200 = vld [vmem:[%s148 + $0x188] sm:$0xff]
                %201 = vst [vmem:[%s149 + $0xc8] sm:$0xff] %v200
                %v202 = vld [vmem:[%s148 + $0x190] sm:$0xff]
                %203 = vst [vmem:[%s149 + $0xd0] sm:$0xff] %v202
                %v204 = vld [vmem:[%s148 + $0x1b0] sm:$0xff]
                %205 = vst [vmem:[%s149 + $0xd8] sm:$0xff] %v204
                %v206 = vld [vmem:[%s148 + $0x1b8] sm:$0xff]
                %207 = vst [vmem:[%s149 + $0xe0] sm:$0xff] %v206
                %v208 = vld [vmem:[%s148 + $0x1c0] sm:$0xff]
                %209 = vst [vmem:[%s149 + $0xe8] sm:$0xff] %v208
                %v210 = vld [vmem:[%s148 + $0x1e0] sm:$0xff]
                %211 = vst [vmem:[%s149 + $0xf0] sm:$0xff] %v210
                %v212 = vld [vmem:[%s148 + $0x1e8] sm:$0xff]
                %213 = vst [vmem:[%s149 + $0xf8] sm:$0xff] %v212
                %v214 = vld [vmem:[%s148 + $0x1f0] sm:$0xff]
                %215 = vst [vmem:[%s149 + $0x100] sm:$0xff] %v214
                %v216 = vld [vmem:[%s148 + $0x210] sm:$0xff]
                %217 = vst [vmem:[%s149 + $0x108] sm:$0xff] %v216
                %v218 = vld [vmem:[%s148 + $0x218] sm:$0xff]
                %219 = vst [vmem:[%s149 + $0x110] sm:$0xff] %v218
                %v220 = vld [vmem:[%s148 + $0x220] sm:$0xff]
                %221 = vst [vmem:[%s149 + $0x118] sm:$0xff] %v220
                %v222 = vld [vmem:[%s148 + $0x240] sm:$0xff]
                %223 = vst [vmem:[%s149 + $0x120] sm:$0xff] %v222
                %v224 = vld [vmem:[%s148 + $0x248] sm:$0xff]
                %225 = vst [vmem:[%s149 + $0x128] sm:$0xff] %v224
                %v226 = vld [vmem:[%s148 + $0x250] sm:$0xff]
                %227 = vst [vmem:[%s149 + $0x130] sm:$0xff] %v226
                %v228 = vld [vmem:[%s148 + $0x270] sm:$0xff]
                %229 = vst [vmem:[%s149 + $0x138] sm:$0xff] %v228
                %v230 = vld [vmem:[%s148 + $0x278] sm:$0xff]
                %231 = vst [vmem:[%s149 + $0x140] sm:$0xff] %v230
                %v232 = vld [vmem:[%s148 + $0x280] sm:$0xff]
                %233 = vst [vmem:[%s149 + $0x148] sm:$0xff] %v232
                %v234 = vld [vmem:[%s148 + $0x2a0] sm:$0xff]
                %235 = vst [vmem:[%s149 + $0x150] sm:$0xff] %v234
                %v236 = vld [vmem:[%s148 + $0x2a8] sm:$0xff]
                %237 = vst [vmem:[%s149 + $0x158] sm:$0xff] %v236
                %v238 = vld [vmem:[%s148 + $0x2b0] sm:$0xff]
                %239 = vst [vmem:[%s149 + $0x160] sm:$0xff] %v238
                %v240 = vld [vmem:[%s148 + $0x2d0] sm:$0xff]
                %241 = vst [vmem:[%s149 + $0x168] sm:$0xff] %v240
                %v242 = vld [vmem:[%s148 + $0x2d8] sm:$0xff]
                %243 = vst [vmem:[%s149 + $0x170] sm:$0xff] %v242
                %v244 = vld [vmem:[%s148 + $0x2e0] sm:$0xff]
                %245 = vst [vmem:[%s149 + $0x178] sm:$0xff] %v244
                %v246 = vld [vmem:[%s148 + $0x300] sm:$0xff]
                %247 = vst [vmem:[%s149 + $0x180] sm:$0xff] %v246
                %v248 = vld [vmem:[%s148 + $0x308] sm:$0xff]
                %249 = vst [vmem:[%s149 + $0x188] sm:$0xff] %v248
                %v250 = vld [vmem:[%s148 + $0x310] sm:$0xff]
                %251 = vst [vmem:[%s149 + $0x190] sm:$0xff] %v250
                %v252 = vld [vmem:[%s148 + $0x330] sm:$0xff]
                %253 = vst [vmem:[%s149 + $0x198] sm:$0xff] %v252
                %v254 = vld [vmem:[%s148 + $0x338] sm:$0xff]
                %255 = vst [vmem:[%s149 + $0x1a0] sm:$0xff] %v254
                %v256 = vld [vmem:[%s148 + $0x340] sm:$0xff]
                %257 = vst [vmem:[%s149 + $0x1a8] sm:$0xff] %v256
                %v258 = vld [vmem:[%s148 + $0x360] sm:$0xff]
                %259 = vst [vmem:[%s149 + $0x1b0] sm:$0xff] %v258
                %v260 = vld [vmem:[%s148 + $0x368] sm:$0xff]
                %261 = vst [vmem:[%s149 + $0x1b8] sm:$0xff] %v260
                %v262 = vld [vmem:[%s148 + $0x370] sm:$0xff]
                %263 = vst [vmem:[%s149 + $0x1c0] sm:$0xff] %v262
                %v264 = vld [vmem:[%s148 + $0x390] sm:$0xff]
                %265 = vst [vmem:[%s149 + $0x1c8] sm:$0xff] %v264
                %v266 = vld [vmem:[%s148 + $0x398] sm:$0xff]
                %267 = vst [vmem:[%s149 + $0x1d0] sm:$0xff] %v266
                %v268 = vld [vmem:[%s148 + $0x3a0] sm:$0xff]
                %269 = vst [vmem:[%s149 + $0x1d8] sm:$0xff] %v268
                %v270 = vld [vmem:[%s148 + $0x3c0] sm:$0xff]
                %271 = vst [vmem:[%s149 + $0x1e0] sm:$0xff] %v270
                %v272 = vld [vmem:[%s148 + $0x3c8] sm:$0xff]
                %273 = vst [vmem:[%s149 + $0x1e8] sm:$0xff] %v272
                %v274 = vld [vmem:[%s148 + $0x3d0] sm:$0xff]
                %275 = vst [vmem:[%s149 + $0x1f0] sm:$0xff] %v274
                %v276 = vld [vmem:[%s148 + $0x3f0] sm:$0xff]
                %277 = vst [vmem:[%s149 + $0x1f8] sm:$0xff] %v276
                %v278 = vld [vmem:[%s148 + $0x3f8] sm:$0xff]
                %279 = vst [vmem:[%s149 + $0x200] sm:$0xff] %v278
                %v280 = vld [vmem:[%s148 + $0x400] sm:$0xff]
                %281 = vst [vmem:[%s149 + $0x208] sm:$0xff] %v280
                %v282 = vld [vmem:[%s148 + $0x420] sm:$0xff]
                %283 = vst [vmem:[%s149 + $0x210] sm:$0xff] %v282
                %v284 = vld [vmem:[%s148 + $0x428] sm:$0xff]
                %285 = vst [vmem:[%s149 + $0x218] sm:$0xff] %v284
                %v286 = vld [vmem:[%s148 + $0x430] sm:$0xff]
                %287 = vst [vmem:[%s149 + $0x220] sm:$0xff] %v286
                %v288 = vld [vmem:[%s148 + $0x450] sm:$0xff]
                %289 = vst [vmem:[%s149 + $0x228] sm:$0xff] %v288
                %v290 = vld [vmem:[%s148 + $0x458] sm:$0xff]
                %291 = vst [vmem:[%s149 + $0x230] sm:$0xff] %v290
                %v292 = vld [vmem:[%s148 + $0x460] sm:$0xff]
                %293 = vst [vmem:[%s149 + $0x238] sm:$0xff] %v292
                %v294 = vld [vmem:[%s148 + $0x480] sm:$0xff]
                %295 = vst [vmem:[%s149 + $0x240] sm:$0xff] %v294
                %v296 = vld [vmem:[%s148 + $0x488] sm:$0xff]
                %297 = vst [vmem:[%s149 + $0x248] sm:$0xff] %v296
                %v298 = vld [vmem:[%s148 + $0x490] sm:$0xff]
                %299 = vst [vmem:[%s149 + $0x250] sm:$0xff] %v298
                %v300 = vld [vmem:[%s148 + $0x4b0] sm:$0xff]
                %301 = vst [vmem:[%s149 + $0x258] sm:$0xff] %v300
                %v302 = vld [vmem:[%s148 + $0x4b8] sm:$0xff]
                %303 = vst [vmem:[%s149 + $0x260] sm:$0xff] %v302
                %v304 = vld [vmem:[%s148 + $0x4c0] sm:$0xff]
                %305 = vst [vmem:[%s149 + $0x268] sm:$0xff] %v304
                %v306 = vld [vmem:[%s148 + $0x4e0] sm:$0xff]
                %307 = vst [vmem:[%s149 + $0x270] sm:$0xff] %v306
                %v308 = vld [vmem:[%s148 + $0x4e8] sm:$0xff]
                %309 = vst [vmem:[%s149 + $0x278] sm:$0xff] %v308
                %v310 = vld [vmem:[%s148 + $0x4f0] sm:$0xff]
                %311 = vst [vmem:[%s149 + $0x280] sm:$0xff] %v310
                %v312 = vld [vmem:[%s148 + $0x510] sm:$0xff]
                %313 = vst [vmem:[%s149 + $0x288] sm:$0xff] %v312
                %v314 = vld [vmem:[%s148 + $0x518] sm:$0xff]
                %315 = vst [vmem:[%s149 + $0x290] sm:$0xff] %v314
                %v316 = vld [vmem:[%s148 + $0x520] sm:$0xff]
                %317 = vst [vmem:[%s149 + $0x298] sm:$0xff] %v316
                %v318 = vld [vmem:[%s148 + $0x540] sm:$0xff]
                %319 = vst [vmem:[%s149 + $0x2a0] sm:$0xff] %v318
                %v320 = vld [vmem:[%s148 + $0x548] sm:$0xff]
                %321 = vst [vmem:[%s149 + $0x2a8] sm:$0xff] %v320
                %v322 = vld [vmem:[%s148 + $0x550] sm:$0xff]
                %323 = vst [vmem:[%s149 + $0x2b0] sm:$0xff] %v322
                %v324 = vld [vmem:[%s148 + $0x570] sm:$0xff]
                %325 = vst [vmem:[%s149 + $0x2b8] sm:$0xff] %v324
                %v326 = vld [vmem:[%s148 + $0x578] sm:$0xff]
                %327 = vst [vmem:[%s149 + $0x2c0] sm:$0xff] %v326
                %v328 = vld [vmem:[%s148 + $0x580] sm:$0xff]
                %329 = vst [vmem:[%s149 + $0x2c8] sm:$0xff] %v328
                %v330 = vld [vmem:[%s148 + $0x5a0] sm:$0xff]
                %331 = vst [vmem:[%s149 + $0x2d0] sm:$0xff] %v330
                %v332 = vld [vmem:[%s148 + $0x5a8] sm:$0xff]
                %333 = vst [vmem:[%s149 + $0x2d8] sm:$0xff] %v332
                %v334 = vld [vmem:[%s148 + $0x5b0] sm:$0xff]
                %335 = vst [vmem:[%s149 + $0x2e0] sm:$0xff] %v334
                %v336 = vld [vmem:[%s148 + $0x5d0] sm:$0xff]
                %337 = vst [vmem:[%s149 + $0x2e8] sm:$0xff] %v336
                %v338 = vld [vmem:[%s148 + $0x5d8] sm:$0xff]
                %339 = vst [vmem:[%s149 + $0x2f0] sm:$0xff] %v338
                %v340 = vld [vmem:[%s148 + $0x5e0] sm:$0xff]
                %341 = vst [vmem:[%s149 + $0x2f8] sm:$0xff] %v340
              $region41: #{q_network_forward.4} parent=35 // loop_footer
                %s147 = sadd.s32 1, %s143
              $region42: #{q_network_forward.4} parent=35 // loop_footer_branch
                %142 = sbr.rel target = $region38
              $region43: #{q_network_forward.4} parent=35 // loop_exit
                _
            $region36: #{q_network_forward.4} parent=31 // pred_fallthru
              _
            // Predicated region
            $region44: #{q_network_forward.4} parent=31 // pred_check
              _
            $region45: #{q_network_forward.4} parent=31 // pred_check_branch
              %343 = sbr.rel target = $region47
            $region46: #{q_network_forward.4} parent=31 // pred_region
              _
            $region47: #{q_network_forward.4} parent=31 // pred_fallthru
              _
          $region32: #{q_network_forward.4} parent=27 // pred_fallthru
            _
          %344 = vnop
        $region28: #{q_network_forward.4} parent=23 // pred_fallthru
          _
      $region24: #{q_network_forward.4} parent=5 // pred_fallthru
        _
      %p345 = scmp.le.s32.totalorder 1, %s9
      %p346 = scmp.lt.s32.totalorder %s9, 3
      %p347 = pnand %p345, %p346
      %p348 = pneg %p347
      // Predicated region
      $region48: #{q_network_forward.4} parent=5 // pred_check
        _
      $region49: #{q_network_forward.4} parent=5 // pred_check_branch
        %350 = sbr.rel (%p347) target = $region51
      $region50: #{q_network_forward.4} parent=5 // pred_region
        %s351 = ssub.s32 %s9, 1
        %s352 = sand.u32 %s43, 1
        %s353 = sand.u32 %s43, 1
        %s354 = smul.addr %s353, 768
        %s355 = scalar_lea.vmem [#allocation2], %s354
        // Predicated region
        $region52: #{q_network_forward.4} parent=50 // pred_check
          %p356 = pneg %p56
        $region53: #{q_network_forward.4} parent=50 // pred_check_branch
          %358 = sbr.rel (%p356) target = $region55
        $region54: #{q_network_forward.4} parent=50 // pred_region
          _
        $region55: #{q_network_forward.4} parent=50 // pred_fallthru
          _
        %p359 = pneg %p30
        %p360 = pneg %p27
        %s361 = sand.u32 %s43, 1
        %s362 = sand.u32 %s43, 1
        %s363 = smul.addr %s362, 768
        %s364 = scalar_lea.vmem [#allocation2], %s363
        %p365 = pneg %p56
        %p366 = pneg %p53
        %p367 = pneg %p77
        %p368 = pneg %p74
        %p369 = pneg %p103
        %p370 = pneg %p100
        %s371 = sand.u32 %s90, 1
        %s372 = sand.u32 %s90, 1
        %s373 = smul.addr %s372, 96
        %s374 = scalar_lea.vmem [#allocation3], %s373
        %s375 = smul.u32 6, %s14
        %s376 = smul.u32 6, %s14
        %v377 = vld [vmem:[%s0] sm:$0xff]
        %v378 = vld [vmem:[%s0 + $0x8] sm:$0xff]
        %v379 = vld [vmem:[%s0 + $0x10] sm:$0xff]
        %v380 = vld [vmem:[%s0 + $0x18] sm:$0xff]
        %v381 = vld [vmem:[%s355] sm:$0xff]
        %v382 = vld [vmem:[%s355 + $0x8] sm:$0xff]
        %v383 = vld [vmem:[%s355 + $0x10] sm:$0xff]
        %v384 = vld [vmem:[%s355 + $0x18] sm:$0xff]
        %v385 = vld [vmem:[%s355 + $0x20] sm:$0xff]
        %v386 = vld [vmem:[%s355 + $0x28] sm:$0xff]
        %v387 = vld [vmem:[%s355 + $0x30] sm:$0xff]
        %v388 = vld [vmem:[%s355 + $0x38] sm:$0xff]
        %v389 = vld [vmem:[%s355 + $0x40] sm:$0xff]
        %v390 = vld [vmem:[%s355 + $0x48] sm:$0xff]
        %v391 = vld [vmem:[%s355 + $0x50] sm:$0xff]
        %v392 = vld [vmem:[%s355 + $0x58] sm:$0xff]
        %v393 = vld [vmem:[%s355 + $0x60] sm:$0xff]
        %v394 = vld [vmem:[%s355 + $0x68] sm:$0xff]
        %v395 = vld [vmem:[%s355 + $0x70] sm:$0xff]
        %v396 = vld [vmem:[%s355 + $0x78] sm:$0xff]
        %v397 = vld [vmem:[%s355 + $0x80] sm:$0xff]
        %v398 = vld [vmem:[%s355 + $0x88] sm:$0xff]
        %v399 = vld [vmem:[%s355 + $0x90] sm:$0xff]
        %v400 = vld [vmem:[%s355 + $0x98] sm:$0xff]
        %v401 = vld [vmem:[%s355 + $0xa0] sm:$0xff]
        %v402 = vld [vmem:[%s355 + $0xa8] sm:$0xff]
        %v403 = vld [vmem:[%s355 + $0xb0] sm:$0xff]
        %v404 = vld [vmem:[%s355 + $0xb8] sm:$0xff]
        %v405 = vld [vmem:[%s355 + $0xc0] sm:$0xff]
        %v406 = vld [vmem:[%s355 + $0xc8] sm:$0xff]
        %v407 = vld [vmem:[%s355 + $0xd0] sm:$0xff]
        %v408 = vld [vmem:[%s355 + $0xd8] sm:$0xff]
        %v409 = vld [vmem:[%s355 + $0xe0] sm:$0xff]
        %v410 = vld [vmem:[%s355 + $0xe8] sm:$0xff]
        %v411 = vld [vmem:[%s355 + $0xf0] sm:$0xff]
        %v412 = vld [vmem:[%s355 + $0xf8] sm:$0xff]
        %v413 = vld [vmem:[%s355 + $0x100] sm:$0xff]
        %v414 = vld [vmem:[%s355 + $0x108] sm:$0xff]
        %v415 = vld [vmem:[%s355 + $0x110] sm:$0xff]
        %v416 = vld [vmem:[%s355 + $0x118] sm:$0xff]
        %v417 = vld [vmem:[%s355 + $0x120] sm:$0xff]
        %v418 = vld [vmem:[%s355 + $0x128] sm:$0xff]
        %v419 = vld [vmem:[%s355 + $0x130] sm:$0xff]
        %v420 = vld [vmem:[%s355 + $0x138] sm:$0xff]
        %v421 = vld [vmem:[%s355 + $0x140] sm:$0xff]
        %v422 = vld [vmem:[%s355 + $0x148] sm:$0xff]
        %v423 = vld [vmem:[%s355 + $0x150] sm:$0xff]
        %v424 = vld [vmem:[%s355 + $0x158] sm:$0xff]
        %v425 = vld [vmem:[%s355 + $0x160] sm:$0xff]
        %v426 = vld [vmem:[%s355 + $0x168] sm:$0xff]
        %v427 = vld [vmem:[%s355 + $0x170] sm:$0xff]
        %v428 = vld [vmem:[%s355 + $0x178] sm:$0xff]
        %v429 = vld [vmem:[%s355 + $0x180] sm:$0xff]
        %v430 = vld [vmem:[%s355 + $0x188] sm:$0xff]
        %v431 = vld [vmem:[%s355 + $0x190] sm:$0xff]
        %v432 = vld [vmem:[%s355 + $0x198] sm:$0xff]
        %v433 = vld [vmem:[%s355 + $0x1a0] sm:$0xff]
        %v434 = vld [vmem:[%s355 + $0x1a8] sm:$0xff]
        %v435 = vld [vmem:[%s355 + $0x1b0] sm:$0xff]
        %v436 = vld [vmem:[%s355 + $0x1b8] sm:$0xff]
        %v437 = vld [vmem:[%s355 + $0x1c0] sm:$0xff]
        %v438 = vld [vmem:[%s355 + $0x1c8] sm:$0xff]
        %v439 = vld [vmem:[%s355 + $0x1d0] sm:$0xff]
        %v440 = vld [vmem:[%s355 + $0x1d8] sm:$0xff]
        %v441 = vld [vmem:[%s355 + $0x1e0] sm:$0xff]
        %v442 = vld [vmem:[%s355 + $0x1e8] sm:$0xff]
        %v443 = vld [vmem:[%s355 + $0x1f0] sm:$0xff]
        %v444 = vld [vmem:[%s355 + $0x1f8] sm:$0xff]
        %v445 = vld [vmem:[%s355 + $0x200] sm:$0xff]
        %v446 = vld [vmem:[%s355 + $0x208] sm:$0xff]
        %v447 = vld [vmem:[%s355 + $0x210] sm:$0xff]
        %v448 = vld [vmem:[%s355 + $0x218] sm:$0xff]
        %v449 = vld [vmem:[%s355 + $0x220] sm:$0xff]
        %v450 = vld [vmem:[%s355 + $0x228] sm:$0xff]
        %v451 = vld [vmem:[%s355 + $0x230] sm:$0xff]
        %v452 = vld [vmem:[%s355 + $0x238] sm:$0xff]
        %v453 = vld [vmem:[%s355 + $0x240] sm:$0xff]
        %v454 = vld [vmem:[%s355 + $0x248] sm:$0xff]
        %v455 = vld [vmem:[%s355 + $0x250] sm:$0xff]
        %v456 = vld [vmem:[%s355 + $0x258] sm:$0xff]
        %v457 = vld [vmem:[%s355 + $0x260] sm:$0xff]
        %v458 = vld [vmem:[%s355 + $0x268] sm:$0xff]
        %v459 = vld [vmem:[%s355 + $0x270] sm:$0xff]
        %v460 = vld [vmem:[%s355 + $0x278] sm:$0xff]
        %v461 = vld [vmem:[%s355 + $0x280] sm:$0xff]
        %v462 = vld [vmem:[%s355 + $0x288] sm:$0xff]
        %v463 = vld [vmem:[%s355 + $0x290] sm:$0xff]
        %v464 = vld [vmem:[%s355 + $0x298] sm:$0xff]
        %v465 = vld [vmem:[%s355 + $0x2a0] sm:$0xff]
        %v466 = vld [vmem:[%s355 + $0x2a8] sm:$0xff]
        %v467 = vld [vmem:[%s355 + $0x2b0] sm:$0xff]
        %v468 = vld [vmem:[%s355 + $0x2b8] sm:$0xff]
        %v469 = vld [vmem:[%s355 + $0x2c0] sm:$0xff]
        %v470 = vld [vmem:[%s355 + $0x2c8] sm:$0xff]
        %v471 = vld [vmem:[%s355 + $0x2d0] sm:$0xff]
        %v472 = vld [vmem:[%s355 + $0x2d8] sm:$0xff]
        %v473 = vld [vmem:[%s355 + $0x2e0] sm:$0xff]
        %v474 = vld [vmem:[%s355 + $0x2e8] sm:$0xff]
        %v475 = vld [vmem:[%s355 + $0x2f0] sm:$0xff]
        %v476 = vld [vmem:[%s355 + $0x2f8] sm:$0xff]
        %v477 = vld [vmem:[%s2] sm:$0xff]
        %v478 = vld [vmem:[%s2 + $0x8] sm:$0xff]
        %v479 = vld [vmem:[%s2 + $0x10] sm:$0xff]
        %v480 = vld [vmem:[%s2 + $0x18] sm:$0xff]
        %482 = vset.pattern.permute.xlu0 0
        %483 = vperm.xlu0 %482, %v477
        %v484 = vpop.permute.xlu0 %483
        %487 = vset.pattern.permute.xlu0 0
        %488 = vperm.xlu0 %487, %v478
        %v489 = vpop.permute.xlu0 %488
        %492 = vset.pattern.permute.xlu0 0
        %493 = vperm.xlu0 %492, %v479
        %v494 = vpop.permute.xlu0 %493
        %497 = vset.pattern.permute.xlu0 0
        %498 = vperm.xlu0 %497, %v480
        %v499 = vpop.permute.xlu0 %498
        %v505 = vunpack.c.l.b16 %v377
        %v506 = vunpack.c.h.b16 %v377
        %v507 = vunpack.c.l.b16 %v378
        %v508 = vunpack.c.h.b16 %v378
        %v509 = vunpack.c.l.b16 %v379
        %v510 = vunpack.c.h.b16 %v379
        %v511 = vunpack.c.l.b16 %v380
        %v512 = vunpack.c.h.b16 %v380
        %v513 = vpack.c.b16 %v507, %v505
        %v514 = vpack.c.b16 %v508, %v506
        %v515 = vpack.c.b16 %v511, %v509
        %v516 = vpack.c.b16 %v512, %v510
        %v617 = vunpack.c.l.b16 %v381
        %v618 = vunpack.c.h.b16 %v381
        %v619 = vunpack.c.l.b16 %v382
        %v620 = vunpack.c.h.b16 %v382
        %v621 = vunpack.c.l.b16 %v383
        %v622 = vunpack.c.h.b16 %v383
        %v623 = vunpack.c.l.b16 %v384
        %v624 = vunpack.c.h.b16 %v384
        %v625 = vunpack.c.l.b16 %v385
        %v626 = vunpack.c.h.b16 %v385
        %v627 = vunpack.c.l.b16 %v386
        %v628 = vunpack.c.h.b16 %v386
        %v629 = vunpack.c.l.b16 %v387
        %v630 = vunpack.c.h.b16 %v387
        %v631 = vunpack.c.l.b16 %v388
        %v632 = vunpack.c.h.b16 %v388
        %v633 = vunpack.c.l.b16 %v389
        %v634 = vunpack.c.h.b16 %v389
        %v635 = vunpack.c.l.b16 %v390
        %v636 = vunpack.c.h.b16 %v390
        %v637 = vunpack.c.l.b16 %v391
        %v638 = vunpack.c.h.b16 %v391
        %v639 = vunpack.c.l.b16 %v392
        %v640 = vunpack.c.h.b16 %v392
        %v641 = vunpack.c.l.b16 %v393
        %v642 = vunpack.c.h.b16 %v393
        %v643 = vunpack.c.l.b16 %v394
        %v644 = vunpack.c.h.b16 %v394
        %v645 = vunpack.c.l.b16 %v395
        %v646 = vunpack.c.h.b16 %v395
        %v647 = vunpack.c.l.b16 %v396
        %v648 = vunpack.c.h.b16 %v396
        %v649 = vunpack.c.l.b16 %v397
        %v650 = vunpack.c.h.b16 %v397
        %v651 = vunpack.c.l.b16 %v398
        %v652 = vunpack.c.h.b16 %v398
        %v653 = vunpack.c.l.b16 %v399
        %v654 = vunpack.c.h.b16 %v399
        %v655 = vunpack.c.l.b16 %v400
        %v656 = vunpack.c.h.b16 %v400
        %v657 = vunpack.c.l.b16 %v401
        %v658 = vunpack.c.h.b16 %v401
        %v659 = vunpack.c.l.b16 %v402
        %v660 = vunpack.c.h.b16 %v402
        %v661 = vunpack.c.l.b16 %v403
        %v662 = vunpack.c.h.b16 %v403
        %v663 = vunpack.c.l.b16 %v404
        %v664 = vunpack.c.h.b16 %v404
        %v665 = vunpack.c.l.b16 %v405
        %v666 = vunpack.c.h.b16 %v405
        %v667 = vunpack.c.l.b16 %v406
        %v668 = vunpack.c.h.b16 %v406
        %v669 = vunpack.c.l.b16 %v407
        %v670 = vunpack.c.h.b16 %v407
        %v671 = vunpack.c.l.b16 %v408
        %v672 = vunpack.c.h.b16 %v408
        %v673 = vunpack.c.l.b16 %v409
        %v674 = vunpack.c.h.b16 %v409
        %v675 = vunpack.c.l.b16 %v410
        %v676 = vunpack.c.h.b16 %v410
        %v677 = vunpack.c.l.b16 %v411
        %v678 = vunpack.c.h.b16 %v411
        %v679 = vunpack.c.l.b16 %v412
        %v680 = vunpack.c.h.b16 %v412
        %v681 = vunpack.c.l.b16 %v413
        %v682 = vunpack.c.h.b16 %v413
        %v683 = vunpack.c.l.b16 %v414
        %v684 = vunpack.c.h.b16 %v414
        %v685 = vunpack.c.l.b16 %v415
        %v686 = vunpack.c.h.b16 %v415
        %v687 = vunpack.c.l.b16 %v416
        %v688 = vunpack.c.h.b16 %v416
        %v689 = vunpack.c.l.b16 %v417
        %v690 = vunpack.c.h.b16 %v417
        %v691 = vunpack.c.l.b16 %v418
        %v692 = vunpack.c.h.b16 %v418
        %v693 = vunpack.c.l.b16 %v419
        %v694 = vunpack.c.h.b16 %v419
        %v695 = vunpack.c.l.b16 %v420
        %v696 = vunpack.c.h.b16 %v420
        %v697 = vunpack.c.l.b16 %v421
        %v698 = vunpack.c.h.b16 %v421
        %v699 = vunpack.c.l.b16 %v422
        %v700 = vunpack.c.h.b16 %v422
        %v701 = vunpack.c.l.b16 %v423
        %v702 = vunpack.c.h.b16 %v423
        %v703 = vunpack.c.l.b16 %v424
        %v704 = vunpack.c.h.b16 %v424
        %v705 = vunpack.c.l.b16 %v425
        %v706 = vunpack.c.h.b16 %v425
        %v707 = vunpack.c.l.b16 %v426
        %v708 = vunpack.c.h.b16 %v426
        %v709 = vunpack.c.l.b16 %v427
        %v710 = vunpack.c.h.b16 %v427
        %v711 = vunpack.c.l.b16 %v428
        %v712 = vunpack.c.h.b16 %v428
        %v713 = vunpack.c.l.b16 %v429
        %v714 = vunpack.c.h.b16 %v429
        %v715 = vunpack.c.l.b16 %v430
        %v716 = vunpack.c.h.b16 %v430
        %v717 = vunpack.c.l.b16 %v431
        %v718 = vunpack.c.h.b16 %v431
        %v719 = vunpack.c.l.b16 %v432
        %v720 = vunpack.c.h.b16 %v432
        %v721 = vunpack.c.l.b16 %v433
        %v722 = vunpack.c.h.b16 %v433
        %v723 = vunpack.c.l.b16 %v434
        %v724 = vunpack.c.h.b16 %v434
        %v725 = vunpack.c.l.b16 %v435
        %v726 = vunpack.c.h.b16 %v435
        %v727 = vunpack.c.l.b16 %v436
        %v728 = vunpack.c.h.b16 %v436
        %v729 = vunpack.c.l.b16 %v437
        %v730 = vunpack.c.h.b16 %v437
        %v731 = vunpack.c.l.b16 %v438
        %v732 = vunpack.c.h.b16 %v438
        %v733 = vunpack.c.l.b16 %v439
        %v734 = vunpack.c.h.b16 %v439
        %v735 = vunpack.c.l.b16 %v440
        %v736 = vunpack.c.h.b16 %v440
        %v737 = vunpack.c.l.b16 %v441
        %v738 = vunpack.c.h.b16 %v441
        %v739 = vunpack.c.l.b16 %v442
        %v740 = vunpack.c.h.b16 %v442
        %v741 = vunpack.c.l.b16 %v443
        %v742 = vunpack.c.h.b16 %v443
        %v743 = vunpack.c.l.b16 %v444
        %v744 = vunpack.c.h.b16 %v444
        %v745 = vunpack.c.l.b16 %v445
        %v746 = vunpack.c.h.b16 %v445
        %v747 = vunpack.c.l.b16 %v446
        %v748 = vunpack.c.h.b16 %v446
        %v749 = vunpack.c.l.b16 %v447
        %v750 = vunpack.c.h.b16 %v447
        %v751 = vunpack.c.l.b16 %v448
        %v752 = vunpack.c.h.b16 %v448
        %v753 = vunpack.c.l.b16 %v449
        %v754 = vunpack.c.h.b16 %v449
        %v755 = vunpack.c.l.b16 %v450
        %v756 = vunpack.c.h.b16 %v450
        %v757 = vunpack.c.l.b16 %v451
        %v758 = vunpack.c.h.b16 %v451
        %v759 = vunpack.c.l.b16 %v452
        %v760 = vunpack.c.h.b16 %v452
        %v761 = vunpack.c.l.b16 %v453
        %v762 = vunpack.c.h.b16 %v453
        %v763 = vunpack.c.l.b16 %v454
        %v764 = vunpack.c.h.b16 %v454
        %v765 = vunpack.c.l.b16 %v455
        %v766 = vunpack.c.h.b16 %v455
        %v767 = vunpack.c.l.b16 %v456
        %v768 = vunpack.c.h.b16 %v456
        %v769 = vunpack.c.l.b16 %v457
        %v770 = vunpack.c.h.b16 %v457
        %v771 = vunpack.c.l.b16 %v458
        %v772 = vunpack.c.h.b16 %v458
        %v773 = vunpack.c.l.b16 %v459
        %v774 = vunpack.c.h.b16 %v459
        %v775 = vunpack.c.l.b16 %v460
        %v776 = vunpack.c.h.b16 %v460
        %v777 = vunpack.c.l.b16 %v461
        %v778 = vunpack.c.h.b16 %v461
        %v779 = vunpack.c.l.b16 %v462
        %v780 = vunpack.c.h.b16 %v462
        %v781 = vunpack.c.l.b16 %v463
        %v782 = vunpack.c.h.b16 %v463
        %v783 = vunpack.c.l.b16 %v464
        %v784 = vunpack.c.h.b16 %v464
        %v785 = vunpack.c.l.b16 %v465
        %v786 = vunpack.c.h.b16 %v465
        %v787 = vunpack.c.l.b16 %v466
        %v788 = vunpack.c.h.b16 %v466
        %v789 = vunpack.c.l.b16 %v467
        %v790 = vunpack.c.h.b16 %v467
        %v791 = vunpack.c.l.b16 %v468
        %v792 = vunpack.c.h.b16 %v468
        %v793 = vunpack.c.l.b16 %v469
        %v794 = vunpack.c.h.b16 %v469
        %v795 = vunpack.c.l.b16 %v470
        %v796 = vunpack.c.h.b16 %v470
        %v797 = vunpack.c.l.b16 %v471
        %v798 = vunpack.c.h.b16 %v471
        %v799 = vunpack.c.l.b16 %v472
        %v800 = vunpack.c.h.b16 %v472
        %v801 = vunpack.c.l.b16 %v473
        %v802 = vunpack.c.h.b16 %v473
        %v803 = vunpack.c.l.b16 %v474
        %v804 = vunpack.c.h.b16 %v474
        %v805 = vunpack.c.l.b16 %v475
        %v806 = vunpack.c.h.b16 %v475
        %v807 = vunpack.c.l.b16 %v476
        %v808 = vunpack.c.h.b16 %v476
        %v809 = vpack.c.b16 %v623, %v617
        %v810 = vpack.c.b16 %v624, %v618
        %v811 = vpack.c.b16 %v625, %v619
        %v812 = vpack.c.b16 %v626, %v620
        %v813 = vpack.c.b16 %v627, %v621
        %v814 = vpack.c.b16 %v628, %v622
        %v815 = vpack.c.b16 %v635, %v629
        %v816 = vpack.c.b16 %v636, %v630
        %v817 = vpack.c.b16 %v637, %v631
        %v818 = vpack.c.b16 %v638, %v632
        %v819 = vpack.c.b16 %v639, %v633
        %v820 = vpack.c.b16 %v640, %v634
        %v821 = vpack.c.b16 %v647, %v641
        %v822 = vpack.c.b16 %v648, %v642
        %v823 = vpack.c.b16 %v649, %v643
        %v824 = vpack.c.b16 %v650, %v644
        %v825 = vpack.c.b16 %v651, %v645
        %v826 = vpack.c.b16 %v652, %v646
        %v827 = vpack.c.b16 %v659, %v653
        %v828 = vpack.c.b16 %v660, %v654
        %v829 = vpack.c.b16 %v661, %v655
        %v830 = vpack.c.b16 %v662, %v656
        %v831 = vpack.c.b16 %v663, %v657
        %v832 = vpack.c.b16 %v664, %v658
        %v833 = vpack.c.b16 %v671, %v665
        %v834 = vpack.c.b16 %v672, %v666
        %v835 = vpack.c.b16 %v673, %v667
        %v836 = vpack.c.b16 %v674, %v668
        %v837 = vpack.c.b16 %v675, %v669
        %v838 = vpack.c.b16 %v676, %v670
        %v839 = vpack.c.b16 %v683, %v677
        %v840 = vpack.c.b16 %v684, %v678
        %v841 = vpack.c.b16 %v685, %v679
        %v842 = vpack.c.b16 %v686, %v680
        %v843 = vpack.c.b16 %v687, %v681
        %v844 = vpack.c.b16 %v688, %v682
        %v845 = vpack.c.b16 %v695, %v689
        %v846 = vpack.c.b16 %v696, %v690
        %v847 = vpack.c.b16 %v697, %v691
        %v848 = vpack.c.b16 %v698, %v692
        %v849 = vpack.c.b16 %v699, %v693
        %v850 = vpack.c.b16 %v700, %v694
        %v851 = vpack.c.b16 %v707, %v701
        %v852 = vpack.c.b16 %v708, %v702
        %v853 = vpack.c.b16 %v709, %v703
        %v854 = vpack.c.b16 %v710, %v704
        %v855 = vpack.c.b16 %v711, %v705
        %v856 = vpack.c.b16 %v712, %v706
        %v857 = vpack.c.b16 %v719, %v713
        %v858 = vpack.c.b16 %v720, %v714
        %v859 = vpack.c.b16 %v721, %v715
        %v860 = vpack.c.b16 %v722, %v716
        %v861 = vpack.c.b16 %v723, %v717
        %v862 = vpack.c.b16 %v724, %v718
        %v863 = vpack.c.b16 %v731, %v725
        %v864 = vpack.c.b16 %v732, %v726
        %v865 = vpack.c.b16 %v733, %v727
        %v866 = vpack.c.b16 %v734, %v728
        %v867 = vpack.c.b16 %v735, %v729
        %v868 = vpack.c.b16 %v736, %v730
        %v869 = vpack.c.b16 %v743, %v737
        %v870 = vpack.c.b16 %v744, %v738
        %v871 = vpack.c.b16 %v745, %v739
        %v872 = vpack.c.b16 %v746, %v740
        %v873 = vpack.c.b16 %v747, %v741
        %v874 = vpack.c.b16 %v748, %v742
        %v875 = vpack.c.b16 %v755, %v749
        %v876 = vpack.c.b16 %v756, %v750
        %v877 = vpack.c.b16 %v757, %v751
        %v878 = vpack.c.b16 %v758, %v752
        %v879 = vpack.c.b16 %v759, %v753
        %v880 = vpack.c.b16 %v760, %v754
        %v881 = vpack.c.b16 %v767, %v761
        %v882 = vpack.c.b16 %v768, %v762
        %v883 = vpack.c.b16 %v769, %v763
        %v884 = vpack.c.b16 %v770, %v764
        %v885 = vpack.c.b16 %v771, %v765
        %v886 = vpack.c.b16 %v772, %v766
        %v887 = vpack.c.b16 %v779, %v773
        %v888 = vpack.c.b16 %v780, %v774
        %v889 = vpack.c.b16 %v781, %v775
        %v890 = vpack.c.b16 %v782, %v776
        %v891 = vpack.c.b16 %v783, %v777
        %v892 = vpack.c.b16 %v784, %v778
        %v893 = vpack.c.b16 %v791, %v785
        %v894 = vpack.c.b16 %v792, %v786
        %v895 = vpack.c.b16 %v793, %v787
        %v896 = vpack.c.b16 %v794, %v788
        %v897 = vpack.c.b16 %v795, %v789
        %v898 = vpack.c.b16 %v796, %v790
        %v899 = vpack.c.b16 %v803, %v797
        %v900 = vpack.c.b16 %v804, %v798
        %v901 = vpack.c.b16 %v805, %v799
        %v902 = vpack.c.b16 %v806, %v800
        %v903 = vpack.c.b16 %v807, %v801
        %v904 = vpack.c.b16 %v808, %v802
        %1001 = vmatprep.subr.bf16.mxu0 %v810
        %1002 = vmatpush1.bf16.msra.mxu0 %v809
        %1003 = vmatprep.subr.bf16.mxu0 %v816
        %1004 = vmatpush1.bf16.msra.mxu0 %v815
        %1005 = vmatprep.subr.bf16.mxu0 %v822
        %1006 = vmatpush1.bf16.msra.mxu0 %v821
        %1007 = vmatprep.subr.bf16.mxu0 %v828
        %1008 = vmatpush1.bf16.msra.mxu0 %v827
        %1009 = vmatprep.subr.bf16.mxu0 %v834
        %1010 = vmatpush1.bf16.msra.mxu0 %v833
        %1011 = vmatprep.subr.bf16.mxu0 %v840
        %1012 = vmatpush1.bf16.msra.mxu0 %v839
        %1013 = vmatprep.subr.bf16.mxu0 %v846
        %1014 = vmatpush1.bf16.msra.mxu0 %v845
        %1015 = vmatprep.subr.bf16.mxu0 %v852
        %1016 = vmatpush1.bf16.msra.mxu0 %v851
        %1017 = vmatprep.subr.bf16.mxu0 %v858
        %1018 = vmatpush1.bf16.msra.mxu0 %v857
        %1019 = vmatprep.subr.bf16.mxu0 %v864
        %1020 = vmatpush1.bf16.msra.mxu0 %v863
        %1021 = vmatprep.subr.bf16.mxu0 %v870
        %1022 = vmatpush1.bf16.msra.mxu0 %v869
        %1023 = vmatprep.subr.bf16.mxu0 %v876
        %1024 = vmatpush1.bf16.msra.mxu0 %v875
        %1025 = vmatprep.subr.bf16.mxu0 %v882
        %1026 = vmatpush1.bf16.msra.mxu0 %v881
        %1027 = vmatprep.subr.bf16.mxu0 %v888
        %1028 = vmatpush1.bf16.msra.mxu0 %v887
        %1029 = vmatprep.subr.bf16.mxu0 %v894
        %1030 = vmatpush1.bf16.msra.mxu0 %v893
        %1031 = vmatprep.subr.bf16.mxu0 %v900
        %1032 = vmatpush1.bf16.msra.mxu0 %v899
        %1033 = vmatprep.mubr.bf16.mxu0 %v514
        %1034 = vmatmul.mubr.bf16.gmra.mrb[0].mxu0 %v513
        %v1035 = vpop.f32.mrb[0].mxu0
        %v1036 = vadd.f32 %v484, %v1035
        %v1037 = vpop.f32.mrb[0].mxu0
        %v1038 = vadd.f32 %v484, %v1037
        %v1039 = vpop.f32.mrb[0].mxu0
        %v1040 = vadd.f32 %v489, %v1039
        %v1041 = vpop.f32.mrb[0].mxu0
        %v1042 = vadd.f32 %v489, %v1041
        %1043 = vmatprep.mubr.bf16.mxu0 %v516
        %1044 = vmatmul.mubr.bf16.gmra.mrb[0].mxu0 %v515
        %v1045 = vpop.f32.mrb[0].mxu0
        %v1046 = vadd.f32 %v494, %v1045
        %v1047 = vpop.f32.mrb[0].mxu0
        %v1048 = vadd.f32 %v494, %v1047
        %v1049 = vpop.f32.mrb[0].mxu0
        %v1050 = vadd.f32 %v499, %v1049
        %v1051 = vpop.f32.mrb[0].mxu0
        %v1052 = vadd.f32 %v499, %v1051
        %1053 = vdwg.mxu0
        %1054 = vmatprep.subr.bf16.mxu0 %v812
        %1055 = vmatpush1.bf16.msra.mxu0 %v811
        %1056 = vmatprep.subr.bf16.mxu0 %v818
        %1057 = vmatpush1.bf16.msra.mxu0 %v817
        %1058 = vmatprep.subr.bf16.mxu0 %v824
        %1059 = vmatpush1.bf16.msra.mxu0 %v823
        %1060 = vmatprep.subr.bf16.mxu0 %v830
        %1061 = vmatpush1.bf16.msra.mxu0 %v829
        %1062 = vmatprep.subr.bf16.mxu0 %v836
        %1063 = vmatpush1.bf16.msra.mxu0 %v835
        %1064 = vmatprep.subr.bf16.mxu0 %v842
        %1065 = vmatpush1.bf16.msra.mxu0 %v841
        %1066 = vmatprep.subr.bf16.mxu0 %v848
        %1067 = vmatpush1.bf16.msra.mxu0 %v847
        %1068 = vmatprep.subr.bf16.mxu0 %v854
        %1069 = vmatpush1.bf16.msra.mxu0 %v853
        %1070 = vmatprep.subr.bf16.mxu0 %v860
        %1071 = vmatpush1.bf16.msra.mxu0 %v859
        %1072 = vmatprep.subr.bf16.mxu0 %v866
        %1073 = vmatpush1.bf16.msra.mxu0 %v865
        %1074 = vmatprep.subr.bf16.mxu0 %v872
        %1075 = vmatpush1.bf16.msra.mxu0 %v871
        %1076 = vmatprep.subr.bf16.mxu0 %v878
        %1077 = vmatpush1.bf16.msra.mxu0 %v877
        %1078 = vmatprep.subr.bf16.mxu0 %v884
        %1079 = vmatpush1.bf16.msra.mxu0 %v883
        %1080 = vmatprep.subr.bf16.mxu0 %v890
        %1081 = vmatpush1.bf16.msra.mxu0 %v889
        %1082 = vmatprep.subr.bf16.mxu0 %v896
        %1083 = vmatpush1.bf16.msra.mxu0 %v895
        %1084 = vmatprep.subr.bf16.mxu0 %v902
        %1085 = vmatpush1.bf16.msra.mxu0 %v901
        %1086 = vmatprep.mubr.bf16.mxu0 %v514
        %1087 = vmatmul.mubr.bf16.gmra.mrb[0].mxu0 %v513
        %v1088 = vpop.f32.mrb[0].mxu0
        %v1089 = vadd.f32 %v484, %v1088
        %v1090 = vpop.f32.mrb[0].mxu0
        %v1091 = vadd.f32 %v484, %v1090
        %v1092 = vpop.f32.mrb[0].mxu0
        %v1093 = vadd.f32 %v489, %v1092
        %v1094 = vpop.f32.mrb[0].mxu0
        %v1095 = vadd.f32 %v489, %v1094
        %1096 = vmatprep.mubr.bf16.mxu0 %v516
        %1097 = vmatmul.mubr.bf16.gmra.mrb[0].mxu0 %v515
        %v1098 = vpop.f32.mrb[0].mxu0
        %v1099 = vadd.f32 %v494, %v1098
        %v1100 = vpop.f32.mrb[0].mxu0
        %v1101 = vadd.f32 %v494, %v1100
        %v1102 = vpop.f32.mrb[0].mxu0
        %v1103 = vadd.f32 %v499, %v1102
        %v1104 = vpop.f32.mrb[0].mxu0
        %v1105 = vadd.f32 %v499, %v1104
        %1106 = vdwg.mxu0
        %1107 = vmatprep.subr.bf16.mxu0 %v814
        %1108 = vmatpush1.bf16.msra.mxu0 %v813
        %1109 = vmatprep.subr.bf16.mxu0 %v820
        %1110 = vmatpush1.bf16.msra.mxu0 %v819
        %1111 = vmatprep.subr.bf16.mxu0 %v826
        %1112 = vmatpush1.bf16.msra.mxu0 %v825
        %1113 = vmatprep.subr.bf16.mxu0 %v832
        %1114 = vmatpush1.bf16.msra.mxu0 %v831
        %1115 = vmatprep.subr.bf16.mxu0 %v838
        %1116 = vmatpush1.bf16.msra.mxu0 %v837
        %1117 = vmatprep.subr.bf16.mxu0 %v844
        %1118 = vmatpush1.bf16.msra.mxu0 %v843
        %1119 = vmatprep.subr.bf16.mxu0 %v850
        %1120 = vmatpush1.bf16.msra.mxu0 %v849
        %1121 = vmatprep.subr.bf16.mxu0 %v856
        %1122 = vmatpush1.bf16.msra.mxu0 %v855
        %1123 = vmatprep.subr.bf16.mxu0 %v862
        %1124 = vmatpush1.bf16.msra.mxu0 %v861
        %1125 = vmatprep.subr.bf16.mxu0 %v868
        %1126 = vmatpush1.bf16.msra.mxu0 %v867
        %1127 = vmatprep.subr.bf16.mxu0 %v874
        %1128 = vmatpush1.bf16.msra.mxu0 %v873
        %1129 = vmatprep.subr.bf16.mxu0 %v880
        %1130 = vmatpush1.bf16.msra.mxu0 %v879
        %1131 = vmatprep.subr.bf16.mxu0 %v886
        %1132 = vmatpush1.bf16.msra.mxu0 %v885
        %1133 = vmatprep.subr.bf16.mxu0 %v892
        %1134 = vmatpush1.bf16.msra.mxu0 %v891
        %1135 = vmatprep.subr.bf16.mxu0 %v898
        %1136 = vmatpush1.bf16.msra.mxu0 %v897
        %1137 = vmatprep.subr.bf16.mxu0 %v904
        %1138 = vmatpush1.bf16.msra.mxu0 %v903
        %1139 = vmatprep.mubr.bf16.mxu0 %v514
        %1140 = vmatmul.mubr.bf16.gmra.mrb[0].mxu0 %v513
        %v1141 = vpop.f32.mrb[0].mxu0
        %v1142 = vadd.f32 %v484, %v1141
        %v1143 = vpop.f32.mrb[0].mxu0
        %v1144 = vadd.f32 %v484, %v1143
        %v1145 = vpop.f32.mrb[0].mxu0
        %v1146 = vadd.f32 %v489, %v1145
        %v1147 = vpop.f32.mrb[0].mxu0
        %v1148 = vadd.f32 %v489, %v1147
        %1149 = vmatprep.mubr.bf16.mxu0 %v516
        %1150 = vmatmul.mubr.bf16.gmra.mrb[0].mxu0 %v515
        %v1151 = vpop.f32.mrb[0].mxu0
        %v1152 = vadd.f32 %v494, %v1151
        %v1153 = vpop.f32.mrb[0].mxu0
        %v1154 = vadd.f32 %v494, %v1153
        %v1155 = vpop.f32.mrb[0].mxu0
        %v1156 = vadd.f32 %v499, %v1155
        %v1157 = vpop.f32.mrb[0].mxu0
        %v1158 = vadd.f32 %v499, %v1157
        %1159 = vdwg.mxu0
        %v1160 = vmax.f32 %v1036, 0.0
        %v1161 = vmax.f32 %v1038, 0.0
        %v1162 = vmax.f32 %v1089, 0.0
        %v1163 = vmax.f32 %v1091, 0.0
        %v1164 = vmax.f32 %v1142, 0.0
        %v1165 = vmax.f32 %v1144, 0.0
        %v1166 = vmax.f32 %v1040, 0.0
        %v1167 = vmax.f32 %v1042, 0.0
        %v1168 = vmax.f32 %v1093, 0.0
        %v1169 = vmax.f32 %v1095, 0.0
        %v1170 = vmax.f32 %v1146, 0.0
        %v1171 = vmax.f32 %v1148, 0.0
        %v1172 = vmax.f32 %v1046, 0.0
        %v1173 = vmax.f32 %v1048, 0.0
        %v1174 = vmax.f32 %v1099, 0.0
        %v1175 = vmax.f32 %v1101, 0.0
        %v1176 = vmax.f32 %v1152, 0.0
        %v1177 = vmax.f32 %v1154, 0.0
        %v1178 = vmax.f32 %v1050, 0.0
        %v1179 = vmax.f32 %v1052, 0.0
        %v1180 = vmax.f32 %v1103, 0.0
        %v1181 = vmax.f32 %v1105, 0.0
        %v1182 = vmax.f32 %v1156, 0.0
        %v1183 = vmax.f32 %v1158, 0.0
        %v1184 = vpack.c.bf16 %v1166, %v1160
        %v1185 = vpack.c.bf16 %v1167, %v1161
        %v1186 = vpack.c.bf16 %v1168, %v1162
        %v1187 = vpack.c.bf16 %v1169, %v1163
        %v1188 = vpack.c.bf16 %v1170, %v1164
        %v1189 = vpack.c.bf16 %v1171, %v1165
        %v1190 = vpack.c.bf16 %v1178, %v1172
        %v1191 = vpack.c.bf16 %v1179, %v1173
        %v1192 = vpack.c.bf16 %v1180, %v1174
        %v1193 = vpack.c.bf16 %v1181, %v1175
        %v1194 = vpack.c.bf16 %v1182, %v1176
        %v1195 = vpack.c.bf16 %v1183, %v1177
        %v1208 = vunpack.c.l.b16 %v1184
        %v1209 = vunpack.c.l.b16 %v1185
        %v1210 = vunpack.c.l.b16 %v1186
        %v1211 = vunpack.c.l.b16 %v1187
        %v1212 = vunpack.c.l.b16 %v1188
        %v1213 = vunpack.c.l.b16 %v1189
        %v1214 = vunpack.c.h.b16 %v1184
        %v1215 = vunpack.c.h.b16 %v1185
        %v1216 = vunpack.c.h.b16 %v1186
        %v1217 = vunpack.c.h.b16 %v1187
        %v1218 = vunpack.c.h.b16 %v1188
        %v1219 = vunpack.c.h.b16 %v1189
        %v1220 = vunpack.c.l.b16 %v1190
        %v1221 = vunpack.c.l.b16 %v1191
        %v1222 = vunpack.c.l.b16 %v1192
        %v1223 = vunpack.c.l.b16 %v1193
        %v1224 = vunpack.c.l.b16 %v1194
        %v1225 = vunpack.c.l.b16 %v1195
        %v1226 = vunpack.c.h.b16 %v1190
        %v1227 = vunpack.c.h.b16 %v1191
        %v1228 = vunpack.c.h.b16 %v1192
        %v1229 = vunpack.c.h.b16 %v1193
        %v1230 = vunpack.c.h.b16 %v1194
        %v1231 = vunpack.c.h.b16 %v1195
        %v1232 = vpack.c.b16 %v1209, %v1208
        %v1233 = vpack.c.b16 %v1211, %v1210
        %v1234 = vpack.c.b16 %v1213, %v1212
        %v1235 = vpack.c.b16 %v1215, %v1214
        %v1236 = vpack.c.b16 %v1217, %v1216
        %v1237 = vpack.c.b16 %v1219, %v1218
        %v1238 = vpack.c.b16 %v1221, %v1220
        %v1239 = vpack.c.b16 %v1223, %v1222
        %v1240 = vpack.c.b16 %v1225, %v1224
        %v1241 = vpack.c.b16 %v1227, %v1226
        %v1242 = vpack.c.b16 %v1229, %v1228
        %v1243 = vpack.c.b16 %v1231, %v1230
        %1256 = vst [vmem:[%s374] sm:$0xff] %v1232
        %1257 = vst [vmem:[%s374 + $0x8] sm:$0xff] %v1233
        %1258 = vst [vmem:[%s374 + $0x10] sm:$0xff] %v1234
        %1259 = vst [vmem:[%s374 + $0x18] sm:$0xff] %v1235
        %1260 = vst [vmem:[%s374 + $0x20] sm:$0xff] %v1236
        %1261 = vst [vmem:[%s374 + $0x28] sm:$0xff] %v1237
        %1262 = vst [vmem:[%s374 + $0x30] sm:$0xff] %v1238
        %1263 = vst [vmem:[%s374 + $0x38] sm:$0xff] %v1239
        %1264 = vst [vmem:[%s374 + $0x40] sm:$0xff] %v1240
        %1265 = vst [vmem:[%s374 + $0x48] sm:$0xff] %v1241
        %1266 = vst [vmem:[%s374 + $0x50] sm:$0xff] %v1242
        %1267 = vst [vmem:[%s374 + $0x58] sm:$0xff] %v1243
        %s1268 = sand.u32 %s90, 1
        %s1269 = sand.u32 %s90, 1
        %s1270 = smul.addr %s1269, 96
        %s1271 = scalar_lea.vmem [#allocation3], %s1270
        // Predicated region
        $region56: #{q_network_forward.4} parent=50 // pred_check
          %p1272 = pneg %p100
        $region57: #{q_network_forward.4} parent=50 // pred_check_branch
          %1274 = sbr.rel (%p1272) target = $region59
        $region58: #{q_network_forward.4} parent=50 // pred_region
          %s1275 = smul.u32 6, %s14
          %s1276 = smul.addr %s1275, 4
          %s1277 = scalar_lea.vmem %s3, %s1276
          // Predicated region
          $region60: #{q_network_forward.4} parent=58 // pred_check
            _
          $region61: #{q_network_forward.4} parent=58 // pred_check_branch
            %1279 = sbr.rel (0) target = $region63
          $region62: #{q_network_forward.4} parent=58 // pred_region
            // Predicated region
            $region64: #{q_network_forward.4} parent=62 // pred_check
              _
            $region65: #{q_network_forward.4} parent=62 // pred_check_branch
              %1281 = sbr.rel (0) target = $region67
            $region66: #{q_network_forward.4} parent=62 // pred_region
              loop: start=0, step=1, limit=1
              $region68: #{q_network_forward.4} parent=66 // loop_pre_header
                _
              $region69: #{q_network_forward.4} parent=66 // loop_header
                %s1283 = sphi 0, %s1287
                %p1284 = scmp.ge.s32.totalorder %s1283, 1
                %s1288 = sphi %s1271, %s1271
                %s1289 = sphi %s1277, %s1277
              $region70: #{q_network_forward.4} parent=66 // loop_header_branch
                %1286 = sbr.rel (%p1284) target = $region74
              $region71: #{q_network_forward.4} parent=66 // loop_body
                %v1290 = vld [vmem:[%s1288] sm:$0xff]
                %1291 = vst [vmem:[%s1289] sm:$0xff] %v1290
                %v1292 = vld [vmem:[%s1288 + $0x8] sm:$0xff]
                %1293 = vst [vmem:[%s1289 + $0x8] sm:$0xff] %v1292
                %v1294 = vld [vmem:[%s1288 + $0x10] sm:$0xff]
                %1295 = vst [vmem:[%s1289 + $0x10] sm:$0xff] %v1294
                %v1296 = vld [vmem:[%s1288 + $0x18] sm:$0xff]
                %1297 = vst [vmem:[%s1289 + $0x30] sm:$0xff] %v1296
                %v1298 = vld [vmem:[%s1288 + $0x20] sm:$0xff]
                %1299 = vst [vmem:[%s1289 + $0x38] sm:$0xff] %v1298
                %v1300 = vld [vmem:[%s1288 + $0x28] sm:$0xff]
                %1301 = vst [vmem:[%s1289 + $0x40] sm:$0xff] %v1300
                %v1302 = vld [vmem:[%s1288 + $0x30] sm:$0xff]
                %1303 = vst [vmem:[%s1289 + $0x60] sm:$0xff] %v1302
                %v1304 = vld [vmem:[%s1288 + $0x38] sm:$0xff]
                %1305 = vst [vmem:[%s1289 + $0x68] sm:$0xff] %v1304
                %v1306 = vld [vmem:[%s1288 + $0x40] sm:$0xff]
                %1307 = vst [vmem:[%s1289 + $0x70] sm:$0xff] %v1306
                %v1308 = vld [vmem:[%s1288 + $0x48] sm:$0xff]
                %1309 = vst [vmem:[%s1289 + $0x90] sm:$0xff] %v1308
                %v1310 = vld [vmem:[%s1288 + $0x50] sm:$0xff]
                %1311 = vst [vmem:[%s1289 + $0x98] sm:$0xff] %v1310
                %v1312 = vld [vmem:[%s1288 + $0x58] sm:$0xff]
                %1313 = vst [vmem:[%s1289 + $0xa0] sm:$0xff] %v1312
              $region72: #{q_network_forward.4} parent=66 // loop_footer
                %s1287 = sadd.s32 1, %s1283
              $region73: #{q_network_forward.4} parent=66 // loop_footer_branch
                %1282 = sbr.rel target = $region69
              $region74: #{q_network_forward.4} parent=66 // loop_exit
                _
            $region67: #{q_network_forward.4} parent=62 // pred_fallthru
              _
            // Predicated region
            $region75: #{q_network_forward.4} parent=62 // pred_check
              _
            $region76: #{q_network_forward.4} parent=62 // pred_check_branch
              %1315 = sbr.rel target = $region78
            $region77: #{q_network_forward.4} parent=62 // pred_region
              _
            $region78: #{q_network_forward.4} parent=62 // pred_fallthru
              _
          $region63: #{q_network_forward.4} parent=58 // pred_fallthru
            _
          %1316 = vnop
        $region59: #{q_network_forward.4} parent=50 // pred_fallthru
          _
      $region51: #{q_network_forward.4} parent=5 // pred_fallthru
        _
      %p1317 = scmp.le.s32.totalorder 2, %s9
      // Predicated region
      $region79: #{q_network_forward.4} parent=5 // pred_check
        %p1318 = pneg %p1317
      $region80: #{q_network_forward.4} parent=5 // pred_check_branch
        %1320 = sbr.rel (%p1318) target = $region82
      $region81: #{q_network_forward.4} parent=5 // pred_region
        %s1321 = ssub.s32 %s9, 2
        // Predicated region
        $region83: #{q_network_forward.4} parent=81 // pred_check
          %p1322 = pneg %p106
        $region84: #{q_network_forward.4} parent=81 // pred_check_branch
          %1324 = sbr.rel (%p1322) target = $region86
        $region85: #{q_network_forward.4} parent=81 // pred_region
          %s1325 = sand.u32 %s91, 1
          %s1326 = sand.u32 %s91, 1
          %s1327 = smul.addr %s1326, 96
          %s1328 = scalar_lea.vmem [#allocation3], %s1327
        $region86: #{q_network_forward.4} parent=81 // pred_fallthru
          _
      $region82: #{q_network_forward.4} parent=5 // pred_fallthru
        _
    $region6: #{q_network_forward.4} parent=1 // loop_footer
      %s13 = sadd.s32 1, %s9
    $region7: #{q_network_forward.4} parent=1 // loop_footer_branch
      %8 = sbr.rel target = $region3
    $region8: #{q_network_forward.4} parent=1 // loop_exit
      _

// kernel: q_network_forward.5
$region0: #{q_network_forward.5}
  #allocation0 [shape = 'u32[]', space=smem, size = 0x4, offset = 0x4, fixed_abs, tag = 'smem constant byte address 0x4 - core index']
  #allocation1 [shape = 'u32[144,128]{1,0:T(1,128)}', space=vmem, size = 0x12000, scoped, tag = 'internal scratch']
  %s0 = inlined_call_operand.vmem [shape: bf16[16,2592], index: 0, kind: input, shape index: {}]
  %s1 = inlined_call_operand.vmem [shape: bf16[2592,64], index: 1, kind: input, shape index: {}]
  %s2 = inlined_call_operand.vmem [shape: f32[1,64], index: 2, kind: input, shape index: {}]
  %s3 = inlined_call_operand.vmem [shape: bf16[64,32], index: 3, kind: input, shape index: {}]
  %s4 = inlined_call_operand.vmem [shape: f32[1,32], index: 4, kind: input, shape index: {}]
  %s5 = inlined_call_operand.vmem [shape: bf16[32,5], index: 5, kind: input, shape index: {}]
  %s6 = inlined_call_operand.vmem [shape: f32[1,5], index: 6, kind: input, shape index: {}]
  %s7 = inlined_call_operand.vmem [shape: f32[16,5], index: 7, kind: output, shape index: {}]
  %s8 = sld [smem:[#allocation0]]
  $region61: #{q_network_forward.5} parent=0
    _
  %s10 = ssub.s32 1, %s8
  %s11 = scalar_select 0, %s10, %s8
  loop: start=0, step=1, limit=4
  $region2: #{q_network_forward.5} parent=0 // loop_pre_header
    _
  $region3: #{q_network_forward.5} parent=0 // loop_header
    %s13 = sphi 0, %s17
    %p14 = scmp.ge.s32.totalorder %s13, 4
    %s23 = sphi 0, %s25
    %s26 = sphi 0, %s23
    %s27 = sphi 0, %s26
    %s43 = sphi 0, %s27
    %s47 = sphi 0, %s47
    %s49 = sphi 0, %s47
    %s50 = sphi 0, %s49
    %s64 = sphi 0, %s50
    %s68 = sphi 0, %s68
    %s70 = sphi 0, %s68
    %s71 = sphi 0, %s70
    %s85 = sphi 0, %s71
    %s89 = sphi 0, %s89
    %s91 = sphi 0, %s89
    %s92 = sphi 0, %s91
    %s106 = sphi 0, %s92
    %s110 = sphi 0, %s110
    %s112 = sphi 0, %s110
    %s113 = sphi 0, %s112
    %s127 = sphi 0, %s113
    %s131 = sphi 0, %s131
    %s133 = sphi 0, %s131
    %s134 = sphi 0, %s133
    %s148 = sphi 0, %s134
    %s152 = sphi 0, %s152
    %s154 = sphi 0, %s152
    %s155 = sphi 0, %s154
    %s169 = sphi 0, %s155
    %s175 = sphi 0, %s177
    %s178 = sphi 0, %s175
    %s179 = sphi 0, %s178
    %s195 = sphi 0, %s179
  $region4: #{q_network_forward.5} parent=0 // loop_header_branch
    %16 = sbr.rel (%p14) target = $region8
  $region5: #{q_network_forward.5} parent=0 // loop_body
    %s18 = ssub.s32 %s13, 1
    %s19 = ssub.s32 %s13, 2
    %s20 = sadd.s32 %s13, 1
    %s21 = ssub.s32 %s13, %s20
    %p22 = scmp.eq.s32.totalorder %s21, 0
    %s24 = sadd.s32 %s23, 1
    %s25 = scalar_select %p22, %s23, %s24
    %p28 = pneg %p22
    %p29 = scmp.eq.s32.totalorder %s13, 1
    %p30 = por %p28, %p29
    %p31 = scmp.ne.s32.totalorder %s23, %s26
    %p32 = scmp.eq.s32.totalorder %s13, 0
    %p33 = por %p31, %p32
    %p34 = scmp.ne.s32.totalorder %s23, %s26
    %p35 = scmp.eq.s32.totalorder %s18, 1
    %p36 = por %p34, %p35
    %p37 = scmp.ne.s32.totalorder %s26, %s27
    %p38 = scmp.eq.s32.totalorder %s18, 0
    %p39 = por %p37, %p38
    %p40 = scmp.ne.s32.totalorder %s26, %s27
    %p41 = scmp.eq.s32.totalorder %s19, 1
    %p42 = por %p40, %p41
    %p44 = scmp.ne.s32.totalorder %s27, %s43
    %p45 = scmp.eq.s32.totalorder %s19, 0
    %p46 = por %p44, %p45
    %s48 = sadd.s32 %s47, 1
    %p51 = scmp.eq.s32.totalorder %s13, 1
    %p52 = scmp.ne.s32.totalorder %s47, %s49
    %p53 = scmp.eq.s32.totalorder %s13, 0
    %p54 = por %p52, %p53
    %p55 = scmp.ne.s32.totalorder %s47, %s49
    %p56 = scmp.eq.s32.totalorder %s18, 1
    %p57 = por %p55, %p56
    %p58 = scmp.ne.s32.totalorder %s49, %s50
    %p59 = scmp.eq.s32.totalorder %s18, 0
    %p60 = por %p58, %p59
    %p61 = scmp.ne.s32.totalorder %s49, %s50
    %p62 = scmp.eq.s32.totalorder %s19, 1
    %p63 = por %p61, %p62
    %p65 = scmp.ne.s32.totalorder %s50, %s64
    %p66 = scmp.eq.s32.totalorder %s19, 0
    %p67 = por %p65, %p66
    %s69 = sadd.s32 %s68, 1
    %p72 = scmp.eq.s32.totalorder %s13, 1
    %p73 = scmp.ne.s32.totalorder %s68, %s70
    %p74 = scmp.eq.s32.totalorder %s13, 0
    %p75 = por %p73, %p74
    %p76 = scmp.ne.s32.totalorder %s68, %s70
    %p77 = scmp.eq.s32.totalorder %s18, 1
    %p78 = por %p76, %p77
    %p79 = scmp.ne.s32.totalorder %s70, %s71
    %p80 = scmp.eq.s32.totalorder %s18, 0
    %p81 = por %p79, %p80
    %p82 = scmp.ne.s32.totalorder %s70, %s71
    %p83 = scmp.eq.s32.totalorder %s19, 1
    %p84 = por %p82, %p83
    %p86 = scmp.ne.s32.totalorder %s71, %s85
    %p87 = scmp.eq.s32.totalorder %s19, 0
    %p88 = por %p86, %p87
    %s90 = sadd.s32 %s89, 1
    %p93 = scmp.eq.s32.totalorder %s13, 1
    %p94 = scmp.ne.s32.totalorder %s89, %s91
    %p95 = scmp.eq.s32.totalorder %s13, 0
    %p96 = por %p94, %p95
    %p97 = scmp.ne.s32.totalorder %s89, %s91
    %p98 = scmp.eq.s32.totalorder %s18, 1
    %p99 = por %p97, %p98
    %p100 = scmp.ne.s32.totalorder %s91, %s92
    %p101 = scmp.eq.s32.totalorder %s18, 0
    %p102 = por %p100, %p101
    %p103 = scmp.ne.s32.totalorder %s91, %s92
    %p104 = scmp.eq.s32.totalorder %s19, 1
    %p105 = por %p103, %p104
    %p107 = scmp.ne.s32.totalorder %s92, %s106
    %p108 = scmp.eq.s32.totalorder %s19, 0
    %p109 = por %p107, %p108
    %s111 = sadd.s32 %s110, 1
    %p114 = scmp.eq.s32.totalorder %s13, 1
    %p115 = scmp.ne.s32.totalorder %s110, %s112
    %p116 = scmp.eq.s32.totalorder %s13, 0
    %p117 = por %p115, %p116
    %p118 = scmp.ne.s32.totalorder %s110, %s112
    %p119 = scmp.eq.s32.totalorder %s18, 1
    %p120 = por %p118, %p119
    %p121 = scmp.ne.s32.totalorder %s112, %s113
    %p122 = scmp.eq.s32.totalorder %s18, 0
    %p123 = por %p121, %p122
    %p124 = scmp.ne.s32.totalorder %s112, %s113
    %p125 = scmp.eq.s32.totalorder %s19, 1
    %p126 = por %p124, %p125
    %p128 = scmp.ne.s32.totalorder %s113, %s127
    %p129 = scmp.eq.s32.totalorder %s19, 0
    %p130 = por %p128, %p129
    %s132 = sadd.s32 %s131, 1
    %p135 = scmp.eq.s32.totalorder %s13, 1
    %p136 = scmp.ne.s32.totalorder %s131, %s133
    %p137 = scmp.eq.s32.totalorder %s13, 0
    %p138 = por %p136, %p137
    %p139 = scmp.ne.s32.totalorder %s131, %s133
    %p140 = scmp.eq.s32.totalorder %s18, 1
    %p141 = por %p139, %p140
    %p142 = scmp.ne.s32.totalorder %s133, %s134
    %p143 = scmp.eq.s32.totalorder %s18, 0
    %p144 = por %p142, %p143
    %p145 = scmp.ne.s32.totalorder %s133, %s134
    %p146 = scmp.eq.s32.totalorder %s19, 1
    %p147 = por %p145, %p146
    %p149 = scmp.ne.s32.totalorder %s134, %s148
    %p150 = scmp.eq.s32.totalorder %s19, 0
    %p151 = por %p149, %p150
    %s153 = sadd.s32 %s152, 1
    %p156 = scmp.eq.s32.totalorder %s13, 1
    %p157 = scmp.ne.s32.totalorder %s152, %s154
    %p158 = scmp.eq.s32.totalorder %s13, 0
    %p159 = por %p157, %p158
    %p160 = scmp.ne.s32.totalorder %s152, %s154
    %p161 = scmp.eq.s32.totalorder %s18, 1
    %p162 = por %p160, %p161
    %p163 = scmp.ne.s32.totalorder %s154, %s155
    %p164 = scmp.eq.s32.totalorder %s18, 0
    %p165 = por %p163, %p164
    %p166 = scmp.ne.s32.totalorder %s154, %s155
    %p167 = scmp.eq.s32.totalorder %s19, 1
    %p168 = por %p166, %p167
    %p170 = scmp.ne.s32.totalorder %s155, %s169
    %p171 = scmp.eq.s32.totalorder %s19, 0
    %p172 = por %p170, %p171
    %s173 = ssub.s32 %s13, %s20
    %p174 = scmp.eq.s32.totalorder %s173, 0
    %s176 = sadd.s32 %s175, 1
    %s177 = scalar_select %p174, %s175, %s176
    %p180 = pneg %p174
    %p181 = scmp.eq.s32.totalorder %s13, 1
    %p182 = por %p180, %p181
    %p183 = scmp.ne.s32.totalorder %s175, %s178
    %p184 = scmp.eq.s32.totalorder %s13, 0
    %p185 = por %p183, %p184
    %p186 = scmp.ne.s32.totalorder %s175, %s178
    %p187 = scmp.eq.s32.totalorder %s18, 1
    %p188 = por %p186, %p187
    %p189 = scmp.ne.s32.totalorder %s178, %s179
    %p190 = scmp.eq.s32.totalorder %s18, 0
    %p191 = por %p189, %p190
    %p192 = scmp.ne.s32.totalorder %s178, %s179
    %p193 = scmp.eq.s32.totalorder %s19, 1
    %p194 = por %p192, %p193
    %p196 = scmp.ne.s32.totalorder %s179, %s195
    %p197 = scmp.eq.s32.totalorder %s19, 0
    %p198 = por %p196, %p197
    %p199 = scmp.le.s32.totalorder 1, %s13
    %p200 = scmp.lt.s32.totalorder %s13, 3
    %p201 = pnand %p199, %p200
    %p202 = pneg %p201
    // Predicated region
    $region9: #{q_network_forward.5} parent=5 // pred_check
      _
    $region10: #{q_network_forward.5} parent=5 // pred_check_branch
      %204 = sbr.rel (%p201) target = $region12
    $region11: #{q_network_forward.5} parent=5 // pred_region
      %s205 = ssub.s32 %s13, 1
      // Predicated region
      $region13: #{q_network_forward.5} parent=11 // pred_check
        %p206 = pneg %p60
      $region14: #{q_network_forward.5} parent=11 // pred_check_branch
        %208 = sbr.rel (%p206) target = $region16
      $region15: #{q_network_forward.5} parent=11 // pred_region
        _
      $region16: #{q_network_forward.5} parent=11 // pred_fallthru
        _
      // Predicated region
      $region17: #{q_network_forward.5} parent=11 // pred_check
        %p209 = pneg %p81
      $region18: #{q_network_forward.5} parent=11 // pred_check_branch
        %211 = sbr.rel (%p209) target = $region20
      $region19: #{q_network_forward.5} parent=11 // pred_region
        _
      $region20: #{q_network_forward.5} parent=11 // pred_fallthru
        _
      // Predicated region
      $region21: #{q_network_forward.5} parent=11 // pred_check
        %p212 = pneg %p102
      $region22: #{q_network_forward.5} parent=11 // pred_check_branch
        %214 = sbr.rel (%p212) target = $region24
      $region23: #{q_network_forward.5} parent=11 // pred_region
        _
      $region24: #{q_network_forward.5} parent=11 // pred_fallthru
        _
      // Predicated region
      $region25: #{q_network_forward.5} parent=11 // pred_check
        %p215 = pneg %p123
      $region26: #{q_network_forward.5} parent=11 // pred_check_branch
        %217 = sbr.rel (%p215) target = $region28
      $region27: #{q_network_forward.5} parent=11 // pred_region
        _
      $region28: #{q_network_forward.5} parent=11 // pred_fallthru
        _
      // Predicated region
      $region29: #{q_network_forward.5} parent=11 // pred_check
        %p218 = pneg %p144
      $region30: #{q_network_forward.5} parent=11 // pred_check_branch
        %220 = sbr.rel (%p218) target = $region32
      $region31: #{q_network_forward.5} parent=11 // pred_region
        _
      $region32: #{q_network_forward.5} parent=11 // pred_fallthru
        _
      // Predicated region
      $region33: #{q_network_forward.5} parent=11 // pred_check
        %p221 = pneg %p165
      $region34: #{q_network_forward.5} parent=11 // pred_check_branch
        %223 = sbr.rel (%p221) target = $region36
      $region35: #{q_network_forward.5} parent=11 // pred_region
        _
      $region36: #{q_network_forward.5} parent=11 // pred_fallthru
        _
    $region12: #{q_network_forward.5} parent=5 // pred_fallthru
      _
    %p224 = scmp.lt.s32.totalorder %s13, 2
    // Predicated region
    $region37: #{q_network_forward.5} parent=5 // pred_check
      %p225 = pneg %p224
    $region38: #{q_network_forward.5} parent=5 // pred_check_branch
      %227 = sbr.rel (%p225) target = $region40
    $region39: #{q_network_forward.5} parent=5 // pred_region
      // Predicated region
      $region41: #{q_network_forward.5} parent=39 // pred_check
        %p228 = pneg %p33
      $region42: #{q_network_forward.5} parent=39 // pred_check_branch
        %230 = sbr.rel (%p228) target = $region44
      $region43: #{q_network_forward.5} parent=39 // pred_region
        %p231 = scmp.lt.s32.totalorder %s13, 1
        %s232 = scalar_select %p231, %s13, 1
        %s233 = smul.addr %s232, 21
        %s234 = smul.addr %s233, 4
        %s235 = scalar_lea.vmem %s0, %s234
      $region44: #{q_network_forward.5} parent=39 // pred_fallthru
        _
    $region40: #{q_network_forward.5} parent=5 // pred_fallthru
      _
    %p236 = scmp.le.s32.totalorder 1, %s13
    %p237 = scmp.lt.s32.totalorder %s13, 3
    %p238 = pnand %p236, %p237
    %p239 = pneg %p238
    // Predicated region
    $region45: #{q_network_forward.5} parent=5 // pred_check
      _
    $region46: #{q_network_forward.5} parent=5 // pred_check_branch
      %241 = sbr.rel (%p238) target = $region48
    $region47: #{q_network_forward.5} parent=5 // pred_region
      %s242 = ssub.s32 %s13, 1
      %p243 = scmp.lt.s32.totalorder %s18, 1
      %s244 = scalar_select %p243, %s18, 1
      %s245 = smul.addr %s244, 21
      %s246 = smul.addr %s245, 4
      %s247 = scalar_lea.vmem %s0, %s246
      %p248 = pneg %p39
      %p249 = pneg %p36
      %p250 = pneg %p60
      %p251 = pneg %p57
      %p252 = pneg %p81
      %p253 = pneg %p78
      %p254 = pneg %p102
      %p255 = pneg %p99
      %p256 = pneg %p123
      %p257 = pneg %p120
      %p258 = pneg %p144
      %p259 = pneg %p141
      %p260 = pneg %p165
      %p261 = pneg %p162
      %p262 = pneg %p191
      %p263 = pneg %p188
      %p264 = scmp.lt.s32.totalorder %s18, 1
      %s265 = scalar_select %p264, %s18, 1
      %s266 = smul.addr %s265, 8
      %s267 = scalar_lea.vmem %s7, %s266
      %p268 = scmp.lt.s32.totalorder %s18, 1
      %s269 = scalar_select %p268, %s18, 1
      %s270 = smul.addr %s269, 21
      %s271 = smul.addr %s270, 4
      %s272 = scalar_lea.vmem %s0, %s271
      %p273 = scmp.lt.s32.totalorder %s18, 1
      %s274 = scalar_select %p273, %s18, 1
      %s275 = smul.addr %s274, 8
      %s276 = scalar_lea.vmem %s7, %s275
      %v278 = vld [vmem:[%s272] sm:$0xff]
      %v279 = vld [vmem:[%s272 + $0x8] sm:$0xff]
      %v280 = vld [vmem:[%s272 + $0x10] sm:$0xff]
      %v281 = vld [vmem:[%s272 + $0x18] sm:$0xff]
      %v282 = vld [vmem:[%s272 + $0x20] sm:$0xff]
      %v283 = vld [vmem:[%s272 + $0x28] sm:$0xff]
      %v284 = vld [vmem:[%s272 + $0x30] sm:$0xff]
      %v285 = vld [vmem:[%s272 + $0x38] sm:$0xff]
      %v286 = vld [vmem:[%s272 + $0x40] sm:$0xff]
      %v287 = vld [vmem:[%s272 + $0x48] sm:$0xff]
      %v288 = vld [vmem:[%s272 + $0x50] sm:$0xf]
      %v289 = vld [vmem:[%s1] sm:$0xf]
      %v290 = vld [vmem:[%s1 + $0x4] sm:$0xf]
      %v291 = vld [vmem:[%s1 + $0x8] sm:$0xf]
      %v292 = vld [vmem:[%s1 + $0xc] sm:$0xf]
      %v293 = vld [vmem:[%s1 + $0x10] sm:$0xf]
      %v294 = vld [vmem:[%s1 + $0x14] sm:$0xf]
      %v295 = vld [vmem:[%s1 + $0x18] sm:$0xf]
      %v296 = vld [vmem:[%s1 + $0x1c] sm:$0xf]
      %v297 = vld [vmem:[%s1 + $0x20] sm:$0xf]
      %v298 = vld [vmem:[%s1 + $0x24] sm:$0xf]
      %v299 = vld [vmem:[%s1 + $0x28] sm:$0xf]
      %v300 = vld [vmem:[%s1 + $0x2c] sm:$0xf]
      %v301 = vld [vmem:[%s1 + $0x30] sm:$0xf]
      %v302 = vld [vmem:[%s1 + $0x34] sm:$0xf]
      %v303 = vld [vmem:[%s1 + $0x38] sm:$0xf]
      %v304 = vld [vmem:[%s1 + $0x3c] sm:$0xf]
      %v305 = vld [vmem:[%s1 + $0x40] sm:$0xf]
      %v306 = vld [vmem:[%s1 + $0x44] sm:$0xf]
      %v307 = vld [vmem:[%s1 + $0x48] sm:$0xf]
      %v308 = vld [vmem:[%s1 + $0x4c] sm:$0xf]
      %v309 = vld [vmem:[%s1 + $0x50] sm:$0xf]
      %v310 = vld [vmem:[%s1 + $0x54] sm:$0xf]
      %v311 = vld [vmem:[%s1 + $0x58] sm:$0xf]
      %v312 = vld [vmem:[%s1 + $0x5c] sm:$0xf]
      %v313 = vld [vmem:[%s1 + $0x60] sm:$0xf]
      %v314 = vld [vmem:[%s1 + $0x64] sm:$0xf]
      %v315 = vld [vmem:[%s1 + $0x68] sm:$0xf]
      %v316 = vld [vmem:[%s1 + $0x6c] sm:$0xf]
      %v317 = vld [vmem:[%s1 + $0x70] sm:$0xf]
      %v318 = vld [vmem:[%s1 + $0x74] sm:$0xf]
      %v319 = vld [vmem:[%s1 + $0x78] sm:$0xf]
      %v320 = vld [vmem:[%s1 + $0x7c] sm:$0xf]
      %v321 = vld [vmem:[%s1 + $0x80] sm:$0xf]
      %v322 = vld [vmem:[%s1 + $0x84] sm:$0xf]
      %v323 = vld [vmem:[%s1 + $0x88] sm:$0xf]
      %v324 = vld [vmem:[%s1 + $0x8c] sm:$0xf]
      %v325 = vld [vmem:[%s1 + $0x90] sm:$0xf]
      %v326 = vld [vmem:[%s1 + $0x94] sm:$0xf]
      %v327 = vld [vmem:[%s1 + $0x98] sm:$0xf]
      %v328 = vld [vmem:[%s1 + $0x9c] sm:$0xf]
      %v329 = vld [vmem:[%s1 + $0xa0] sm:$0xf]
      %v330 = vld [vmem:[%s1 + $0xa4] sm:$0xf]
      %v331 = vld [vmem:[%s1 + $0xa8] sm:$0xf]
      %v332 = vld [vmem:[%s1 + $0xac] sm:$0xf]
      %v333 = vld [vmem:[%s1 + $0xb0] sm:$0xf]
      %v334 = vld [vmem:[%s1 + $0xb4] sm:$0xf]
      %v335 = vld [vmem:[%s1 + $0xb8] sm:$0xf]
      %v336 = vld [vmem:[%s1 + $0xbc] sm:$0xf]
      %v337 = vld [vmem:[%s1 + $0xc0] sm:$0xf]
      %v338 = vld [vmem:[%s1 + $0xc4] sm:$0xf]
      %v339 = vld [vmem:[%s1 + $0xc8] sm:$0xf]
      %v340 = vld [vmem:[%s1 + $0xcc] sm:$0xf]
      %v341 = vld [vmem:[%s1 + $0xd0] sm:$0xf]
      %v342 = vld [vmem:[%s1 + $0xd4] sm:$0xf]
      %v343 = vld [vmem:[%s1 + $0xd8] sm:$0xf]
      %v344 = vld [vmem:[%s1 + $0xdc] sm:$0xf]
      %v345 = vld [vmem:[%s1 + $0xe0] sm:$0xf]
      %v346 = vld [vmem:[%s1 + $0xe4] sm:$0xf]
      %v347 = vld [vmem:[%s1 + $0xe8] sm:$0xf]
      %v348 = vld [vmem:[%s1 + $0xec] sm:$0xf]
      %v349 = vld [vmem:[%s1 + $0xf0] sm:$0xf]
      %v350 = vld [vmem:[%s1 + $0xf4] sm:$0xf]
      %v351 = vld [vmem:[%s1 + $0xf8] sm:$0xf]
      %v352 = vld [vmem:[%s1 + $0xfc] sm:$0xf]
      %v353 = vld [vmem:[%s1 + $0x100] sm:$0xf]
      %v354 = vld [vmem:[%s1 + $0x104] sm:$0xf]
      %v355 = vld [vmem:[%s1 + $0x108] sm:$0xf]
      %v356 = vld [vmem:[%s1 + $0x10c] sm:$0xf]
      %v357 = vld [vmem:[%s1 + $0x110] sm:$0xf]
      %v358 = vld [vmem:[%s1 + $0x114] sm:$0xf]
      %v359 = vld [vmem:[%s1 + $0x118] sm:$0xf]
      %v360 = vld [vmem:[%s1 + $0x11c] sm:$0xf]
      %v361 = vld [vmem:[%s1 + $0x120] sm:$0xf]
      %v362 = vld [vmem:[%s1 + $0x124] sm:$0xf]
      %v363 = vld [vmem:[%s1 + $0x128] sm:$0xf]
      %v364 = vld [vmem:[%s1 + $0x12c] sm:$0xf]
      %v365 = vld [vmem:[%s1 + $0x130] sm:$0xf]
      %v366 = vld [vmem:[%s1 + $0x134] sm:$0xf]
      %v367 = vld [vmem:[%s1 + $0x138] sm:$0xf]
      %v368 = vld [vmem:[%s1 + $0x13c] sm:$0xf]
      %v369 = vld [vmem:[%s1 + $0x140] sm:$0xf]
      %v370 = vld [vmem:[%s1 + $0x144] sm:$0xf]
      %v371 = vld [vmem:[%s1 + $0x148] sm:$0xf]
      %v372 = vld [vmem:[%s1 + $0x14c] sm:$0xf]
      %v373 = vld [vmem:[%s1 + $0x150] sm:$0xf]
      %v374 = vld [vmem:[%s1 + $0x154] sm:$0xf]
      %v375 = vld [vmem:[%s1 + $0x158] sm:$0xf]
      %v376 = vld [vmem:[%s1 + $0x15c] sm:$0xf]
      %v377 = vld [vmem:[%s1 + $0x160] sm:$0xf]
      %v378 = vld [vmem:[%s1 + $0x164] sm:$0xf]
      %v379 = vld [vmem:[%s1 + $0x168] sm:$0xf]
      %v380 = vld [vmem:[%s1 + $0x16c] sm:$0xf]
      %v381 = vld [vmem:[%s1 + $0x170] sm:$0xf]
      %v382 = vld [vmem:[%s1 + $0x174] sm:$0xf]
      %v383 = vld [vmem:[%s1 + $0x178] sm:$0xf]
      %v384 = vld [vmem:[%s1 + $0x17c] sm:$0xf]
      %v385 = vld [vmem:[%s1 + $0x180] sm:$0xf]
      %v386 = vld [vmem:[%s1 + $0x184] sm:$0xf]
      %v387 = vld [vmem:[%s1 + $0x188] sm:$0xf]
      %v388 = vld [vmem:[%s1 + $0x18c] sm:$0xf]
      %v389 = vld [vmem:[%s1 + $0x190] sm:$0xf]
      %v390 = vld [vmem:[%s1 + $0x194] sm:$0xf]
      %v391 = vld [vmem:[%s1 + $0x198] sm:$0xf]
      %v392 = vld [vmem:[%s1 + $0x19c] sm:$0xf]
      %v393 = vld [vmem:[%s1 + $0x1a0] sm:$0xf]
      %v394 = vld [vmem:[%s1 + $0x1a4] sm:$0xf]
      %v395 = vld [vmem:[%s1 + $0x1a8] sm:$0xf]
      %v396 = vld [vmem:[%s1 + $0x1ac] sm:$0xf]
      %v397 = vld [vmem:[%s1 + $0x1b0] sm:$0xf]
      %v398 = vld [vmem:[%s1 + $0x1b4] sm:$0xf]
      %v399 = vld [vmem:[%s1 + $0x1b8] sm:$0xf]
      %v400 = vld [vmem:[%s1 + $0x1bc] sm:$0xf]
      %v401 = vld [vmem:[%s1 + $0x1c0] sm:$0xf]
      %v402 = vld [vmem:[%s1 + $0x1c4] sm:$0xf]
      %v403 = vld [vmem:[%s1 + $0x1c8] sm:$0xf]
      %v404 = vld [vmem:[%s1 + $0x1cc] sm:$0xf]
      %v405 = vld [vmem:[%s1 + $0x1d0] sm:$0xf]
      %v406 = vld [vmem:[%s1 + $0x1d4] sm:$0xf]
      %v407 = vld [vmem:[%s1 + $0x1d8] sm:$0xf]
      %v408 = vld [vmem:[%s1 + $0x1dc] sm:$0xf]
      %v409 = vld [vmem:[%s1 + $0x1e0] sm:$0xf]
      %v410 = vld [vmem:[%s1 + $0x1e4] sm:$0xf]
      %v411 = vld [vmem:[%s1 + $0x1e8] sm:$0xf]
      %v412 = vld [vmem:[%s1 + $0x1ec] sm:$0xf]
      %v413 = vld [vmem:[%s1 + $0x1f0] sm:$0xf]
      %v414 = vld [vmem:[%s1 + $0x1f4] sm:$0xf]
      %v415 = vld [vmem:[%s1 + $0x1f8] sm:$0xf]
      %v416 = vld [vmem:[%s1 + $0x1fc] sm:$0xf]
      %v417 = vld [vmem:[%s1 + $0x200] sm:$0xf]
      %v418 = vld [vmem:[%s1 + $0x204] sm:$0xf]
      %v419 = vld [vmem:[%s1 + $0x208] sm:$0xf]
      %v420 = vld [vmem:[%s1 + $0x20c] sm:$0xf]
      %v421 = vld [vmem:[%s1 + $0x210] sm:$0xf]
      %v422 = vld [vmem:[%s1 + $0x214] sm:$0xf]
      %v423 = vld [vmem:[%s1 + $0x218] sm:$0xf]
      %v424 = vld [vmem:[%s1 + $0x21c] sm:$0xf]
      %v425 = vld [vmem:[%s1 + $0x220] sm:$0xf]
      %v426 = vld [vmem:[%s1 + $0x224] sm:$0xf]
      %v427 = vld [vmem:[%s1 + $0x228] sm:$0xf]
      %v428 = vld [vmem:[%s1 + $0x22c] sm:$0xf]
      %v429 = vld [vmem:[%s1 + $0x230] sm:$0xf]
      %v430 = vld [vmem:[%s1 + $0x234] sm:$0xf]
      %v431 = vld [vmem:[%s1 + $0x238] sm:$0xf]
      %v432 = vld [vmem:[%s1 + $0x23c] sm:$0xf]
      %v433 = vld [vmem:[%s1 + $0x240] sm:$0xf]
      %v434 = vld [vmem:[%s1 + $0x244] sm:$0xf]
      %v435 = vld [vmem:[%s1 + $0x248] sm:$0xf]
      %v436 = vld [vmem:[%s1 + $0x24c] sm:$0xf]
      %v437 = vld [vmem:[%s1 + $0x250] sm:$0xf]
      %v438 = vld [vmem:[%s1 + $0x254] sm:$0xf]
      %v439 = vld [vmem:[%s1 + $0x258] sm:$0xf]
      %v440 = vld [vmem:[%s1 + $0x25c] sm:$0xf]
      %v441 = vld [vmem:[%s1 + $0x260] sm:$0xf]
      %v442 = vld [vmem:[%s1 + $0x264] sm:$0xf]
      %v443 = vld [vmem:[%s1 + $0x268] sm:$0xf]
      %v444 = vld [vmem:[%s1 + $0x26c] sm:$0xf]
      %v445 = vld [vmem:[%s1 + $0x270] sm:$0xf]
      %v446 = vld [vmem:[%s1 + $0x274] sm:$0xf]
      %v447 = vld [vmem:[%s1 + $0x278] sm:$0xf]
      %v448 = vld [vmem:[%s1 + $0x27c] sm:$0xf]
      %v449 = vld [vmem:[%s1 + $0x280] sm:$0xf]
      %v450 = vld [vmem:[%s1 + $0x284] sm:$0xf]
      %v451 = vld [vmem:[%s1 + $0x288] sm:$0xf]
      %v452 = vld [vmem:[%s1 + $0x28c] sm:$0xf]
      %v453 = vld [vmem:[%s1 + $0x290] sm:$0xf]
      %v454 = vld [vmem:[%s1 + $0x294] sm:$0xf]
      %v455 = vld [vmem:[%s1 + $0x298] sm:$0xf]
      %v456 = vld [vmem:[%s1 + $0x29c] sm:$0xf]
      %v457 = vld [vmem:[%s1 + $0x2a0] sm:$0xf]
      %v458 = vld [vmem:[%s1 + $0x2a4] sm:$0xf]
      %v459 = vld [vmem:[%s1 + $0x2a8] sm:$0xf]
      %v460 = vld [vmem:[%s1 + $0x2ac] sm:$0xf]
      %v461 = vld [vmem:[%s1 + $0x2b0] sm:$0xf]
      %v462 = vld [vmem:[%s1 + $0x2b4] sm:$0xf]
      %v463 = vld [vmem:[%s1 + $0x2b8] sm:$0xf]
      %v464 = vld [vmem:[%s1 + $0x2bc] sm:$0xf]
      %v465 = vld [vmem:[%s1 + $0x2c0] sm:$0xf]
      %v466 = vld [vmem:[%s1 + $0x2c4] sm:$0xf]
      %v467 = vld [vmem:[%s1 + $0x2c8] sm:$0xf]
      %v468 = vld [vmem:[%s1 + $0x2cc] sm:$0xf]
      %v469 = vld [vmem:[%s1 + $0x2d0] sm:$0xf]
      %v470 = vld [vmem:[%s1 + $0x2d4] sm:$0xf]
      %v471 = vld [vmem:[%s1 + $0x2d8] sm:$0xf]
      %v472 = vld [vmem:[%s1 + $0x2dc] sm:$0xf]
      %v473 = vld [vmem:[%s1 + $0x2e0] sm:$0xf]
      %v474 = vld [vmem:[%s1 + $0x2e4] sm:$0xf]
      %v475 = vld [vmem:[%s1 + $0x2e8] sm:$0xf]
      %v476 = vld [vmem:[%s1 + $0x2ec] sm:$0xf]
      %v477 = vld [vmem:[%s1 + $0x2f0] sm:$0xf]
      %v478 = vld [vmem:[%s1 + $0x2f4] sm:$0xf]
      %v479 = vld [vmem:[%s1 + $0x2f8] sm:$0xf]
      %v480 = vld [vmem:[%s1 + $0x2fc] sm:$0xf]
      %v481 = vld [vmem:[%s1 + $0x300] sm:$0xf]
      %v482 = vld [vmem:[%s1 + $0x304] sm:$0xf]
      %v483 = vld [vmem:[%s1 + $0x308] sm:$0xf]
      %v484 = vld [vmem:[%s1 + $0x30c] sm:$0xf]
      %v485 = vld [vmem:[%s1 + $0x310] sm:$0xf]
      %v486 = vld [vmem:[%s1 + $0x314] sm:$0xf]
      %v487 = vld [vmem:[%s1 + $0x318] sm:$0xf]
      %v488 = vld [vmem:[%s1 + $0x31c] sm:$0xf]
      %v489 = vld [vmem:[%s1 + $0x320] sm:$0xf]
      %v490 = vld [vmem:[%s1 + $0x324] sm:$0xf]
      %v491 = vld [vmem:[%s1 + $0x328] sm:$0xf]
      %v492 = vld [vmem:[%s1 + $0x32c] sm:$0xf]
      %v493 = vld [vmem:[%s1 + $0x330] sm:$0xf]
      %v494 = vld [vmem:[%s1 + $0x334] sm:$0xf]
      %v495 = vld [vmem:[%s1 + $0x338] sm:$0xf]
      %v496 = vld [vmem:[%s1 + $0x33c] sm:$0xf]
      %v497 = vld [vmem:[%s1 + $0x340] sm:$0xf]
      %v498 = vld [vmem:[%s1 + $0x344] sm:$0xf]
      %v499 = vld [vmem:[%s1 + $0x348] sm:$0xf]
      %v500 = vld [vmem:[%s1 + $0x34c] sm:$0xf]
      %v501 = vld [vmem:[%s1 + $0x350] sm:$0xf]
      %v502 = vld [vmem:[%s1 + $0x354] sm:$0xf]
      %v503 = vld [vmem:[%s1 + $0x358] sm:$0xf]
      %v504 = vld [vmem:[%s1 + $0x35c] sm:$0xf]
      %v505 = vld [vmem:[%s1 + $0x360] sm:$0xf]
      %v506 = vld [vmem:[%s1 + $0x364] sm:$0xf]
      %v507 = vld [vmem:[%s1 + $0x368] sm:$0xf]
      %v508 = vld [vmem:[%s1 + $0x36c] sm:$0xf]
      %v509 = vld [vmem:[%s1 + $0x370] sm:$0xf]
      %v510 = vld [vmem:[%s1 + $0x374] sm:$0xf]
      %v511 = vld [vmem:[%s1 + $0x378] sm:$0xf]
      %v512 = vld [vmem:[%s1 + $0x37c] sm:$0xf]
      %v513 = vld [vmem:[%s1 + $0x380] sm:$0xf]
      %v514 = vld [vmem:[%s1 + $0x384] sm:$0xf]
      %v515 = vld [vmem:[%s1 + $0x388] sm:$0xf]
      %v516 = vld [vmem:[%s1 + $0x38c] sm:$0xf]
      %v517 = vld [vmem:[%s1 + $0x390] sm:$0xf]
      %v518 = vld [vmem:[%s1 + $0x394] sm:$0xf]
      %v519 = vld [vmem:[%s1 + $0x398] sm:$0xf]
      %v520 = vld [vmem:[%s1 + $0x39c] sm:$0xf]
      %v521 = vld [vmem:[%s1 + $0x3a0] sm:$0xf]
      %v522 = vld [vmem:[%s1 + $0x3a4] sm:$0xf]
      %v523 = vld [vmem:[%s1 + $0x3a8] sm:$0xf]
      %v524 = vld [vmem:[%s1 + $0x3ac] sm:$0xf]
      %v525 = vld [vmem:[%s1 + $0x3b0] sm:$0xf]
      %v526 = vld [vmem:[%s1 + $0x3b4] sm:$0xf]
      %v527 = vld [vmem:[%s1 + $0x3b8] sm:$0xf]
      %v528 = vld [vmem:[%s1 + $0x3bc] sm:$0xf]
      %v529 = vld [vmem:[%s1 + $0x3c0] sm:$0xf]
      %v530 = vld [vmem:[%s1 + $0x3c4] sm:$0xf]
      %v531 = vld [vmem:[%s1 + $0x3c8] sm:$0xf]
      %v532 = vld [vmem:[%s1 + $0x3cc] sm:$0xf]
      %v533 = vld [vmem:[%s1 + $0x3d0] sm:$0xf]
      %v534 = vld [vmem:[%s1 + $0x3d4] sm:$0xf]
      %v535 = vld [vmem:[%s1 + $0x3d8] sm:$0xf]
      %v536 = vld [vmem:[%s1 + $0x3dc] sm:$0xf]
      %v537 = vld [vmem:[%s1 + $0x3e0] sm:$0xf]
      %v538 = vld [vmem:[%s1 + $0x3e4] sm:$0xf]
      %v539 = vld [vmem:[%s1 + $0x3e8] sm:$0xf]
      %v540 = vld [vmem:[%s1 + $0x3ec] sm:$0xf]
      %v541 = vld [vmem:[%s1 + $0x3f0] sm:$0xf]
      %v542 = vld [vmem:[%s1 + $0x3f4] sm:$0xf]
      %v543 = vld [vmem:[%s1 + $0x3f8] sm:$0xf]
      %v544 = vld [vmem:[%s1 + $0x3fc] sm:$0xf]
      %v545 = vld [vmem:[%s1 + $0x400] sm:$0xf]
      %v546 = vld [vmem:[%s1 + $0x404] sm:$0xf]
      %v547 = vld [vmem:[%s1 + $0x408] sm:$0xf]
      %v548 = vld [vmem:[%s1 + $0x40c] sm:$0xf]
      %v549 = vld [vmem:[%s1 + $0x410] sm:$0xf]
      %v550 = vld [vmem:[%s1 + $0x414] sm:$0xf]
      %v551 = vld [vmem:[%s1 + $0x418] sm:$0xf]
      %v552 = vld [vmem:[%s1 + $0x41c] sm:$0xf]
      %v553 = vld [vmem:[%s1 + $0x420] sm:$0xf]
      %v554 = vld [vmem:[%s1 + $0x424] sm:$0xf]
      %v555 = vld [vmem:[%s1 + $0x428] sm:$0xf]
      %v556 = vld [vmem:[%s1 + $0x42c] sm:$0xf]
      %v557 = vld [vmem:[%s1 + $0x430] sm:$0xf]
      %v558 = vld [vmem:[%s1 + $0x434] sm:$0xf]
      %v559 = vld [vmem:[%s1 + $0x438] sm:$0xf]
      %v560 = vld [vmem:[%s1 + $0x43c] sm:$0xf]
      %v561 = vld [vmem:[%s1 + $0x440] sm:$0xf]
      %v562 = vld [vmem:[%s1 + $0x444] sm:$0xf]
      %v563 = vld [vmem:[%s1 + $0x448] sm:$0xf]
      %v564 = vld [vmem:[%s1 + $0x44c] sm:$0xf]
      %v565 = vld [vmem:[%s1 + $0x450] sm:$0xf]
      %v566 = vld [vmem:[%s1 + $0x454] sm:$0xf]
      %v567 = vld [vmem:[%s1 + $0x458] sm:$0xf]
      %v568 = vld [vmem:[%s1 + $0x45c] sm:$0xf]
      %v569 = vld [vmem:[%s1 + $0x460] sm:$0xf]
      %v570 = vld [vmem:[%s1 + $0x464] sm:$0xf]
      %v571 = vld [vmem:[%s1 + $0x468] sm:$0xf]
      %v572 = vld [vmem:[%s1 + $0x46c] sm:$0xf]
      %v573 = vld [vmem:[%s1 + $0x470] sm:$0xf]
      %v574 = vld [vmem:[%s1 + $0x474] sm:$0xf]
      %v575 = vld [vmem:[%s1 + $0x478] sm:$0xf]
      %v576 = vld [vmem:[%s1 + $0x47c] sm:$0xf]
      %v577 = vld [vmem:[%s1 + $0x480] sm:$0xf]
      %v578 = vld [vmem:[%s1 + $0x484] sm:$0xf]
      %v579 = vld [vmem:[%s1 + $0x488] sm:$0xf]
      %v580 = vld [vmem:[%s1 + $0x48c] sm:$0xf]
      %v581 = vld [vmem:[%s1 + $0x490] sm:$0xf]
      %v582 = vld [vmem:[%s1 + $0x494] sm:$0xf]
      %v583 = vld [vmem:[%s1 + $0x498] sm:$0xf]
      %v584 = vld [vmem:[%s1 + $0x49c] sm:$0xf]
      %v585 = vld [vmem:[%s1 + $0x4a0] sm:$0xf]
      %v586 = vld [vmem:[%s1 + $0x4a4] sm:$0xf]
      %v587 = vld [vmem:[%s1 + $0x4a8] sm:$0xf]
      %v588 = vld [vmem:[%s1 + $0x4ac] sm:$0xf]
      %v589 = vld [vmem:[%s1 + $0x4b0] sm:$0xf]
      %v590 = vld [vmem:[%s1 + $0x4b4] sm:$0xf]
      %v591 = vld [vmem:[%s1 + $0x4b8] sm:$0xf]
      %v592 = vld [vmem:[%s1 + $0x4bc] sm:$0xf]
      %v593 = vld [vmem:[%s1 + $0x4c0] sm:$0xf]
      %v594 = vld [vmem:[%s1 + $0x4c4] sm:$0xf]
      %v595 = vld [vmem:[%s1 + $0x4c8] sm:$0xf]
      %v596 = vld [vmem:[%s1 + $0x4cc] sm:$0xf]
      %v597 = vld [vmem:[%s1 + $0x4d0] sm:$0xf]
      %v598 = vld [vmem:[%s1 + $0x4d4] sm:$0xf]
      %v599 = vld [vmem:[%s1 + $0x4d8] sm:$0xf]
      %v600 = vld [vmem:[%s1 + $0x4dc] sm:$0xf]
      %v601 = vld [vmem:[%s1 + $0x4e0] sm:$0xf]
      %v602 = vld [vmem:[%s1 + $0x4e4] sm:$0xf]
      %v603 = vld [vmem:[%s1 + $0x4e8] sm:$0xf]
      %v604 = vld [vmem:[%s1 + $0x4ec] sm:$0xf]
      %v605 = vld [vmem:[%s1 + $0x4f0] sm:$0xf]
      %v606 = vld [vmem:[%s1 + $0x4f4] sm:$0xf]
      %v607 = vld [vmem:[%s1 + $0x4f8] sm:$0xf]
      %v608 = vld [vmem:[%s1 + $0x4fc] sm:$0xf]
      %v609 = vld [vmem:[%s1 + $0x500] sm:$0xf]
      %v610 = vld [vmem:[%s1 + $0x504] sm:$0xf]
      %v611 = vld [vmem:[%s1 + $0x508] sm:$0xf]
      %v612 = vld [vmem:[%s1 + $0x50c] sm:$0xf]
      %v613 = vld [vmem:[%s2] sm:$0x1]
      %v615 = vlaneseq
      %v616 = vshrl.u32 %v615, 7
      %v617 = vsub.s32 0, %v616
      %v618 = vrot.slane %v613, %v617
      %v631 = vunpack.c.l.b16 %v278
      %v632 = vunpack.c.h.b16 %v278
      %v633 = vunpack.c.l.b16 %v279
      %v634 = vunpack.c.h.b16 %v279
      %v635 = vunpack.c.l.b16 %v280
      %v636 = vunpack.c.h.b16 %v280
      %v637 = vunpack.c.l.b16 %v281
      %v638 = vunpack.c.h.b16 %v281
      %v639 = vunpack.c.l.b16 %v282
      %v640 = vunpack.c.h.b16 %v282
      %v641 = vunpack.c.l.b16 %v283
      %v642 = vunpack.c.h.b16 %v283
      %v643 = vunpack.c.l.b16 %v284
      %v644 = vunpack.c.h.b16 %v284
      %v645 = vunpack.c.l.b16 %v285
      %v646 = vunpack.c.h.b16 %v285
      %v647 = vunpack.c.l.b16 %v286
      %v648 = vunpack.c.h.b16 %v286
      %v649 = vunpack.c.l.b16 %v287
      %v650 = vunpack.c.h.b16 %v287
      %v651 = vunpack.c.l.b16 %v288
      %v652 = vpack.c.b16 %v631, %v631
      %v653 = vpack.c.b16 %v632, %v632
      %v654 = vpack.c.b16 %v633, %v633
      %v655 = vpack.c.b16 %v634, %v634
      %v656 = vpack.c.b16 %v635, %v635
      %v657 = vpack.c.b16 %v636, %v636
      %v658 = vpack.c.b16 %v637, %v637
      %v659 = vpack.c.b16 %v638, %v638
      %v660 = vpack.c.b16 %v639, %v639
      %v661 = vpack.c.b16 %v640, %v640
      %v662 = vpack.c.b16 %v641, %v641
      %v663 = vpack.c.b16 %v642, %v642
      %v664 = vpack.c.b16 %v643, %v643
      %v665 = vpack.c.b16 %v644, %v644
      %v666 = vpack.c.b16 %v645, %v645
      %v667 = vpack.c.b16 %v646, %v646
      %v668 = vpack.c.b16 %v647, %v647
      %v669 = vpack.c.b16 %v648, %v648
      %v670 = vpack.c.b16 %v649, %v649
      %v671 = vpack.c.b16 %v650, %v650
      %v672 = vpack.c.b16 %v651, %v651
      %v1017 = vunpack.c.l.b16 %v289
      %v1018 = vunpack.c.l.b16 %v290
      %v1019 = vunpack.c.l.b16 %v291
      %v1020 = vunpack.c.l.b16 %v292
      %v1021 = vunpack.c.l.b16 %v293
      %v1022 = vunpack.c.l.b16 %v294
      %v1023 = vunpack.c.l.b16 %v295
      %v1024 = vunpack.c.l.b16 %v296
      %v1025 = vunpack.c.l.b16 %v297
      %v1026 = vunpack.c.l.b16 %v298
      %v1027 = vunpack.c.l.b16 %v299
      %v1028 = vunpack.c.l.b16 %v300
      %v1029 = vunpack.c.l.b16 %v301
      %v1030 = vunpack.c.l.b16 %v302
      %v1031 = vunpack.c.l.b16 %v303
      %v1032 = vunpack.c.l.b16 %v304
      %v1033 = vunpack.c.l.b16 %v305
      %v1034 = vunpack.c.l.b16 %v306
      %v1035 = vunpack.c.l.b16 %v307
      %v1036 = vunpack.c.l.b16 %v308
      %v1037 = vunpack.c.l.b16 %v309
      %v1038 = vunpack.c.l.b16 %v310
      %v1039 = vunpack.c.l.b16 %v311
      %v1040 = vunpack.c.l.b16 %v312
      %v1041 = vunpack.c.l.b16 %v313
      %v1042 = vunpack.c.l.b16 %v314
      %v1043 = vunpack.c.l.b16 %v315
      %v1044 = vunpack.c.l.b16 %v316
      %v1045 = vunpack.c.l.b16 %v317
      %v1046 = vunpack.c.l.b16 %v318
      %v1047 = vunpack.c.l.b16 %v319
      %v1048 = vunpack.c.l.b16 %v320
      %v1049 = vunpack.c.l.b16 %v321
      %v1050 = vunpack.c.l.b16 %v322
      %v1051 = vunpack.c.l.b16 %v323
      %v1052 = vunpack.c.l.b16 %v324
      %v1053 = vunpack.c.l.b16 %v325
      %v1054 = vunpack.c.l.b16 %v326
      %v1055 = vunpack.c.l.b16 %v327
      %v1056 = vunpack.c.l.b16 %v328
      %v1057 = vunpack.c.l.b16 %v329
      %v1058 = vunpack.c.l.b16 %v330
      %v1059 = vunpack.c.l.b16 %v331
      %v1060 = vunpack.c.l.b16 %v332
      %v1061 = vunpack.c.l.b16 %v333
      %v1062 = vunpack.c.l.b16 %v334
      %v1063 = vunpack.c.l.b16 %v335
      %v1064 = vunpack.c.l.b16 %v336
      %v1065 = vunpack.c.l.b16 %v337
      %v1066 = vunpack.c.l.b16 %v338
      %v1067 = vunpack.c.l.b16 %v339
      %v1068 = vunpack.c.l.b16 %v340
      %v1069 = vunpack.c.l.b16 %v341
      %v1070 = vunpack.c.l.b16 %v342
      %v1071 = vunpack.c.l.b16 %v343
      %v1072 = vunpack.c.l.b16 %v344
      %v1073 = vunpack.c.l.b16 %v345
      %v1074 = vunpack.c.l.b16 %v346
      %v1075 = vunpack.c.l.b16 %v347
      %v1076 = vunpack.c.l.b16 %v348
      %v1077 = vunpack.c.l.b16 %v349
      %v1078 = vunpack.c.l.b16 %v350
      %v1079 = vunpack.c.l.b16 %v351
      %v1080 = vunpack.c.l.b16 %v352
      %v1081 = vunpack.c.l.b16 %v353
      %v1082 = vunpack.c.l.b16 %v354
      %v1083 = vunpack.c.l.b16 %v355
      %v1084 = vunpack.c.l.b16 %v356
      %v1085 = vunpack.c.l.b16 %v357
      %v1086 = vunpack.c.l.b16 %v358
      %v1087 = vunpack.c.l.b16 %v359
      %v1088 = vunpack.c.l.b16 %v360
      %v1089 = vunpack.c.l.b16 %v361
      %v1090 = vunpack.c.l.b16 %v362
      %v1091 = vunpack.c.l.b16 %v363
      %v1092 = vunpack.c.l.b16 %v364
      %v1093 = vunpack.c.l.b16 %v365
      %v1094 = vunpack.c.l.b16 %v366
      %v1095 = vunpack.c.l.b16 %v367
      %v1096 = vunpack.c.l.b16 %v368
      %v1097 = vunpack.c.l.b16 %v369
      %v1098 = vunpack.c.l.b16 %v370
      %v1099 = vunpack.c.l.b16 %v371
      %v1100 = vunpack.c.l.b16 %v372
      %v1101 = vunpack.c.l.b16 %v373
      %v1102 = vunpack.c.l.b16 %v374
      %v1103 = vunpack.c.l.b16 %v375
      %v1104 = vunpack.c.l.b16 %v376
      %v1105 = vunpack.c.l.b16 %v377
      %v1106 = vunpack.c.l.b16 %v378
      %v1107 = vunpack.c.l.b16 %v379
      %v1108 = vunpack.c.l.b16 %v380
      %v1109 = vunpack.c.l.b16 %v381
      %v1110 = vunpack.c.l.b16 %v382
      %v1111 = vunpack.c.l.b16 %v383
      %v1112 = vunpack.c.l.b16 %v384
      %v1113 = vunpack.c.l.b16 %v385
      %v1114 = vunpack.c.l.b16 %v386
      %v1115 = vunpack.c.l.b16 %v387
      %v1116 = vunpack.c.l.b16 %v388
      %v1117 = vunpack.c.l.b16 %v389
      %v1118 = vunpack.c.l.b16 %v390
      %v1119 = vunpack.c.l.b16 %v391
      %v1120 = vunpack.c.l.b16 %v392
      %v1121 = vunpack.c.l.b16 %v393
      %v1122 = vunpack.c.l.b16 %v394
      %v1123 = vunpack.c.l.b16 %v395
      %v1124 = vunpack.c.l.b16 %v396
      %v1125 = vunpack.c.l.b16 %v397
      %v1126 = vunpack.c.l.b16 %v398
      %v1127 = vunpack.c.l.b16 %v399
      %v1128 = vunpack.c.l.b16 %v400
      %v1129 = vunpack.c.l.b16 %v401
      %v1130 = vunpack.c.l.b16 %v402
      %v1131 = vunpack.c.l.b16 %v403
      %v1132 = vunpack.c.l.b16 %v404
      %v1133 = vunpack.c.l.b16 %v405
      %v1134 = vunpack.c.l.b16 %v406
      %v1135 = vunpack.c.l.b16 %v407
      %v1136 = vunpack.c.l.b16 %v408
      %v1137 = vunpack.c.l.b16 %v409
      %v1138 = vunpack.c.l.b16 %v410
      %v1139 = vunpack.c.l.b16 %v411
      %v1140 = vunpack.c.l.b16 %v412
      %v1141 = vunpack.c.l.b16 %v413
      %v1142 = vunpack.c.l.b16 %v414
      %v1143 = vunpack.c.l.b16 %v415
      %v1144 = vunpack.c.l.b16 %v416
      %v1145 = vunpack.c.l.b16 %v417
      %v1146 = vunpack.c.l.b16 %v418
      %v1147 = vunpack.c.l.b16 %v419
      %v1148 = vunpack.c.l.b16 %v420
      %v1149 = vunpack.c.l.b16 %v421
      %v1150 = vunpack.c.l.b16 %v422
      %v1151 = vunpack.c.l.b16 %v423
      %v1152 = vunpack.c.l.b16 %v424
      %v1153 = vunpack.c.l.b16 %v425
      %v1154 = vunpack.c.l.b16 %v426
      %v1155 = vunpack.c.l.b16 %v427
      %v1156 = vunpack.c.l.b16 %v428
      %v1157 = vunpack.c.l.b16 %v429
      %v1158 = vunpack.c.l.b16 %v430
      %v1159 = vunpack.c.l.b16 %v431
      %v1160 = vunpack.c.l.b16 %v432
      %v1161 = vunpack.c.l.b16 %v433
      %v1162 = vunpack.c.l.b16 %v434
      %v1163 = vunpack.c.l.b16 %v435
      %v1164 = vunpack.c.l.b16 %v436
      %v1165 = vunpack.c.l.b16 %v437
      %v1166 = vunpack.c.l.b16 %v438
      %v1167 = vunpack.c.l.b16 %v439
      %v1168 = vunpack.c.l.b16 %v440
      %v1169 = vunpack.c.l.b16 %v441
      %v1170 = vunpack.c.l.b16 %v442
      %v1171 = vunpack.c.l.b16 %v443
      %v1172 = vunpack.c.l.b16 %v444
      %v1173 = vunpack.c.l.b16 %v445
      %v1174 = vunpack.c.l.b16 %v446
      %v1175 = vunpack.c.l.b16 %v447
      %v1176 = vunpack.c.l.b16 %v448
      %v1177 = vunpack.c.l.b16 %v449
      %v1178 = vunpack.c.l.b16 %v450
      %v1179 = vunpack.c.l.b16 %v451
      %v1180 = vunpack.c.l.b16 %v452
      %v1181 = vunpack.c.l.b16 %v453
      %v1182 = vunpack.c.l.b16 %v454
      %v1183 = vunpack.c.l.b16 %v455
      %v1184 = vunpack.c.l.b16 %v456
      %v1185 = vunpack.c.l.b16 %v457
      %v1186 = vunpack.c.l.b16 %v458
      %v1187 = vunpack.c.l.b16 %v459
      %v1188 = vunpack.c.l.b16 %v460
      %v1189 = vunpack.c.l.b16 %v461
      %v1190 = vunpack.c.l.b16 %v462
      %v1191 = vunpack.c.l.b16 %v463
      %v1192 = vunpack.c.l.b16 %v464
      %v1193 = vunpack.c.l.b16 %v465
      %v1194 = vunpack.c.l.b16 %v466
      %v1195 = vunpack.c.l.b16 %v467
      %v1196 = vunpack.c.l.b16 %v468
      %v1197 = vunpack.c.l.b16 %v469
      %v1198 = vunpack.c.l.b16 %v470
      %v1199 = vunpack.c.l.b16 %v471
      %v1200 = vunpack.c.l.b16 %v472
      %v1201 = vunpack.c.l.b16 %v473
      %v1202 = vunpack.c.l.b16 %v474
      %v1203 = vunpack.c.l.b16 %v475
      %v1204 = vunpack.c.l.b16 %v476
      %v1205 = vunpack.c.l.b16 %v477
      %v1206 = vunpack.c.l.b16 %v478
      %v1207 = vunpack.c.l.b16 %v479
      %v1208 = vunpack.c.l.b16 %v480
      %v1209 = vunpack.c.l.b16 %v481
      %v1210 = vunpack.c.l.b16 %v482
      %v1211 = vunpack.c.l.b16 %v483
      %v1212 = vunpack.c.l.b16 %v484
      %v1213 = vunpack.c.l.b16 %v485
      %v1214 = vunpack.c.l.b16 %v486
      %v1215 = vunpack.c.l.b16 %v487
      %v1216 = vunpack.c.l.b16 %v488
      %v1217 = vunpack.c.l.b16 %v489
      %v1218 = vunpack.c.l.b16 %v490
      %v1219 = vunpack.c.l.b16 %v491
      %v1220 = vunpack.c.l.b16 %v492
      %v1221 = vunpack.c.l.b16 %v493
      %v1222 = vunpack.c.l.b16 %v494
      %v1223 = vunpack.c.l.b16 %v495
      %v1224 = vunpack.c.l.b16 %v496
      %v1225 = vunpack.c.l.b16 %v497
      %v1226 = vunpack.c.l.b16 %v498
      %v1227 = vunpack.c.l.b16 %v499
      %v1228 = vunpack.c.l.b16 %v500
      %v1229 = vunpack.c.l.b16 %v501
      %v1230 = vunpack.c.l.b16 %v502
      %v1231 = vunpack.c.l.b16 %v503
      %v1232 = vunpack.c.l.b16 %v504
      %v1233 = vunpack.c.l.b16 %v505
      %v1234 = vunpack.c.l.b16 %v506
      %v1235 = vunpack.c.l.b16 %v507
      %v1236 = vunpack.c.l.b16 %v508
      %v1237 = vunpack.c.l.b16 %v509
      %v1238 = vunpack.c.l.b16 %v510
      %v1239 = vunpack.c.l.b16 %v511
      %v1240 = vunpack.c.l.b16 %v512
      %v1241 = vunpack.c.l.b16 %v513
      %v1242 = vunpack.c.l.b16 %v514
      %v1243 = vunpack.c.l.b16 %v515
      %v1244 = vunpack.c.l.b16 %v516
      %v1245 = vunpack.c.l.b16 %v517
      %v1246 = vunpack.c.l.b16 %v518
      %v1247 = vunpack.c.l.b16 %v519
      %v1248 = vunpack.c.l.b16 %v520
      %v1249 = vunpack.c.l.b16 %v521
      %v1250 = vunpack.c.l.b16 %v522
      %v1251 = vunpack.c.l.b16 %v523
      %v1252 = vunpack.c.l.b16 %v524
      %v1253 = vunpack.c.l.b16 %v525
      %v1254 = vunpack.c.l.b16 %v526
      %v1255 = vunpack.c.l.b16 %v527
      %v1256 = vunpack.c.l.b16 %v528
      %v1257 = vunpack.c.l.b16 %v529
      %v1258 = vunpack.c.l.b16 %v530
      %v1259 = vunpack.c.l.b16 %v531
      %v1260 = vunpack.c.l.b16 %v532
      %v1261 = vunpack.c.l.b16 %v533
      %v1262 = vunpack.c.l.b16 %v534
      %v1263 = vunpack.c.l.b16 %v535
      %v1264 = vunpack.c.l.b16 %v536
      %v1265 = vunpack.c.l.b16 %v537
      %v1266 = vunpack.c.l.b16 %v538
      %v1267 = vunpack.c.l.b16 %v539
      %v1268 = vunpack.c.l.b16 %v540
      %v1269 = vunpack.c.l.b16 %v541
      %v1270 = vunpack.c.l.b16 %v542
      %v1271 = vunpack.c.l.b16 %v543
      %v1272 = vunpack.c.l.b16 %v544
      %v1273 = vunpack.c.l.b16 %v545
      %v1274 = vunpack.c.l.b16 %v546
      %v1275 = vunpack.c.l.b16 %v547
      %v1276 = vunpack.c.l.b16 %v548
      %v1277 = vunpack.c.l.b16 %v549
      %v1278 = vunpack.c.l.b16 %v550
      %v1279 = vunpack.c.l.b16 %v551
      %v1280 = vunpack.c.l.b16 %v552
      %v1281 = vunpack.c.l.b16 %v553
      %v1282 = vunpack.c.l.b16 %v554
      %v1283 = vunpack.c.l.b16 %v555
      %v1284 = vunpack.c.l.b16 %v556
      %v1285 = vunpack.c.l.b16 %v557
      %v1286 = vunpack.c.l.b16 %v558
      %v1287 = vunpack.c.l.b16 %v559
      %v1288 = vunpack.c.l.b16 %v560
      %v1289 = vunpack.c.l.b16 %v561
      %v1290 = vunpack.c.l.b16 %v562
      %v1291 = vunpack.c.l.b16 %v563
      %v1292 = vunpack.c.l.b16 %v564
      %v1293 = vunpack.c.l.b16 %v565
      %v1294 = vunpack.c.l.b16 %v566
      %v1295 = vunpack.c.l.b16 %v567
      %v1296 = vunpack.c.l.b16 %v568
      %v1297 = vunpack.c.l.b16 %v569
      %v1298 = vunpack.c.l.b16 %v570
      %v1299 = vunpack.c.l.b16 %v571
      %v1300 = vunpack.c.l.b16 %v572
      %v1301 = vunpack.c.l.b16 %v573
      %v1302 = vunpack.c.l.b16 %v574
      %v1303 = vunpack.c.l.b16 %v575
      %v1304 = vunpack.c.l.b16 %v576
      %v1305 = vunpack.c.l.b16 %v577
      %v1306 = vunpack.c.l.b16 %v578
      %v1307 = vunpack.c.l.b16 %v579
      %v1308 = vunpack.c.l.b16 %v580
      %v1309 = vunpack.c.l.b16 %v581
      %v1310 = vunpack.c.l.b16 %v582
      %v1311 = vunpack.c.l.b16 %v583
      %v1312 = vunpack.c.l.b16 %v584
      %v1313 = vunpack.c.l.b16 %v585
      %v1314 = vunpack.c.l.b16 %v586
      %v1315 = vunpack.c.l.b16 %v587
      %v1316 = vunpack.c.l.b16 %v588
      %v1317 = vunpack.c.l.b16 %v589
      %v1318 = vunpack.c.l.b16 %v590
      %v1319 = vunpack.c.l.b16 %v591
      %v1320 = vunpack.c.l.b16 %v592
      %v1321 = vunpack.c.l.b16 %v593
      %v1322 = vunpack.c.l.b16 %v594
      %v1323 = vunpack.c.l.b16 %v595
      %v1324 = vunpack.c.l.b16 %v596
      %v1325 = vunpack.c.l.b16 %v597
      %v1326 = vunpack.c.l.b16 %v598
      %v1327 = vunpack.c.l.b16 %v599
      %v1328 = vunpack.c.l.b16 %v600
      %v1329 = vunpack.c.l.b16 %v601
      %v1330 = vunpack.c.l.b16 %v602
      %v1331 = vunpack.c.l.b16 %v603
      %v1332 = vunpack.c.l.b16 %v604
      %v1333 = vunpack.c.l.b16 %v605
      %v1334 = vunpack.c.l.b16 %v606
      %v1335 = vunpack.c.l.b16 %v607
      %v1336 = vunpack.c.l.b16 %v608
      %v1337 = vunpack.c.l.b16 %v609
      %v1338 = vunpack.c.l.b16 %v610
      %v1339 = vunpack.c.l.b16 %v611
      %v1340 = vunpack.c.l.b16 %v612
      %v1341 = vpack.c.b16 %v1018, %v1017
      %v1342 = vpack.c.b16 %v1020, %v1019
      %v1343 = vpack.c.b16 %v1022, %v1021
      %v1344 = vpack.c.b16 %v1024, %v1023
      %v1345 = vpack.c.b16 %v1026, %v1025
      %v1346 = vpack.c.b16 %v1028, %v1027
      %v1347 = vpack.c.b16 %v1030, %v1029
      %v1348 = vpack.c.b16 %v1032, %v1031
      %v1349 = vpack.c.b16 %v1034, %v1033
      %v1350 = vpack.c.b16 %v1036, %v1035
      %v1351 = vpack.c.b16 %v1038, %v1037
      %v1352 = vpack.c.b16 %v1040, %v1039
      %v1353 = vpack.c.b16 %v1042, %v1041
      %v1354 = vpack.c.b16 %v1044, %v1043
      %v1355 = vpack.c.b16 %v1046, %v1045
      %v1356 = vpack.c.b16 %v1048, %v1047
      %v1357 = vpack.c.b16 %v1050, %v1049
      %v1358 = vpack.c.b16 %v1052, %v1051
      %v1359 = vpack.c.b16 %v1054, %v1053
      %v1360 = vpack.c.b16 %v1056, %v1055
      %v1361 = vpack.c.b16 %v1058, %v1057
      %v1362 = vpack.c.b16 %v1060, %v1059
      %v1363 = vpack.c.b16 %v1062, %v1061
      %v1364 = vpack.c.b16 %v1064, %v1063
      %v1365 = vpack.c.b16 %v1066, %v1065
      %v1366 = vpack.c.b16 %v1068, %v1067
      %v1367 = vpack.c.b16 %v1070, %v1069
      %v1368 = vpack.c.b16 %v1072, %v1071
      %v1369 = vpack.c.b16 %v1074, %v1073
      %v1370 = vpack.c.b16 %v1076, %v1075
      %v1371 = vpack.c.b16 %v1078, %v1077
      %v1372 = vpack.c.b16 %v1080, %v1079
      %v1373 = vpack.c.b16 %v1082, %v1081
      %v1374 = vpack.c.b16 %v1084, %v1083
      %v1375 = vpack.c.b16 %v1086, %v1085
      %v1376 = vpack.c.b16 %v1088, %v1087
      %v1377 = vpack.c.b16 %v1090, %v1089
      %v1378 = vpack.c.b16 %v1092, %v1091
      %v1379 = vpack.c.b16 %v1094, %v1093
      %v1380 = vpack.c.b16 %v1096, %v1095
      %v1381 = vpack.c.b16 %v1098, %v1097
      %v1382 = vpack.c.b16 %v1100, %v1099
      %v1383 = vpack.c.b16 %v1102, %v1101
      %v1384 = vpack.c.b16 %v1104, %v1103
      %v1385 = vpack.c.b16 %v1106, %v1105
      %v1386 = vpack.c.b16 %v1108, %v1107
      %v1387 = vpack.c.b16 %v1110, %v1109
      %v1388 = vpack.c.b16 %v1112, %v1111
      %v1389 = vpack.c.b16 %v1114, %v1113
      %v1390 = vpack.c.b16 %v1116, %v1115
      %v1391 = vpack.c.b16 %v1118, %v1117
      %v1392 = vpack.c.b16 %v1120, %v1119
      %v1393 = vpack.c.b16 %v1122, %v1121
      %v1394 = vpack.c.b16 %v1124, %v1123
      %v1395 = vpack.c.b16 %v1126, %v1125
      %v1396 = vpack.c.b16 %v1128, %v1127
      %v1397 = vpack.c.b16 %v1130, %v1129
      %v1398 = vpack.c.b16 %v1132, %v1131
      %v1399 = vpack.c.b16 %v1134, %v1133
      %v1400 = vpack.c.b16 %v1136, %v1135
      %v1401 = vpack.c.b16 %v1138, %v1137
      %v1402 = vpack.c.b16 %v1140, %v1139
      %v1403 = vpack.c.b16 %v1142, %v1141
      %v1404 = vpack.c.b16 %v1144, %v1143
      %v1405 = vpack.c.b16 %v1146, %v1145
      %v1406 = vpack.c.b16 %v1148, %v1147
      %v1407 = vpack.c.b16 %v1150, %v1149
      %v1408 = vpack.c.b16 %v1152, %v1151
      %v1409 = vpack.c.b16 %v1154, %v1153
      %v1410 = vpack.c.b16 %v1156, %v1155
      %v1411 = vpack.c.b16 %v1158, %v1157
      %v1412 = vpack.c.b16 %v1160, %v1159
      %v1413 = vpack.c.b16 %v1162, %v1161
      %v1414 = vpack.c.b16 %v1164, %v1163
      %v1415 = vpack.c.b16 %v1166, %v1165
      %v1416 = vpack.c.b16 %v1168, %v1167
      %v1417 = vpack.c.b16 %v1170, %v1169
      %v1418 = vpack.c.b16 %v1172, %v1171
      %v1419 = vpack.c.b16 %v1174, %v1173
      %v1420 = vpack.c.b16 %v1176, %v1175
      %v1421 = vpack.c.b16 %v1178, %v1177
      %v1422 = vpack.c.b16 %v1180, %v1179
      %v1423 = vpack.c.b16 %v1182, %v1181
      %v1424 = vpack.c.b16 %v1184, %v1183
      %v1425 = vpack.c.b16 %v1186, %v1185
      %v1426 = vpack.c.b16 %v1188, %v1187
      %v1427 = vpack.c.b16 %v1190, %v1189
      %v1428 = vpack.c.b16 %v1192, %v1191
      %v1429 = vpack.c.b16 %v1194, %v1193
      %v1430 = vpack.c.b16 %v1196, %v1195
      %v1431 = vpack.c.b16 %v1198, %v1197
      %v1432 = vpack.c.b16 %v1200, %v1199
      %v1433 = vpack.c.b16 %v1202, %v1201
      %v1434 = vpack.c.b16 %v1204, %v1203
      %v1435 = vpack.c.b16 %v1206, %v1205
      %v1436 = vpack.c.b16 %v1208, %v1207
      %v1437 = vpack.c.b16 %v1210, %v1209
      %v1438 = vpack.c.b16 %v1212, %v1211
      %v1439 = vpack.c.b16 %v1214, %v1213
      %v1440 = vpack.c.b16 %v1216, %v1215
      %v1441 = vpack.c.b16 %v1218, %v1217
      %v1442 = vpack.c.b16 %v1220, %v1219
      %v1443 = vpack.c.b16 %v1222, %v1221
      %v1444 = vpack.c.b16 %v1224, %v1223
      %v1445 = vpack.c.b16 %v1226, %v1225
      %v1446 = vpack.c.b16 %v1228, %v1227
      %v1447 = vpack.c.b16 %v1230, %v1229
      %v1448 = vpack.c.b16 %v1232, %v1231
      %v1449 = vpack.c.b16 %v1234, %v1233
      %v1450 = vpack.c.b16 %v1236, %v1235
      %v1451 = vpack.c.b16 %v1238, %v1237
      %v1452 = vpack.c.b16 %v1240, %v1239
      %v1453 = vpack.c.b16 %v1242, %v1241
      %v1454 = vpack.c.b16 %v1244, %v1243
      %v1455 = vpack.c.b16 %v1246, %v1245
      %v1456 = vpack.c.b16 %v1248, %v1247
      %v1457 = vpack.c.b16 %v1250, %v1249
      %v1458 = vpack.c.b16 %v1252, %v1251
      %v1459 = vpack.c.b16 %v1254, %v1253
      %v1460 = vpack.c.b16 %v1256, %v1255
      %v1461 = vpack.c.b16 %v1258, %v1257
      %v1462 = vpack.c.b16 %v1260, %v1259
      %v1463 = vpack.c.b16 %v1262, %v1261
      %v1464 = vpack.c.b16 %v1264, %v1263
      %v1465 = vpack.c.b16 %v1266, %v1265
      %v1466 = vpack.c.b16 %v1268, %v1267
      %v1467 = vpack.c.b16 %v1270, %v1269
      %v1468 = vpack.c.b16 %v1272, %v1271
      %v1469 = vpack.c.b16 %v1274, %v1273
      %v1470 = vpack.c.b16 %v1276, %v1275
      %v1471 = vpack.c.b16 %v1278, %v1277
      %v1472 = vpack.c.b16 %v1280, %v1279
      %v1473 = vpack.c.b16 %v1282, %v1281
      %v1474 = vpack.c.b16 %v1284, %v1283
      %v1475 = vpack.c.b16 %v1286, %v1285
      %v1476 = vpack.c.b16 %v1288, %v1287
      %v1477 = vpack.c.b16 %v1290, %v1289
      %v1478 = vpack.c.b16 %v1292, %v1291
      %v1479 = vpack.c.b16 %v1294, %v1293
      %v1480 = vpack.c.b16 %v1296, %v1295
      %v1481 = vpack.c.b16 %v1298, %v1297
      %v1482 = vpack.c.b16 %v1300, %v1299
      %v1483 = vpack.c.b16 %v1302, %v1301
      %v1484 = vpack.c.b16 %v1304, %v1303
      %v1485 = vpack.c.b16 %v1306, %v1305
      %v1486 = vpack.c.b16 %v1308, %v1307
      %v1487 = vpack.c.b16 %v1310, %v1309
      %v1488 = vpack.c.b16 %v1312, %v1311
      %v1489 = vpack.c.b16 %v1314, %v1313
      %v1490 = vpack.c.b16 %v1316, %v1315
      %v1491 = vpack.c.b16 %v1318, %v1317
      %v1492 = vpack.c.b16 %v1320, %v1319
      %v1493 = vpack.c.b16 %v1322, %v1321
      %v1494 = vpack.c.b16 %v1324, %v1323
      %v1495 = vpack.c.b16 %v1326, %v1325
      %v1496 = vpack.c.b16 %v1328, %v1327
      %v1497 = vpack.c.b16 %v1330, %v1329
      %v1498 = vpack.c.b16 %v1332, %v1331
      %v1499 = vpack.c.b16 %v1334, %v1333
      %v1500 = vpack.c.b16 %v1336, %v1335
      %v1501 = vpack.c.b16 %v1338, %v1337
      %v1502 = vpack.c.b16 %v1340, %v1339
      %vm1665 = vcmask 261120
      %v1667 = vsel %vm1665, %v672, 0
      %1669 = vmatprep.subr.bf16.mxu0 0
      %1670 = vmatpush1.bf16.msra.mxu0 %v1341
      %1671 = vmatprep.subr.bf16.mxu0 0
      %1672 = vmatpush1.bf16.msra.mxu0 %v1342
      %1673 = vmatprep.subr.bf16.mxu0 0
      %1674 = vmatpush1.bf16.msra.mxu0 %v1343
      %1675 = vmatprep.subr.bf16.mxu0 0
      %1676 = vmatpush1.bf16.msra.mxu0 %v1344
      %1677 = vmatprep.subr.bf16.mxu0 0
      %1678 = vmatpush1.bf16.msra.mxu0 %v1345
      %1679 = vmatprep.subr.bf16.mxu0 0
      %1680 = vmatpush1.bf16.msra.mxu0 %v1346
      %1681 = vmatprep.subr.bf16.mxu0 0
      %1682 = vmatpush1.bf16.msra.mxu0 %v1347
      %1683 = vmatprep.subr.bf16.mxu0 0
      %1684 = vmatpush1.bf16.msra.mxu0 %v1348
      %1685 = vmatprep.subr.bf16.mxu0 0
      %1686 = vmatpush1.bf16.msra.mxu0 %v1349
      %1687 = vmatprep.subr.bf16.mxu0 0
      %1688 = vmatpush1.bf16.msra.mxu0 %v1350
      %1689 = vmatprep.subr.bf16.mxu0 0
      %1690 = vmatpush1.bf16.msra.mxu0 %v1351
      %1691 = vmatprep.subr.bf16.mxu0 0
      %1692 = vmatpush1.bf16.msra.mxu0 %v1352
      %1693 = vmatprep.subr.bf16.mxu0 0
      %1694 = vmatpush1.bf16.msra.mxu0 %v1353
      %1695 = vmatprep.subr.bf16.mxu0 0
      %1696 = vmatpush1.bf16.msra.mxu0 %v1354
      %1697 = vmatprep.subr.bf16.mxu0 0
      %1698 = vmatpush1.bf16.msra.mxu0 %v1355
      %1699 = vmatprep.subr.bf16.mxu0 0
      %1700 = vmatpush1.bf16.msra.mxu0 %v1356
      %1701 = vmatprep.mubr.bf16.mxu0 %v653
      %1702 = vmatmul.mubr.bf16.gmra.mrb[0].mxu0 %v652
      %v1703 = vpop.f32.mrb[0].mxu0
      %v1704 = vadd.f32 %v618, %v1703
      %v1705 = vpop.f32.mrb[0].mxu0
      %v1706 = vpop.f32.mrb[0].mxu0
      %v1707 = vpop.f32.mrb[0].mxu0
      %1708 = vdwg.mxu0
      %1709 = vmatprep.subr.bf16.mxu0 0
      %1710 = vmatpush1.bf16.msra.mxu0 %v1357
      %1711 = vmatprep.subr.bf16.mxu0 0
      %1712 = vmatpush1.bf16.msra.mxu0 %v1358
      %1713 = vmatprep.subr.bf16.mxu0 0
      %1714 = vmatpush1.bf16.msra.mxu0 %v1359
      %1715 = vmatprep.subr.bf16.mxu0 0
      %1716 = vmatpush1.bf16.msra.mxu0 %v1360
      %1717 = vmatprep.subr.bf16.mxu0 0
      %1718 = vmatpush1.bf16.msra.mxu0 %v1361
      %1719 = vmatprep.subr.bf16.mxu0 0
      %1720 = vmatpush1.bf16.msra.mxu0 %v1362
      %1721 = vmatprep.subr.bf16.mxu0 0
      %1722 = vmatpush1.bf16.msra.mxu0 %v1363
      %1723 = vmatprep.subr.bf16.mxu0 0
      %1724 = vmatpush1.bf16.msra.mxu0 %v1364
      %1725 = vmatprep.subr.bf16.mxu0 0
      %1726 = vmatpush1.bf16.msra.mxu0 %v1365
      %1727 = vmatprep.subr.bf16.mxu0 0
      %1728 = vmatpush1.bf16.msra.mxu0 %v1366
      %1729 = vmatprep.subr.bf16.mxu0 0
      %1730 = vmatpush1.bf16.msra.mxu0 %v1367
      %1731 = vmatprep.subr.bf16.mxu0 0
      %1732 = vmatpush1.bf16.msra.mxu0 %v1368
      %1733 = vmatprep.subr.bf16.mxu0 0
      %1734 = vmatpush1.bf16.msra.mxu0 %v1369
      %1735 = vmatprep.subr.bf16.mxu0 0
      %1736 = vmatpush1.bf16.msra.mxu0 %v1370
      %1737 = vmatprep.subr.bf16.mxu0 0
      %1738 = vmatpush1.bf16.msra.mxu0 %v1371
      %1739 = vmatprep.subr.bf16.mxu0 0
      %1740 = vmatpush1.bf16.msra.mxu0 %v1372
      %1741 = vmatprep.mubr.bf16.mxu0 %v655
      %1742 = vmatmul.mubr.bf16.gmra.mrb[0].mxu0 %v654
      %v1743 = vpop.f32.mrb[0].mxu0
      %v1744 = vadd.f32 %v1704, %v1743
      %v1745 = vpop.f32.mrb[0].mxu0
      %v1746 = vpop.f32.mrb[0].mxu0
      %v1747 = vpop.f32.mrb[0].mxu0
      %1748 = vdwg.mxu0
      %1749 = vmatprep.subr.bf16.mxu0 0
      %1750 = vmatpush1.bf16.msra.mxu0 %v1373
      %1751 = vmatprep.subr.bf16.mxu0 0
      %1752 = vmatpush1.bf16.msra.mxu0 %v1374
      %1753 = vmatprep.subr.bf16.mxu0 0
      %1754 = vmatpush1.bf16.msra.mxu0 %v1375
      %1755 = vmatprep.subr.bf16.mxu0 0
      %1756 = vmatpush1.bf16.msra.mxu0 %v1376
      %1757 = vmatprep.subr.bf16.mxu0 0
      %1758 = vmatpush1.bf16.msra.mxu0 %v1377
      %1759 = vmatprep.subr.bf16.mxu0 0
      %1760 = vmatpush1.bf16.msra.mxu0 %v1378
      %1761 = vmatprep.subr.bf16.mxu0 0
      %1762 = vmatpush1.bf16.msra.mxu0 %v1379
      %1763 = vmatprep.subr.bf16.mxu0 0
      %1764 = vmatpush1.bf16.msra.mxu0 %v1380
      %1765 = vmatprep.subr.bf16.mxu0 0
      %1766 = vmatpush1.bf16.msra.mxu0 %v1381
      %1767 = vmatprep.subr.bf16.mxu0 0
      %1768 = vmatpush1.bf16.msra.mxu0 %v1382
      %1769 = vmatprep.subr.bf16.mxu0 0
      %1770 = vmatpush1.bf16.msra.mxu0 %v1383
      %1771 = vmatprep.subr.bf16.mxu0 0
      %1772 = vmatpush1.bf16.msra.mxu0 %v1384
      %1773 = vmatprep.subr.bf16.mxu0 0
      %1774 = vmatpush1.bf16.msra.mxu0 %v1385
      %1775 = vmatprep.subr.bf16.mxu0 0
      %1776 = vmatpush1.bf16.msra.mxu0 %v1386
      %1777 = vmatprep.subr.bf16.mxu0 0
      %1778 = vmatpush1.bf16.msra.mxu0 %v1387
      %1779 = vmatprep.subr.bf16.mxu0 0
      %1780 = vmatpush1.bf16.msra.mxu0 %v1388
      %1781 = vmatprep.mubr.bf16.mxu0 %v657
      %1782 = vmatmul.mubr.bf16.gmra.mrb[0].mxu0 %v656
      %v1783 = vpop.f32.mrb[0].mxu0
      %v1784 = vadd.f32 %v1744, %v1783
      %v1785 = vpop.f32.mrb[0].mxu0
      %v1786 = vpop.f32.mrb[0].mxu0
      %v1787 = vpop.f32.mrb[0].mxu0
      %1788 = vdwg.mxu0
      %1789 = vmatprep.subr.bf16.mxu0 0
      %1790 = vmatpush1.bf16.msra.mxu0 %v1389
      %1791 = vmatprep.subr.bf16.mxu0 0
      %1792 = vmatpush1.bf16.msra.mxu0 %v1390
      %1793 = vmatprep.subr.bf16.mxu0 0
      %1794 = vmatpush1.bf16.msra.mxu0 %v1391
      %1795 = vmatprep.subr.bf16.mxu0 0
      %1796 = vmatpush1.bf16.msra.mxu0 %v1392
      %1797 = vmatprep.subr.bf16.mxu0 0
      %1798 = vmatpush1.bf16.msra.mxu0 %v1393
      %1799 = vmatprep.subr.bf16.mxu0 0
      %1800 = vmatpush1.bf16.msra.mxu0 %v1394
      %1801 = vmatprep.subr.bf16.mxu0 0
      %1802 = vmatpush1.bf16.msra.mxu0 %v1395
      %1803 = vmatprep.subr.bf16.mxu0 0
      %1804 = vmatpush1.bf16.msra.mxu0 %v1396
      %1805 = vmatprep.subr.bf16.mxu0 0
      %1806 = vmatpush1.bf16.msra.mxu0 %v1397
      %1807 = vmatprep.subr.bf16.mxu0 0
      %1808 = vmatpush1.bf16.msra.mxu0 %v1398
      %1809 = vmatprep.subr.bf16.mxu0 0
      %1810 = vmatpush1.bf16.msra.mxu0 %v1399
      %1811 = vmatprep.subr.bf16.mxu0 0
      %1812 = vmatpush1.bf16.msra.mxu0 %v1400
      %1813 = vmatprep.subr.bf16.mxu0 0
      %1814 = vmatpush1.bf16.msra.mxu0 %v1401
      %1815 = vmatprep.subr.bf16.mxu0 0
      %1816 = vmatpush1.bf16.msra.mxu0 %v1402
      %1817 = vmatprep.subr.bf16.mxu0 0
      %1818 = vmatpush1.bf16.msra.mxu0 %v1403
      %1819 = vmatprep.subr.bf16.mxu0 0
      %1820 = vmatpush1.bf16.msra.mxu0 %v1404
      %1821 = vmatprep.mubr.bf16.mxu0 %v659
      %1822 = vmatmul.mubr.bf16.gmra.mrb[0].mxu0 %v658
      %v1823 = vpop.f32.mrb[0].mxu0
      %v1824 = vadd.f32 %v1784, %v1823
      %v1825 = vpop.f32.mrb[0].mxu0
      %v1826 = vpop.f32.mrb[0].mxu0
      %v1827 = vpop.f32.mrb[0].mxu0
      %1828 = vdwg.mxu0
      %1829 = vmatprep.subr.bf16.mxu0 0
      %1830 = vmatpush1.bf16.msra.mxu0 %v1405
      %1831 = vmatprep.subr.bf16.mxu0 0
      %1832 = vmatpush1.bf16.msra.mxu0 %v1406
      %1833 = vmatprep.subr.bf16.mxu0 0
      %1834 = vmatpush1.bf16.msra.mxu0 %v1407
      %1835 = vmatprep.subr.bf16.mxu0 0
      %1836 = vmatpush1.bf16.msra.mxu0 %v1408
      %1837 = vmatprep.subr.bf16.mxu0 0
      %1838 = vmatpush1.bf16.msra.mxu0 %v1409
      %1839 = vmatprep.subr.bf16.mxu0 0
      %1840 = vmatpush1.bf16.msra.mxu0 %v1410
      %1841 = vmatprep.subr.bf16.mxu0 0
      %1842 = vmatpush1.bf16.msra.mxu0 %v1411
      %1843 = vmatprep.subr.bf16.mxu0 0
      %1844 = vmatpush1.bf16.msra.mxu0 %v1412
      %1845 = vmatprep.subr.bf16.mxu0 0
      %1846 = vmatpush1.bf16.msra.mxu0 %v1413
      %1847 = vmatprep.subr.bf16.mxu0 0
      %1848 = vmatpush1.bf16.msra.mxu0 %v1414
      %1849 = vmatprep.subr.bf16.mxu0 0
      %1850 = vmatpush1.bf16.msra.mxu0 %v1415
      %1851 = vmatprep.subr.bf16.mxu0 0
      %1852 = vmatpush1.bf16.msra.mxu0 %v1416
      %1853 = vmatprep.subr.bf16.mxu0 0
      %1854 = vmatpush1.bf16.msra.mxu0 %v1417
      %1855 = vmatprep.subr.bf16.mxu0 0
      %1856 = vmatpush1.bf16.msra.mxu0 %v1418
      %1857 = vmatprep.subr.bf16.mxu0 0
      %1858 = vmatpush1.bf16.msra.mxu0 %v1419
      %1859 = vmatprep.subr.bf16.mxu0 0
      %1860 = vmatpush1.bf16.msra.mxu0 %v1420
      %1861 = vmatprep.mubr.bf16.mxu0 %v661
      %1862 = vmatmul.mubr.bf16.gmra.mrb[0].mxu0 %v660
      %v1863 = vpop.f32.mrb[0].mxu0
      %v1864 = vadd.f32 %v1824, %v1863
      %v1865 = vpop.f32.mrb[0].mxu0
      %v1866 = vpop.f32.mrb[0].mxu0
      %v1867 = vpop.f32.mrb[0].mxu0
      %1868 = vdwg.mxu0
      %1869 = vmatprep.subr.bf16.mxu0 0
      %1870 = vmatpush1.bf16.msra.mxu0 %v1421
      %1871 = vmatprep.subr.bf16.mxu0 0
      %1872 = vmatpush1.bf16.msra.mxu0 %v1422
      %1873 = vmatprep.subr.bf16.mxu0 0
      %1874 = vmatpush1.bf16.msra.mxu0 %v1423
      %1875 = vmatprep.subr.bf16.mxu0 0
      %1876 = vmatpush1.bf16.msra.mxu0 %v1424
      %1877 = vmatprep.subr.bf16.mxu0 0
      %1878 = vmatpush1.bf16.msra.mxu0 %v1425
      %1879 = vmatprep.subr.bf16.mxu0 0
      %1880 = vmatpush1.bf16.msra.mxu0 %v1426
      %1881 = vmatprep.subr.bf16.mxu0 0
      %1882 = vmatpush1.bf16.msra.mxu0 %v1427
      %1883 = vmatprep.subr.bf16.mxu0 0
      %1884 = vmatpush1.bf16.msra.mxu0 %v1428
      %1885 = vmatprep.subr.bf16.mxu0 0
      %1886 = vmatpush1.bf16.msra.mxu0 %v1429
      %1887 = vmatprep.subr.bf16.mxu0 0
      %1888 = vmatpush1.bf16.msra.mxu0 %v1430
      %1889 = vmatprep.subr.bf16.mxu0 0
      %1890 = vmatpush1.bf16.msra.mxu0 %v1431
      %1891 = vmatprep.subr.bf16.mxu0 0
      %1892 = vmatpush1.bf16.msra.mxu0 %v1432
      %1893 = vmatprep.subr.bf16.mxu0 0
      %1894 = vmatpush1.bf16.msra.mxu0 %v1433
      %1895 = vmatprep.subr.bf16.mxu0 0
      %1896 = vmatpush1.bf16.msra.mxu0 %v1434
      %1897 = vmatprep.subr.bf16.mxu0 0
      %1898 = vmatpush1.bf16.msra.mxu0 %v1435
      %1899 = vmatprep.subr.bf16.mxu0 0
      %1900 = vmatpush1.bf16.msra.mxu0 %v1436
      %1901 = vmatprep.mubr.bf16.mxu0 %v663
      %1902 = vmatmul.mubr.bf16.gmra.mrb[0].mxu0 %v662
      %v1903 = vpop.f32.mrb[0].mxu0
      %v1904 = vadd.f32 %v1864, %v1903
      %v1905 = vpop.f32.mrb[0].mxu0
      %v1906 = vpop.f32.mrb[0].mxu0
      %v1907 = vpop.f32.mrb[0].mxu0
      %1908 = vdwg.mxu0
      %1909 = vmatprep.subr.bf16.mxu0 0
      %1910 = vmatpush1.bf16.msra.mxu0 %v1437
      %1911 = vmatprep.subr.bf16.mxu0 0
      %1912 = vmatpush1.bf16.msra.mxu0 %v1438
      %1913 = vmatprep.subr.bf16.mxu0 0
      %1914 = vmatpush1.bf16.msra.mxu0 %v1439
      %1915 = vmatprep.subr.bf16.mxu0 0
      %1916 = vmatpush1.bf16.msra.mxu0 %v1440
      %1917 = vmatprep.subr.bf16.mxu0 0
      %1918 = vmatpush1.bf16.msra.mxu0 %v1441
      %1919 = vmatprep.subr.bf16.mxu0 0
      %1920 = vmatpush1.bf16.msra.mxu0 %v1442
      %1921 = vmatprep.subr.bf16.mxu0 0
      %1922 = vmatpush1.bf16.msra.mxu0 %v1443
      %1923 = vmatprep.subr.bf16.mxu0 0
      %1924 = vmatpush1.bf16.msra.mxu0 %v1444
      %1925 = vmatprep.subr.bf16.mxu0 0
      %1926 = vmatpush1.bf16.msra.mxu0 %v1445
      %1927 = vmatprep.subr.bf16.mxu0 0
      %1928 = vmatpush1.bf16.msra.mxu0 %v1446
      %1929 = vmatprep.subr.bf16.mxu0 0
      %1930 = vmatpush1.bf16.msra.mxu0 %v1447
      %1931 = vmatprep.subr.bf16.mxu0 0
      %1932 = vmatpush1.bf16.msra.mxu0 %v1448
      %1933 = vmatprep.subr.bf16.mxu0 0
      %1934 = vmatpush1.bf16.msra.mxu0 %v1449
      %1935 = vmatprep.subr.bf16.mxu0 0
      %1936 = vmatpush1.bf16.msra.mxu0 %v1450
      %1937 = vmatprep.subr.bf16.mxu0 0
      %1938 = vmatpush1.bf16.msra.mxu0 %v1451
      %1939 = vmatprep.subr.bf16.mxu0 0
      %1940 = vmatpush1.bf16.msra.mxu0 %v1452
      %1941 = vmatprep.mubr.bf16.mxu0 %v665
      %1942 = vmatmul.mubr.bf16.gmra.mrb[0].mxu0 %v664
      %v1943 = vpop.f32.mrb[0].mxu0
      %v1944 = vadd.f32 %v1904, %v1943
      %v1945 = vpop.f32.mrb[0].mxu0
      %v1946 = vpop.f32.mrb[0].mxu0
      %v1947 = vpop.f32.mrb[0].mxu0
      %1948 = vdwg.mxu0
      %1949 = vmatprep.subr.bf16.mxu0 0
      %1950 = vmatpush1.bf16.msra.mxu0 %v1453
      %1951 = vmatprep.subr.bf16.mxu0 0
      %1952 = vmatpush1.bf16.msra.mxu0 %v1454
      %1953 = vmatprep.subr.bf16.mxu0 0
      %1954 = vmatpush1.bf16.msra.mxu0 %v1455
      %1955 = vmatprep.subr.bf16.mxu0 0
      %1956 = vmatpush1.bf16.msra.mxu0 %v1456
      %1957 = vmatprep.subr.bf16.mxu0 0
      %1958 = vmatpush1.bf16.msra.mxu0 %v1457
      %1959 = vmatprep.subr.bf16.mxu0 0
      %1960 = vmatpush1.bf16.msra.mxu0 %v1458
      %1961 = vmatprep.subr.bf16.mxu0 0
      %1962 = vmatpush1.bf16.msra.mxu0 %v1459
      %1963 = vmatprep.subr.bf16.mxu0 0
      %1964 = vmatpush1.bf16.msra.mxu0 %v1460
      %1965 = vmatprep.subr.bf16.mxu0 0
      %1966 = vmatpush1.bf16.msra.mxu0 %v1461
      %1967 = vmatprep.subr.bf16.mxu0 0
      %1968 = vmatpush1.bf16.msra.mxu0 %v1462
      %1969 = vmatprep.subr.bf16.mxu0 0
      %1970 = vmatpush1.bf16.msra.mxu0 %v1463
      %1971 = vmatprep.subr.bf16.mxu0 0
      %1972 = vmatpush1.bf16.msra.mxu0 %v1464
      %1973 = vmatprep.subr.bf16.mxu0 0
      %1974 = vmatpush1.bf16.msra.mxu0 %v1465
      %1975 = vmatprep.subr.bf16.mxu0 0
      %1976 = vmatpush1.bf16.msra.mxu0 %v1466
      %1977 = vmatprep.subr.bf16.mxu0 0
      %1978 = vmatpush1.bf16.msra.mxu0 %v1467
      %1979 = vmatprep.subr.bf16.mxu0 0
      %1980 = vmatpush1.bf16.msra.mxu0 %v1468
      %1981 = vmatprep.mubr.bf16.mxu0 %v667
      %1982 = vmatmul.mubr.bf16.gmra.mrb[0].mxu0 %v666
      %v1983 = vpop.f32.mrb[0].mxu0
      %v1984 = vadd.f32 %v1944, %v1983
      %v1985 = vpop.f32.mrb[0].mxu0
      %v1986 = vpop.f32.mrb[0].mxu0
      %v1987 = vpop.f32.mrb[0].mxu0
      %1988 = vdwg.mxu0
      %1989 = vmatprep.subr.bf16.mxu0 0
      %1990 = vmatpush1.bf16.msra.mxu0 %v1469
      %1991 = vmatprep.subr.bf16.mxu0 0
      %1992 = vmatpush1.bf16.msra.mxu0 %v1470
      %1993 = vmatprep.subr.bf16.mxu0 0
      %1994 = vmatpush1.bf16.msra.mxu0 %v1471
      %1995 = vmatprep.subr.bf16.mxu0 0
      %1996 = vmatpush1.bf16.msra.mxu0 %v1472
      %1997 = vmatprep.subr.bf16.mxu0 0
      %1998 = vmatpush1.bf16.msra.mxu0 %v1473
      %1999 = vmatprep.subr.bf16.mxu0 0
      %2000 = vmatpush1.bf16.msra.mxu0 %v1474
      %2001 = vmatprep.subr.bf16.mxu0 0
      %2002 = vmatpush1.bf16.msra.mxu0 %v1475
      %2003 = vmatprep.subr.bf16.mxu0 0
      %2004 = vmatpush1.bf16.msra.mxu0 %v1476
      %2005 = vmatprep.subr.bf16.mxu0 0
      %2006 = vmatpush1.bf16.msra.mxu0 %v1477
      %2007 = vmatprep.subr.bf16.mxu0 0
      %2008 = vmatpush1.bf16.msra.mxu0 %v1478
      %2009 = vmatprep.subr.bf16.mxu0 0
      %2010 = vmatpush1.bf16.msra.mxu0 %v1479
      %2011 = vmatprep.subr.bf16.mxu0 0
      %2012 = vmatpush1.bf16.msra.mxu0 %v1480
      %2013 = vmatprep.subr.bf16.mxu0 0
      %2014 = vmatpush1.bf16.msra.mxu0 %v1481
      %2015 = vmatprep.subr.bf16.mxu0 0
      %2016 = vmatpush1.bf16.msra.mxu0 %v1482
      %2017 = vmatprep.subr.bf16.mxu0 0
      %2018 = vmatpush1.bf16.msra.mxu0 %v1483
      %2019 = vmatprep.subr.bf16.mxu0 0
      %2020 = vmatpush1.bf16.msra.mxu0 %v1484
      %2021 = vmatprep.mubr.bf16.mxu0 %v669
      %2022 = vmatmul.mubr.bf16.gmra.mrb[0].mxu0 %v668
      %v2023 = vpop.f32.mrb[0].mxu0
      %v2024 = vadd.f32 %v1984, %v2023
      %v2025 = vpop.f32.mrb[0].mxu0
      %v2026 = vpop.f32.mrb[0].mxu0
      %v2027 = vpop.f32.mrb[0].mxu0
      %2028 = vdwg.mxu0
      %2029 = vmatprep.subr.bf16.mxu0 0
      %2030 = vmatpush1.bf16.msra.mxu0 %v1485
      %2031 = vmatprep.subr.bf16.mxu0 0
      %2032 = vmatpush1.bf16.msra.mxu0 %v1486
      %2033 = vmatprep.subr.bf16.mxu0 0
      %2034 = vmatpush1.bf16.msra.mxu0 %v1487
      %2035 = vmatprep.subr.bf16.mxu0 0
      %2036 = vmatpush1.bf16.msra.mxu0 %v1488
      %2037 = vmatprep.subr.bf16.mxu0 0
      %2038 = vmatpush1.bf16.msra.mxu0 %v1489
      %2039 = vmatprep.subr.bf16.mxu0 0
      %2040 = vmatpush1.bf16.msra.mxu0 %v1490
      %2041 = vmatprep.subr.bf16.mxu0 0
      %2042 = vmatpush1.bf16.msra.mxu0 %v1491
      %2043 = vmatprep.subr.bf16.mxu0 0
      %2044 = vmatpush1.bf16.msra.mxu0 %v1492
      %2045 = vmatprep.subr.bf16.mxu0 0
      %2046 = vmatpush1.bf16.msra.mxu0 %v1493
      %2047 = vmatprep.subr.bf16.mxu0 0
      %2048 = vmatpush1.bf16.msra.mxu0 %v1494
      %2049 = vmatprep.subr.bf16.mxu0 0
      %2050 = vmatpush1.bf16.msra.mxu0 %v1495
      %2051 = vmatprep.subr.bf16.mxu0 0
      %2052 = vmatpush1.bf16.msra.mxu0 %v1496
      %2053 = vmatprep.subr.bf16.mxu0 0
      %2054 = vmatpush1.bf16.msra.mxu0 %v1497
      %2055 = vmatprep.subr.bf16.mxu0 0
      %2056 = vmatpush1.bf16.msra.mxu0 %v1498
      %2057 = vmatprep.subr.bf16.mxu0 0
      %2058 = vmatpush1.bf16.msra.mxu0 %v1499
      %2059 = vmatprep.subr.bf16.mxu0 0
      %2060 = vmatpush1.bf16.msra.mxu0 %v1500
      %2061 = vmatprep.mubr.bf16.mxu0 %v671
      %2062 = vmatmul.mubr.bf16.gmra.mrb[0].mxu0 %v670
      %v2063 = vpop.f32.mrb[0].mxu0
      %v2064 = vadd.f32 %v2024, %v2063
      %v2065 = vpop.f32.mrb[0].mxu0
      %v2066 = vpop.f32.mrb[0].mxu0
      %v2067 = vpop.f32.mrb[0].mxu0
      %2068 = vdwg.mxu0
      %2069 = vmatprep.subr.bf16.mxu0 0
      %2070 = vmatpush1.bf16.msra.mxu0 %v1501
      %2071 = vmatprep.subr.bf16.mxu0 0
      %2072 = vmatpush1.bf16.msra.mxu0 %v1502
      %2073 = vmatprep.subr.bf16.mxu0 0
      %2074 = vmatpush1.bf16.msra.mxu0 0
      %2075 = vmatprep.subr.bf16.mxu0 0
      %2076 = vmatpush1.bf16.msra.mxu0 0
      %2077 = vmatprep.subr.bf16.mxu0 0
      %2078 = vmatpush1.bf16.msra.mxu0 0
      %2079 = vmatprep.subr.bf16.mxu0 0
      %2080 = vmatpush1.bf16.msra.mxu0 0
      %2081 = vmatprep.subr.bf16.mxu0 0
      %2082 = vmatpush1.bf16.msra.mxu0 0
      %2083 = vmatprep.subr.bf16.mxu0 0
      %2084 = vmatpush1.bf16.msra.mxu0 0
      %2085 = vmatprep.subr.bf16.mxu0 0
      %2086 = vmatpush1.bf16.msra.mxu0 0
      %2087 = vmatprep.subr.bf16.mxu0 0
      %2088 = vmatpush1.bf16.msra.mxu0 0
      %2089 = vmatprep.subr.bf16.mxu0 0
      %2090 = vmatpush1.bf16.msra.mxu0 0
      %2091 = vmatprep.subr.bf16.mxu0 0
      %2092 = vmatpush1.bf16.msra.mxu0 0
      %2093 = vmatprep.subr.bf16.mxu0 0
      %2094 = vmatpush1.bf16.msra.mxu0 0
      %2095 = vmatprep.subr.bf16.mxu0 0
      %2096 = vmatpush1.bf16.msra.mxu0 0
      %2097 = vmatprep.subr.bf16.mxu0 0
      %2098 = vmatpush1.bf16.msra.mxu0 0
      %2099 = vmatprep.subr.bf16.mxu0 0
      %2100 = vmatpush1.bf16.msra.mxu0 0
      %2101 = vmatprep.mubr.bf16.mxu0 0
      %2102 = vmatmul.mubr.bf16.gmra.mrb[0].mxu0 %v1667
      %v2103 = vpop.f32.mrb[0].mxu0
      %v2104 = vadd.f32 %v2064, %v2103
      %v2105 = vpop.f32.mrb[0].mxu0
      %v2106 = vpop.f32.mrb[0].mxu0
      %v2107 = vpop.f32.mrb[0].mxu0
      %2108 = vdwg.mxu0
      %v2109 = vmax.f32 %v2104, 0.0
      %v2110 = vpack.c.bf16 %v2109, %v2109
      %v2111 = vld [vmem:[%s3] sm:$0xf]
      %v2112 = vld [vmem:[%s3 + $0x4] sm:$0xf]
      %v2113 = vld [vmem:[%s3 + $0x8] sm:$0xf]
      %v2114 = vld [vmem:[%s3 + $0xc] sm:$0xf]
      %v2115 = vld [vmem:[%s3 + $0x10] sm:$0xf]
      %v2116 = vld [vmem:[%s3 + $0x14] sm:$0xf]
      %v2117 = vld [vmem:[%s3 + $0x18] sm:$0xf]
      %v2118 = vld [vmem:[%s3 + $0x1c] sm:$0xf]
      %v2119 = vld [vmem:[%s4] sm:$0x1]
      %v2121 = vlaneseq
      %v2122 = vshrl.u32 %v2121, 7
      %v2123 = vsub.s32 0, %v2122
      %v2124 = vrot.slane %v2119, %v2123
      %v2134 = vunpack.c.l.b16 %v2111
      %v2135 = vunpack.c.l.b16 %v2112
      %v2136 = vunpack.c.l.b16 %v2113
      %v2137 = vunpack.c.l.b16 %v2114
      %v2138 = vunpack.c.l.b16 %v2115
      %v2139 = vunpack.c.l.b16 %v2116
      %v2140 = vunpack.c.l.b16 %v2117
      %v2141 = vunpack.c.l.b16 %v2118
      %v2142 = vpack.c.b16 %v2135, %v2134
      %v2143 = vpack.c.b16 %v2137, %v2136
      %v2144 = vpack.c.b16 %v2139, %v2138
      %v2145 = vpack.c.b16 %v2141, %v2140
      %vm2150 = vcmask 523264
      %v2152 = vsel %vm2150, %v2110, 0
      %2154 = vmatprep.subr.bf16.mxu0 0
      %2155 = vmatpush1.bf16.msra.mxu0 %v2142
      %2156 = vmatprep.subr.bf16.mxu0 0
      %2157 = vmatpush1.bf16.msra.mxu0 %v2143
      %2158 = vmatprep.subr.bf16.mxu0 0
      %2159 = vmatpush1.bf16.msra.mxu0 %v2144
      %2160 = vmatprep.subr.bf16.mxu0 0
      %2161 = vmatpush1.bf16.msra.mxu0 %v2145
      %2162 = vmatprep.subr.bf16.mxu0 0
      %2163 = vmatpush1.bf16.msra.mxu0 0
      %2164 = vmatprep.subr.bf16.mxu0 0
      %2165 = vmatpush1.bf16.msra.mxu0 0
      %2166 = vmatprep.subr.bf16.mxu0 0
      %2167 = vmatpush1.bf16.msra.mxu0 0
      %2168 = vmatprep.subr.bf16.mxu0 0
      %2169 = vmatpush1.bf16.msra.mxu0 0
      %2170 = vmatprep.subr.bf16.mxu0 0
      %2171 = vmatpush1.bf16.msra.mxu0 0
      %2172 = vmatprep.subr.bf16.mxu0 0
      %2173 = vmatpush1.bf16.msra.mxu0 0
      %2174 = vmatprep.subr.bf16.mxu0 0
      %2175 = vmatpush1.bf16.msra.mxu0 0
      %2176 = vmatprep.subr.bf16.mxu0 0
      %2177 = vmatpush1.bf16.msra.mxu0 0
      %2178 = vmatprep.subr.bf16.mxu0 0
      %2179 = vmatpush1.bf16.msra.mxu0 0
      %2180 = vmatprep.subr.bf16.mxu0 0
      %2181 = vmatpush1.bf16.msra.mxu0 0
      %2182 = vmatprep.subr.bf16.mxu0 0
      %2183 = vmatpush1.bf16.msra.mxu0 0
      %2184 = vmatprep.subr.bf16.mxu0 0
      %2185 = vmatpush1.bf16.msra.mxu0 0
      %2186 = vmatprep.mubr.bf16.mxu0 0
      %2187 = vmatmul.mubr.bf16.gmra.mrb[0].mxu0 %v2152
      %v2188 = vpop.f32.mrb[0].mxu0
      %v2189 = vadd.f32 %v2124, %v2188
      %v2190 = vpop.f32.mrb[0].mxu0
      %v2191 = vpop.f32.mrb[0].mxu0
      %v2192 = vpop.f32.mrb[0].mxu0
      %2193 = vdwg.mxu0
      %v2194 = vmax.f32 %v2189, 0.0
      %v2195 = vpack.c.bf16 %v2194, %v2194
      %v2196 = vld [vmem:[%s5] sm:$0xf]
      %v2197 = vld [vmem:[%s5 + $0x4] sm:$0xf]
      %v2198 = vld [vmem:[%s5 + $0x8] sm:$0xf]
      %v2199 = vld [vmem:[%s5 + $0xc] sm:$0xf]
      %v2200 = vld [vmem:[%s6] sm:$0x1]
      %v2202 = vlaneseq
      %v2203 = vshrl.u32 %v2202, 7
      %v2204 = vsub.s32 0, %v2203
      %v2205 = vrot.slane %v2200, %v2204
      %v2211 = vunpack.c.l.b16 %v2196
      %v2212 = vunpack.c.l.b16 %v2197
      %v2213 = vunpack.c.l.b16 %v2198
      %v2214 = vunpack.c.l.b16 %v2199
      %v2215 = vpack.c.b16 %v2212, %v2211
      %v2216 = vpack.c.b16 %v2214, %v2213
      %v2220 = vsel %vm1665, %v2195, 0
      %2222 = vmatprep.subr.bf16.mxu0 0
      %2223 = vmatpush1.bf16.msra.mxu0 %v2215
      %2224 = vmatprep.subr.bf16.mxu0 0
      %2225 = vmatpush1.bf16.msra.mxu0 %v2216
      %2226 = vmatprep.subr.bf16.mxu0 0
      %2227 = vmatpush1.bf16.msra.mxu0 0
      %2228 = vmatprep.subr.bf16.mxu0 0
      %2229 = vmatpush1.bf16.msra.mxu0 0
      %2230 = vmatprep.subr.bf16.mxu0 0
      %2231 = vmatpush1.bf16.msra.mxu0 0
      %2232 = vmatprep.subr.bf16.mxu0 0
      %2233 = vmatpush1.bf16.msra.mxu0 0
      %2234 = vmatprep.subr.bf16.mxu0 0
      %2235 = vmatpush1.bf16.msra.mxu0 0
      %2236 = vmatprep.subr.bf16.mxu0 0
      %2237 = vmatpush1.bf16.msra.mxu0 0
      %2238 = vmatprep.subr.bf16.mxu0 0
      %2239 = vmatpush1.bf16.msra.mxu0 0
      %2240 = vmatprep.subr.bf16.mxu0 0
      %2241 = vmatpush1.bf16.msra.mxu0 0
      %2242 = vmatprep.subr.bf16.mxu0 0
      %2243 = vmatpush1.bf16.msra.mxu0 0
      %2244 = vmatprep.subr.bf16.mxu0 0
      %2245 = vmatpush1.bf16.msra.mxu0 0
      %2246 = vmatprep.subr.bf16.mxu0 0
      %2247 = vmatpush1.bf16.msra.mxu0 0
      %2248 = vmatprep.subr.bf16.mxu0 0
      %2249 = vmatpush1.bf16.msra.mxu0 0
      %2250 = vmatprep.subr.bf16.mxu0 0
      %2251 = vmatpush1.bf16.msra.mxu0 0
      %2252 = vmatprep.subr.bf16.mxu0 0
      %2253 = vmatpush1.bf16.msra.mxu0 0
      %2254 = vmatprep.mubr.bf16.mxu0 0
      %2255 = vmatmul.mubr.bf16.gmra.mrb[0].mxu0 %v2220
      %v2256 = vpop.f32.mrb[0].mxu0
      %v2257 = vadd.f32 %v2205, %v2256
      %v2258 = vpop.f32.mrb[0].mxu0
      %v2259 = vpop.f32.mrb[0].mxu0
      %v2260 = vpop.f32.mrb[0].mxu0
      %2261 = vdwg.mxu0
      %vm2262 = vcmask 39936
      %2263 = vst.msk [vmem:[%s276] sm:$0xff] %vm2262, %v2257
      %p2264 = scmp.lt.s32.totalorder %s18, 1
      %s2265 = scalar_select %p2264, %s18, 1
      %s2266 = smul.addr %s2265, 8
      %s2267 = scalar_lea.vmem %s7, %s2266
      // Predicated region
      $region49: #{q_network_forward.5} parent=47 // pred_check
        %p2268 = pneg %p188
      $region50: #{q_network_forward.5} parent=47 // pred_check_branch
        %2270 = sbr.rel (%p2268) target = $region52
      $region51: #{q_network_forward.5} parent=47 // pred_region
        _
      $region52: #{q_network_forward.5} parent=47 // pred_fallthru
        _
    $region48: #{q_network_forward.5} parent=5 // pred_fallthru
      _
    %p2271 = scmp.le.s32.totalorder 2, %s13
    // Predicated region
    $region53: #{q_network_forward.5} parent=5 // pred_check
      %p2272 = pneg %p2271
    $region54: #{q_network_forward.5} parent=5 // pred_check_branch
      %2274 = sbr.rel (%p2272) target = $region56
    $region55: #{q_network_forward.5} parent=5 // pred_region
      %s2275 = ssub.s32 %s13, 2
      // Predicated region
      $region57: #{q_network_forward.5} parent=55 // pred_check
        %p2276 = pneg %p194
      $region58: #{q_network_forward.5} parent=55 // pred_check_branch
        %2278 = sbr.rel (%p2276) target = $region60
      $region59: #{q_network_forward.5} parent=55 // pred_region
        %p2279 = scmp.lt.s32.totalorder %s19, 1
        %s2280 = scalar_select %p2279, %s19, 1
        %s2281 = smul.addr %s2280, 8
        %s2282 = scalar_lea.vmem %s7, %s2281
      $region60: #{q_network_forward.5} parent=55 // pred_fallthru
        _
    $region56: #{q_network_forward.5} parent=5 // pred_fallthru
      _
  $region6: #{q_network_forward.5} parent=0 // loop_footer
    %s17 = sadd.s32 1, %s13
  $region7: #{q_network_forward.5} parent=0 // loop_footer_branch
    %12 = sbr.rel target = $region3
  $region8: #{q_network_forward.5} parent=0 // loop_exit
    _

</llo_original>
